<compile_context>
chip_gen: v7x
topology: tpu7x:2x2x1
jax: 0.10.0
libtpu: 0.0.40
codegen_flags: <defaults>
</compile_context>

<pallas_src>
import functools

import jax
import jax.numpy as jnp
from jax import lax
from jax.experimental import pallas as pl
from jax.experimental.pallas import tpu as pltpu

# Tap order (dh, dw) = (kh-1, kw-1), kh/kw in 0..2 — matches the per-tap
# weight layout produced by prepare_params().
_TAPS = tuple((dh, dw) for dh in (-1, 0, 1) for dw in (-1, 0, 1))
_CENTER = 4  # index of (0, 0) in _TAPS


# ---------------------------------------------------------------------------
# Kernel
# ---------------------------------------------------------------------------
def _resblock_kernel(x_ref, br_ref, wup_ref, w1u_ref, w1b_ref, bias_ref,
                     masks_ref, mw_ref, o_ref, *, W):
    """One grid step: B images, layout (C, L) with L = B*H*W on the lanes."""
    f32 = jnp.float32
    x = x_ref[...].astype(f32)       # (Cin, L)
    br = br_ref[...].astype(f32)     # (Cb,  L)
    Cout, L = o_ref.shape

    def shift(v, dh, dw):
        """Row p of the result reads pixel (h+dh, w+dw); wraps are masked."""
        delta = dh * W + dw
        if delta == 0:
            return v
        return pltpu.roll(v, shift=(-delta) % L, axis=1)

    # --- up = Conv2d(Cin->Cout, 3x3, pad=1)(x), no ReLU --------------------
    up = jnp.zeros((Cout, L), f32)
    for t, (dh, dw) in enumerate(_TAPS):
        c = jnp.dot(wup_ref[t], shift(x, dh, dw), preferred_element_type=f32)
        up = up + (c if t == _CENTER else c * masks_ref[t])
    up = up + bias_ref[:, 0:1]

    # --- conv1 = Conv2d(Cin->Cout, 3x3, pad=1)(cat([up, bridge])) + ReLU ---
    # The concat is gone: w1 was split into its up / bridge columns.
    y1 = jnp.zeros((Cout, L), f32)
    for t, (dh, dw) in enumerate(_TAPS):
        c = (jnp.dot(w1u_ref[t], shift(up, dh, dw), preferred_element_type=f32)
             + jnp.dot(w1b_ref[t], shift(br, dh, dw), preferred_element_type=f32))
        y1 = y1 + (c if t == _CENTER else c * masks_ref[t])
    y1 = jnp.maximum(y1 + bias_ref[:, 1:2], 0.0)

    # --- conv2 = depthwise 3x3 + ReLU (mask pre-fused into mw table) -------
    acc = jnp.zeros((Cout, L), f32)
    for t, (dh, dw) in enumerate(_TAPS):
        acc = acc + shift(y1, dh, dw) * mw_ref[t]
    y2 = jnp.maximum(acc + bias_ref[:, 2:3], 0.0)

    o_ref[...] = y2.astype(o_ref.dtype)


# ---------------------------------------------------------------------------
# Parameter prep (one-time JAX glue)
# ---------------------------------------------------------------------------
def _per_tap(w_oihw):
    """PyTorch (O, I, 3, 3) -> (9, O, I), tap index = kh*3 + kw."""
    O, I = w_oihw.shape[0], w_oihw.shape[1]
    return jnp.transpose(w_oihw, (2, 3, 0, 1)).reshape(9, O, I)


def prepare_params(raw):
    cout = raw["w_up"].shape[0]
    w1 = raw["w1"]
    return {
        "w_up": _per_tap(raw["w_up"]),           # (9, Cout, Cin)
        "w1_up": _per_tap(w1[:, :cout]),         # (9, Cout, Cout)  (up cols)
        "w1_br": _per_tap(w1[:, cout:]),         # (9, Cout, Cb)    (bridge cols)
        "w_dw": raw["w_dw"].reshape(cout, 9),    # (Cout, 9) per-tap depthwise
        "bias": jnp.stack([raw["b_up"], raw["b1"], raw["b_dw"]], axis=1),  # (Cout,3)
    }


def _tap_masks(H, W, L):
    """(9, 1, L) f32: 1.0 where the shifted read stays inside its image."""
    HW = H * W
    lane = jnp.arange(L, dtype=jnp.int32)
    pix = lane % HW
    h = pix // W
    w = pix % W
    rows = []
    for dh, dw in _TAPS:
        m = jnp.ones((L,), jnp.bool_)
        if dh == -1:
            m = m & (h >= 1)
        elif dh == 1:
            m = m & (h <= H - 2)
        if dw == -1:
            m = m & (w >= 1)
        elif dw == 1:
            m = m & (w <= W - 2)
        rows.append(m)
    return jnp.stack(rows, axis=0).astype(jnp.float32).reshape(9, 1, L)


def _default_num_blocks(N):
    """2 grid blocks on multi-TensorCore chips (keeps both cores busy on
    v7x/v5p/v4), 1 block on single-core v5e/v6e (minimizes per-step cost)."""
    try:
        kind = jax.devices()[0].device_kind.lower()
    except Exception:
        return 1
    multi_tc = any(tag in kind for tag in ("v7", "v5p", "v4", "v3", "v2"))
    if multi_tc and N % 2 == 0:
        return 2
    return 1


# ---------------------------------------------------------------------------
# Fused forward
# ---------------------------------------------------------------------------
def resblock_forward(x_nchw, bridge_nchw, params, num_blocks=None):
    N, Cin, H, W = x_nchw.shape
    Cb = bridge_nchw.shape[1]
    Cout = params["w_up"].shape[1]
    HW = H * W

    if num_blocks is None:
        num_blocks = _default_num_blocks(N)
    if N % num_blocks != 0:
        num_blocks = 1
    G = num_blocks
    B = N // G                     # images per grid step
    L = B * HW                     # lane width per block

    # Channels on sublanes, batch*space on lanes (one HBM-side transpose);
    # the kernel's (C, L) block is then a pure view of this layout.
    x2 = jnp.transpose(x_nchw, (1, 0, 2, 3)).reshape(Cin, N * HW)
    br2 = jnp.transpose(bridge_nchw, (1, 0, 2, 3)).reshape(Cb, N * HW)

    masks = _tap_masks(H, W, L)                                    # (9, 1, L)
    mw = masks * jnp.transpose(params["w_dw"]).reshape(9, Cout, 1)  # (9,Cout,L)

    kernel = functools.partial(_resblock_kernel, W=W)
    out2 = pl.pallas_call(
        kernel,
        out_shape=jax.ShapeDtypeStruct((Cout, N * HW), x_nchw.dtype),
        grid=(G,),
        in_specs=[
            pl.BlockSpec((Cin, L), lambda g: (0, g)),
            pl.BlockSpec((Cb, L), lambda g: (0, g)),
            pl.BlockSpec(params["w_up"].shape, lambda g: (0, 0, 0)),
            pl.BlockSpec(params["w1_up"].shape, lambda g: (0, 0, 0)),
            pl.BlockSpec(params["w1_br"].shape, lambda g: (0, 0, 0)),
            pl.BlockSpec(params["bias"].shape, lambda g: (0, 0)),
            pl.BlockSpec((9, 1, L), lambda g: (0, 0, 0)),
            pl.BlockSpec((9, Cout, L), lambda g: (0, 0, 0)),
        ],
        out_specs=pl.BlockSpec((Cout, L), lambda g: (0, g)),
        compiler_params=pltpu.CompilerParams(
            dimension_semantics=("parallel",),
            vmem_limit_bytes=32 * 1024 * 1024),
    )(x2, br2, params["w_up"], params["w1_up"], params["w1_br"],
      params["bias"], masks, mw)

    return jnp.transpose(out2.reshape(Cout, N, H, W), (1, 0, 2, 3))


# ---------------------------------------------------------------------------
# Pure-JAX reference (NCHW convs) for correctness checking.
# ---------------------------------------------------------------------------
def resblock_reference(x, bridge, raw):
    dn = ("NCHW", "OIHW", "NCHW")
    up = lax.conv_general_dilated(x, raw["w_up"], (1, 1), "SAME",
                                  dimension_numbers=dn)
    up = up + raw["b_up"][None, :, None, None]
    cat = jnp.concatenate([up, bridge], axis=1)
    y1 = lax.conv_general_dilated(cat, raw["w1"], (1, 1), "SAME",
                                  dimension_numbers=dn)
    y1 = jnp.maximum(y1 + raw["b1"][None, :, None, None], 0.0)
    c = y1.shape[1]
    y2 = lax.conv_general_dilated(y1, raw["w_dw"], (1, 1), "SAME",
                                  dimension_numbers=dn, feature_group_count=c)
    y2 = jnp.maximum(y2 + raw["b_dw"][None, :, None, None], 0.0)
    return y2


if __name__ == "__main__":
    # in_size=8, out_size=4, H=W=16, batch=2; bridge channels = 8 - 4 = 4 so
    # that cat channels == in_size (matches the module's intended usage).
    N, IN_SIZE, OUT_SIZE, H, W = 2, 8, 4, 16, 16
    BRIDGE_C = IN_SIZE - OUT_SIZE

    key = jax.random.PRNGKey(0)
    k = jax.random.split(key, 8)
    x = jax.random.normal(k[0], (N, IN_SIZE, H, W), jnp.float32)        # NCHW
    bridge = jax.random.normal(k[1], (N, BRIDGE_C, H, W), jnp.float32)  # NCHW

    # Parameters in native PyTorch shapes (OIHW weights, 1-D biases).
    raw = {
        "w_up": 0.1 * jax.random.normal(k[2], (OUT_SIZE, IN_SIZE, 3, 3),
                                        jnp.float32),
        "b_up": 0.1 * jax.random.normal(k[3], (OUT_SIZE,), jnp.float32),
        "w1": 0.1 * jax.random.normal(k[4], (OUT_SIZE, IN_SIZE, 3, 3),
                                      jnp.float32),
        "b1": 0.1 * jax.random.normal(k[5], (OUT_SIZE,), jnp.float32),
        "w_dw": 0.1 * jax.random.normal(k[6], (OUT_SIZE, 1, 3, 3),
                                        jnp.float32),
        "b_dw": 0.1 * jax.random.normal(k[7], (OUT_SIZE,), jnp.float32),
    }
    params = prepare_params(raw)

    out = jax.jit(resblock_forward)(x, bridge, params)
    out = jax.block_until_ready(out)
    assert out.shape == (N, OUT_SIZE, H, W), out.shape

    ref = jax.block_until_ready(resblock_reference(x, bridge, raw))
    max_err = float(jnp.max(jnp.abs(out - ref)))
    if max_err > 1e-4:
        raise AssertionError(f"mismatch vs reference, max abs err = {max_err}")

    print("KERNEL_OK")
</pallas_src>

<mosaic_0001>
module attributes {stable_mosaic.version = 11 : i64} {
  func.func @_resblock_kernel(%arg0: i32, %arg1: memref<8x512xf32, #tpu.memory_space<vmem>>, %arg2: memref<4x512xf32, #tpu.memory_space<vmem>>, %arg3: memref<9x4x8xf32, #tpu.memory_space<vmem>>, %arg4: memref<9x4x4xf32, #tpu.memory_space<vmem>>, %arg5: memref<9x4x4xf32, #tpu.memory_space<vmem>>, %arg6: memref<4x3xf32, #tpu.memory_space<vmem>>, %arg7: memref<9x1x512xf32, #tpu.memory_space<vmem>>, %arg8: memref<9x4x512xf32, #tpu.memory_space<vmem>>, %arg9: memref<4x512xf32, #tpu.memory_space<vmem>>) attributes {dimension_semantics = [#tpu.dimension_semantics<parallel>], iteration_bounds = array<i64: 1>, scalar_prefetch = 0 : i64, scratch_operands = 0 : i64, tpu.core_type = #tpu.core_type<tc>, window_params = [{transform_indices = @transform_0, window_bounds = array<i64: 8, 512>}, {transform_indices = @transform_1, window_bounds = array<i64: 4, 512>}, {pipeline_mode = #tpu.pipeline_mode<synchronous>, transform_indices = @transform_2, window_bounds = array<i64: 9, 4, 8>}, {pipeline_mode = #tpu.pipeline_mode<synchronous>, transform_indices = @transform_3, window_bounds = array<i64: 9, 4, 4>}, {pipeline_mode = #tpu.pipeline_mode<synchronous>, transform_indices = @transform_4, window_bounds = array<i64: 9, 4, 4>}, {pipeline_mode = #tpu.pipeline_mode<synchronous>, transform_indices = @transform_5, window_bounds = array<i64: 4, 3>}, {pipeline_mode = #tpu.pipeline_mode<synchronous>, transform_indices = @transform_6, window_bounds = array<i64: 9, 1, 512>}, {pipeline_mode = #tpu.pipeline_mode<synchronous>, transform_indices = @transform_7, window_bounds = array<i64: 9, 4, 512>}, {transform_indices = @transform_8, window_bounds = array<i64: 4, 512>}]} {
    %c0 = arith.constant 0 : index
    %c0_0 = arith.constant 0 : index
    %0 = vector.load %arg1[%c0, %c0_0] : memref<8x512xf32, #tpu.memory_space<vmem>>, vector<8x512xf32>
    %c0_1 = arith.constant 0 : index
    %c0_2 = arith.constant 0 : index
    %1 = vector.load %arg2[%c0_1, %c0_2] : memref<4x512xf32, #tpu.memory_space<vmem>>, vector<4x512xf32>
    %cst = arith.constant 0.000000e+00 : f32
    %2 = vector.broadcast %cst : f32 to vector<4x512xf32>
    %c0_3 = arith.constant 0 : index
    %c0_4 = arith.constant 0 : index
    %c0_5 = arith.constant 0 : index
    %3 = vector.load %arg3[%c0_3, %c0_4, %c0_5] : memref<9x4x8xf32, #tpu.memory_space<vmem>>, vector<1x4x8xf32>
    %4 = vector.shape_cast %3 : vector<1x4x8xf32> to vector<4x8xf32>
    %c17_i32 = arith.constant 17 : i32
    %5 = tpu.dynamic_rotate %0 by %c17_i32 dim 1 : vector<8x512xf32>, i32 -> vector<8x512xf32>
    %cst_6 = arith.constant dense<0.000000e+00> : vector<4x512xf32>
    %6 = tpu.matmul %4, %5, %cst_6 {dimension_numbers = #tpu.dot_dimension_numbers<[1], [0], [0], [1], [0, 0, 1, 1], [], []>} : vector<4x8xf32>, vector<8x512xf32>, vector<4x512xf32> -> vector<4x512xf32>
    %c0_7 = arith.constant 0 : index
    %c0_8 = arith.constant 0 : index
    %c0_9 = arith.constant 0 : index
    %7 = vector.load %arg7[%c0_7, %c0_8, %c0_9] : memref<9x1x512xf32, #tpu.memory_space<vmem>>, vector<1x1x512xf32>
    %8 = vector.shape_cast %7 : vector<1x1x512xf32> to vector<1x512xf32>
    %9 = vector.broadcast %8 : vector<1x512xf32> to vector<4x512xf32>
    %10 = arith.mulf %6, %9 : vector<4x512xf32>
    %11 = arith.addf %2, %10 : vector<4x512xf32>
    %c1 = arith.constant 1 : index
    %c0_10 = arith.constant 0 : index
    %c0_11 = arith.constant 0 : index
    %12 = vector.load %arg3[%c1, %c0_10, %c0_11] : memref<9x4x8xf32, #tpu.memory_space<vmem>>, vector<1x4x8xf32>
    %13 = vector.shape_cast %12 : vector<1x4x8xf32> to vector<4x8xf32>
    %c16_i32 = arith.constant 16 : i32
    %14 = tpu.dynamic_rotate %0 by %c16_i32 dim 1 : vector<8x512xf32>, i32 -> vector<8x512xf32>
    %cst_12 = arith.constant dense<0.000000e+00> : vector<4x512xf32>
    %15 = tpu.matmul %13, %14, %cst_12 {dimension_numbers = #tpu.dot_dimension_numbers<[1], [0], [0], [1], [0, 0, 1, 1], [], []>} : vector<4x8xf32>, vector<8x512xf32>, vector<4x512xf32> -> vector<4x512xf32>
    %c1_13 = arith.constant 1 : index
    %c0_14 = arith.constant 0 : index
    %c0_15 = arith.constant 0 : index
    %16 = vector.load %arg7[%c1_13, %c0_14, %c0_15] : memref<9x1x512xf32, #tpu.memory_space<vmem>>, vector<1x1x512xf32>
    %17 = vector.shape_cast %16 : vector<1x1x512xf32> to vector<1x512xf32>
    %18 = vector.broadcast %17 : vector<1x512xf32> to vector<4x512xf32>
    %19 = arith.mulf %15, %18 : vector<4x512xf32>
    %20 = arith.addf %11, %19 : vector<4x512xf32>
    %c2 = arith.constant 2 : index
    %c0_16 = arith.constant 0 : index
    %c0_17 = arith.constant 0 : index
    %21 = vector.load %arg3[%c2, %c0_16, %c0_17] : memref<9x4x8xf32, #tpu.memory_space<vmem>>, vector<1x4x8xf32>
    %22 = vector.shape_cast %21 : vector<1x4x8xf32> to vector<4x8xf32>
    %c15_i32 = arith.constant 15 : i32
    %23 = tpu.dynamic_rotate %0 by %c15_i32 dim 1 : vector<8x512xf32>, i32 -> vector<8x512xf32>
    %cst_18 = arith.constant dense<0.000000e+00> : vector<4x512xf32>
    %24 = tpu.matmul %22, %23, %cst_18 {dimension_numbers = #tpu.dot_dimension_numbers<[1], [0], [0], [1], [0, 0, 1, 1], [], []>} : vector<4x8xf32>, vector<8x512xf32>, vector<4x512xf32> -> vector<4x512xf32>
    %c2_19 = arith.constant 2 : index
    %c0_20 = arith.constant 0 : index
    %c0_21 = arith.constant 0 : index
    %25 = vector.load %arg7[%c2_19, %c0_20, %c0_21] : memref<9x1x512xf32, #tpu.memory_space<vmem>>, vector<1x1x512xf32>
    %26 = vector.shape_cast %25 : vector<1x1x512xf32> to vector<1x512xf32>
    %27 = vector.broadcast %26 : vector<1x512xf32> to vector<4x512xf32>
    %28 = arith.mulf %24, %27 : vector<4x512xf32>
    %29 = arith.addf %20, %28 : vector<4x512xf32>
    %c3 = arith.constant 3 : index
    %c0_22 = arith.constant 0 : index
    %c0_23 = arith.constant 0 : index
    %30 = vector.load %arg3[%c3, %c0_22, %c0_23] : memref<9x4x8xf32, #tpu.memory_space<vmem>>, vector<1x4x8xf32>
    %31 = vector.shape_cast %30 : vector<1x4x8xf32> to vector<4x8xf32>
    %c1_i32 = arith.constant 1 : i32
    %32 = tpu.dynamic_rotate %0 by %c1_i32 dim 1 : vector<8x512xf32>, i32 -> vector<8x512xf32>
    %cst_24 = arith.constant dense<0.000000e+00> : vector<4x512xf32>
    %33 = tpu.matmul %31, %32, %cst_24 {dimension_numbers = #tpu.dot_dimension_numbers<[1], [0], [0], [1], [0, 0, 1, 1], [], []>} : vector<4x8xf32>, vector<8x512xf32>, vector<4x512xf32> -> vector<4x512xf32>
    %c3_25 = arith.constant 3 : index
    %c0_26 = arith.constant 0 : index
    %c0_27 = arith.constant 0 : index
    %34 = vector.load %arg7[%c3_25, %c0_26, %c0_27] : memref<9x1x512xf32, #tpu.memory_space<vmem>>, vector<1x1x512xf32>
    %35 = vector.shape_cast %34 : vector<1x1x512xf32> to vector<1x512xf32>
    %36 = vector.broadcast %35 : vector<1x512xf32> to vector<4x512xf32>
    %37 = arith.mulf %33, %36 : vector<4x512xf32>
    %38 = arith.addf %29, %37 : vector<4x512xf32>
    %c4 = arith.constant 4 : index
    %c0_28 = arith.constant 0 : index
    %c0_29 = arith.constant 0 : index
    %39 = vector.load %arg3[%c4, %c0_28, %c0_29] : memref<9x4x8xf32, #tpu.memory_space<vmem>>, vector<1x4x8xf32>
    %40 = vector.shape_cast %39 : vector<1x4x8xf32> to vector<4x8xf32>
    %cst_30 = arith.constant dense<0.000000e+00> : vector<4x512xf32>
    %41 = tpu.matmul %40, %0, %cst_30 {dimension_numbers = #tpu.dot_dimension_numbers<[1], [0], [0], [1], [0, 0, 1, 1], [], []>} : vector<4x8xf32>, vector<8x512xf32>, vector<4x512xf32> -> vector<4x512xf32>
    %42 = arith.addf %38, %41 : vector<4x512xf32>
    %c5 = arith.constant 5 : index
    %c0_31 = arith.constant 0 : index
    %c0_32 = arith.constant 0 : index
    %43 = vector.load %arg3[%c5, %c0_31, %c0_32] : memref<9x4x8xf32, #tpu.memory_space<vmem>>, vector<1x4x8xf32>
    %44 = vector.shape_cast %43 : vector<1x4x8xf32> to vector<4x8xf32>
    %c511_i32 = arith.constant 511 : i32
    %45 = tpu.dynamic_rotate %0 by %c511_i32 dim 1 : vector<8x512xf32>, i32 -> vector<8x512xf32>
    %cst_33 = arith.constant dense<0.000000e+00> : vector<4x512xf32>
    %46 = tpu.matmul %44, %45, %cst_33 {dimension_numbers = #tpu.dot_dimension_numbers<[1], [0], [0], [1], [0, 0, 1, 1], [], []>} : vector<4x8xf32>, vector<8x512xf32>, vector<4x512xf32> -> vector<4x512xf32>
    %c5_34 = arith.constant 5 : index
    %c0_35 = arith.constant 0 : index
    %c0_36 = arith.constant 0 : index
    %47 = vector.load %arg7[%c5_34, %c0_35, %c0_36] : memref<9x1x512xf32, #tpu.memory_space<vmem>>, vector<1x1x512xf32>
    %48 = vector.shape_cast %47 : vector<1x1x512xf32> to vector<1x512xf32>
    %49 = vector.broadcast %48 : vector<1x512xf32> to vector<4x512xf32>
    %50 = arith.mulf %46, %49 : vector<4x512xf32>
    %51 = arith.addf %42, %50 : vector<4x512xf32>
    %c6 = arith.constant 6 : index
    %c0_37 = arith.constant 0 : index
    %c0_38 = arith.constant 0 : index
    %52 = vector.load %arg3[%c6, %c0_37, %c0_38] : memref<9x4x8xf32, #tpu.memory_space<vmem>>, vector<1x4x8xf32>
    %53 = vector.shape_cast %52 : vector<1x4x8xf32> to vector<4x8xf32>
    %c497_i32 = arith.constant 497 : i32
    %54 = tpu.dynamic_rotate %0 by %c497_i32 dim 1 : vector<8x512xf32>, i32 -> vector<8x512xf32>
    %cst_39 = arith.constant dense<0.000000e+00> : vector<4x512xf32>
    %55 = tpu.matmul %53, %54, %cst_39 {dimension_numbers = #tpu.dot_dimension_numbers<[1], [0], [0], [1], [0, 0, 1, 1], [], []>} : vector<4x8xf32>, vector<8x512xf32>, vector<4x512xf32> -> vector<4x512xf32>
    %c6_40 = arith.constant 6 : index
    %c0_41 = arith.constant 0 : index
    %c0_42 = arith.constant 0 : index
    %56 = vector.load %arg7[%c6_40, %c0_41, %c0_42] : memref<9x1x512xf32, #tpu.memory_space<vmem>>, vector<1x1x512xf32>
    %57 = vector.shape_cast %56 : vector<1x1x512xf32> to vector<1x512xf32>
    %58 = vector.broadcast %57 : vector<1x512xf32> to vector<4x512xf32>
    %59 = arith.mulf %55, %58 : vector<4x512xf32>
    %60 = arith.addf %51, %59 : vector<4x512xf32>
    %c7 = arith.constant 7 : index
    %c0_43 = arith.constant 0 : index
    %c0_44 = arith.constant 0 : index
    %61 = vector.load %arg3[%c7, %c0_43, %c0_44] : memref<9x4x8xf32, #tpu.memory_space<vmem>>, vector<1x4x8xf32>
    %62 = vector.shape_cast %61 : vector<1x4x8xf32> to vector<4x8xf32>
    %c496_i32 = arith.constant 496 : i32
    %63 = tpu.dynamic_rotate %0 by %c496_i32 dim 1 : vector<8x512xf32>, i32 -> vector<8x512xf32>
    %cst_45 = arith.constant dense<0.000000e+00> : vector<4x512xf32>
    %64 = tpu.matmul %62, %63, %cst_45 {dimension_numbers = #tpu.dot_dimension_numbers<[1], [0], [0], [1], [0, 0, 1, 1], [], []>} : vector<4x8xf32>, vector<8x512xf32>, vector<4x512xf32> -> vector<4x512xf32>
    %c7_46 = arith.constant 7 : index
    %c0_47 = arith.constant 0 : index
    %c0_48 = arith.constant 0 : index
    %65 = vector.load %arg7[%c7_46, %c0_47, %c0_48] : memref<9x1x512xf32, #tpu.memory_space<vmem>>, vector<1x1x512xf32>
    %66 = vector.shape_cast %65 : vector<1x1x512xf32> to vector<1x512xf32>
    %67 = vector.broadcast %66 : vector<1x512xf32> to vector<4x512xf32>
    %68 = arith.mulf %64, %67 : vector<4x512xf32>
    %69 = arith.addf %60, %68 : vector<4x512xf32>
    %c8 = arith.constant 8 : index
    %c0_49 = arith.constant 0 : index
    %c0_50 = arith.constant 0 : index
    %70 = vector.load %arg3[%c8, %c0_49, %c0_50] : memref<9x4x8xf32, #tpu.memory_space<vmem>>, vector<1x4x8xf32>
    %71 = vector.shape_cast %70 : vector<1x4x8xf32> to vector<4x8xf32>
    %c495_i32 = arith.constant 495 : i32
    %72 = tpu.dynamic_rotate %0 by %c495_i32 dim 1 : vector<8x512xf32>, i32 -> vector<8x512xf32>
    %cst_51 = arith.constant dense<0.000000e+00> : vector<4x512xf32>
    %73 = tpu.matmul %71, %72, %cst_51 {dimension_numbers = #tpu.dot_dimension_numbers<[1], [0], [0], [1], [0, 0, 1, 1], [], []>} : vector<4x8xf32>, vector<8x512xf32>, vector<4x512xf32> -> vector<4x512xf32>
    %c8_52 = arith.constant 8 : index
    %c0_53 = arith.constant 0 : index
    %c0_54 = arith.constant 0 : index
    %74 = vector.load %arg7[%c8_52, %c0_53, %c0_54] : memref<9x1x512xf32, #tpu.memory_space<vmem>>, vector<1x1x512xf32>
    %75 = vector.shape_cast %74 : vector<1x1x512xf32> to vector<1x512xf32>
    %76 = vector.broadcast %75 : vector<1x512xf32> to vector<4x512xf32>
    %77 = arith.mulf %73, %76 : vector<4x512xf32>
    %78 = arith.addf %69, %77 : vector<4x512xf32>
    %c0_55 = arith.constant 0 : index
    %c0_56 = arith.constant 0 : index
    %79 = vector.load %arg6[%c0_55, %c0_56] : memref<4x3xf32, #tpu.memory_space<vmem>>, vector<4x1xf32>
    %80 = vector.broadcast %79 : vector<4x1xf32> to vector<4x512xf32>
    %81 = arith.addf %78, %80 : vector<4x512xf32>
    %cst_57 = arith.constant 0.000000e+00 : f32
    %82 = vector.broadcast %cst_57 : f32 to vector<4x512xf32>
    %c0_58 = arith.constant 0 : index
    %c0_59 = arith.constant 0 : index
    %c0_60 = arith.constant 0 : index
    %83 = vector.load %arg4[%c0_58, %c0_59, %c0_60] : memref<9x4x4xf32, #tpu.memory_space<vmem>>, vector<1x4x4xf32>
    %84 = vector.shape_cast %83 : vector<1x4x4xf32> to vector<4x4xf32>
    %c17_i32_61 = arith.constant 17 : i32
    %85 = tpu.dynamic_rotate %81 by %c17_i32_61 dim 1 : vector<4x512xf32>, i32 -> vector<4x512xf32>
    %cst_62 = arith.constant dense<0.000000e+00> : vector<4x512xf32>
    %86 = tpu.matmul %84, %85, %cst_62 {dimension_numbers = #tpu.dot_dimension_numbers<[1], [0], [0], [1], [0, 0, 1, 1], [], []>} : vector<4x4xf32>, vector<4x512xf32>, vector<4x512xf32> -> vector<4x512xf32>
    %c0_63 = arith.constant 0 : index
    %c0_64 = arith.constant 0 : index
    %c0_65 = arith.constant 0 : index
    %87 = vector.load %arg5[%c0_63, %c0_64, %c0_65] : memref<9x4x4xf32, #tpu.memory_space<vmem>>, vector<1x4x4xf32>
    %88 = vector.shape_cast %87 : vector<1x4x4xf32> to vector<4x4xf32>
    %c17_i32_66 = arith.constant 17 : i32
    %89 = tpu.dynamic_rotate %1 by %c17_i32_66 dim 1 : vector<4x512xf32>, i32 -> vector<4x512xf32>
    %cst_67 = arith.constant dense<0.000000e+00> : vector<4x512xf32>
    %90 = tpu.matmul %88, %89, %cst_67 {dimension_numbers = #tpu.dot_dimension_numbers<[1], [0], [0], [1], [0, 0, 1, 1], [], []>} : vector<4x4xf32>, vector<4x512xf32>, vector<4x512xf32> -> vector<4x512xf32>
    %91 = arith.addf %86, %90 : vector<4x512xf32>
    %c0_68 = arith.constant 0 : index
    %c0_69 = arith.constant 0 : index
    %c0_70 = arith.constant 0 : index
    %92 = vector.load %arg7[%c0_68, %c0_69, %c0_70] : memref<9x1x512xf32, #tpu.memory_space<vmem>>, vector<1x1x512xf32>
    %93 = vector.shape_cast %92 : vector<1x1x512xf32> to vector<1x512xf32>
    %94 = vector.broadcast %93 : vector<1x512xf32> to vector<4x512xf32>
    %95 = arith.mulf %91, %94 : vector<4x512xf32>
    %96 = arith.addf %82, %95 : vector<4x512xf32>
    %c1_71 = arith.constant 1 : index
    %c0_72 = arith.constant 0 : index
    %c0_73 = arith.constant 0 : index
    %97 = vector.load %arg4[%c1_71, %c0_72, %c0_73] : memref<9x4x4xf32, #tpu.memory_space<vmem>>, vector<1x4x4xf32>
    %98 = vector.shape_cast %97 : vector<1x4x4xf32> to vector<4x4xf32>
    %c16_i32_74 = arith.constant 16 : i32
    %99 = tpu.dynamic_rotate %81 by %c16_i32_74 dim 1 : vector<4x512xf32>, i32 -> vector<4x512xf32>
    %cst_75 = arith.constant dense<0.000000e+00> : vector<4x512xf32>
    %100 = tpu.matmul %98, %99, %cst_75 {dimension_numbers = #tpu.dot_dimension_numbers<[1], [0], [0], [1], [0, 0, 1, 1], [], []>} : vector<4x4xf32>, vector<4x512xf32>, vector<4x512xf32> -> vector<4x512xf32>
    %c1_76 = arith.constant 1 : index
    %c0_77 = arith.constant 0 : index
    %c0_78 = arith.constant 0 : index
    %101 = vector.load %arg5[%c1_76, %c0_77, %c0_78] : memref<9x4x4xf32, #tpu.memory_space<vmem>>, vector<1x4x4xf32>
    %102 = vector.shape_cast %101 : vector<1x4x4xf32> to vector<4x4xf32>
    %c16_i32_79 = arith.constant 16 : i32
    %103 = tpu.dynamic_rotate %1 by %c16_i32_79 dim 1 : vector<4x512xf32>, i32 -> vector<4x512xf32>
    %cst_80 = arith.constant dense<0.000000e+00> : vector<4x512xf32>
    %104 = tpu.matmul %102, %103, %cst_80 {dimension_numbers = #tpu.dot_dimension_numbers<[1], [0], [0], [1], [0, 0, 1, 1], [], []>} : vector<4x4xf32>, vector<4x512xf32>, vector<4x512xf32> -> vector<4x512xf32>
    %105 = arith.addf %100, %104 : vector<4x512xf32>
    %c1_81 = arith.constant 1 : index
    %c0_82 = arith.constant 0 : index
    %c0_83 = arith.constant 0 : index
    %106 = vector.load %arg7[%c1_81, %c0_82, %c0_83] : memref<9x1x512xf32, #tpu.memory_space<vmem>>, vector<1x1x512xf32>
    %107 = vector.shape_cast %106 : vector<1x1x512xf32> to vector<1x512xf32>
    %108 = vector.broadcast %107 : vector<1x512xf32> to vector<4x512xf32>
    %109 = arith.mulf %105, %108 : vector<4x512xf32>
    %110 = arith.addf %96, %109 : vector<4x512xf32>
    %c2_84 = arith.constant 2 : index
    %c0_85 = arith.constant 0 : index
    %c0_86 = arith.constant 0 : index
    %111 = vector.load %arg4[%c2_84, %c0_85, %c0_86] : memref<9x4x4xf32, #tpu.memory_space<vmem>>, vector<1x4x4xf32>
    %112 = vector.shape_cast %111 : vector<1x4x4xf32> to vector<4x4xf32>
    %c15_i32_87 = arith.constant 15 : i32
    %113 = tpu.dynamic_rotate %81 by %c15_i32_87 dim 1 : vector<4x512xf32>, i32 -> vector<4x512xf32>
    %cst_88 = arith.constant dense<0.000000e+00> : vector<4x512xf32>
    %114 = tpu.matmul %112, %113, %cst_88 {dimension_numbers = #tpu.dot_dimension_numbers<[1], [0], [0], [1], [0, 0, 1, 1], [], []>} : vector<4x4xf32>, vector<4x512xf32>, vector<4x512xf32> -> vector<4x512xf32>
    %c2_89 = arith.constant 2 : index
    %c0_90 = arith.constant 0 : index
    %c0_91 = arith.constant 0 : index
    %115 = vector.load %arg5[%c2_89, %c0_90, %c0_91] : memref<9x4x4xf32, #tpu.memory_space<vmem>>, vector<1x4x4xf32>
    %116 = vector.shape_cast %115 : vector<1x4x4xf32> to vector<4x4xf32>
    %c15_i32_92 = arith.constant 15 : i32
    %117 = tpu.dynamic_rotate %1 by %c15_i32_92 dim 1 : vector<4x512xf32>, i32 -> vector<4x512xf32>
    %cst_93 = arith.constant dense<0.000000e+00> : vector<4x512xf32>
    %118 = tpu.matmul %116, %117, %cst_93 {dimension_numbers = #tpu.dot_dimension_numbers<[1], [0], [0], [1], [0, 0, 1, 1], [], []>} : vector<4x4xf32>, vector<4x512xf32>, vector<4x512xf32> -> vector<4x512xf32>
    %119 = arith.addf %114, %118 : vector<4x512xf32>
    %c2_94 = arith.constant 2 : index
    %c0_95 = arith.constant 0 : index
    %c0_96 = arith.constant 0 : index
    %120 = vector.load %arg7[%c2_94, %c0_95, %c0_96] : memref<9x1x512xf32, #tpu.memory_space<vmem>>, vector<1x1x512xf32>
    %121 = vector.shape_cast %120 : vector<1x1x512xf32> to vector<1x512xf32>
    %122 = vector.broadcast %121 : vector<1x512xf32> to vector<4x512xf32>
    %123 = arith.mulf %119, %122 : vector<4x512xf32>
    %124 = arith.addf %110, %123 : vector<4x512xf32>
    %c3_97 = arith.constant 3 : index
    %c0_98 = arith.constant 0 : index
    %c0_99 = arith.constant 0 : index
    %125 = vector.load %arg4[%c3_97, %c0_98, %c0_99] : memref<9x4x4xf32, #tpu.memory_space<vmem>>, vector<1x4x4xf32>
    %126 = vector.shape_cast %125 : vector<1x4x4xf32> to vector<4x4xf32>
    %c1_i32_100 = arith.constant 1 : i32
    %127 = tpu.dynamic_rotate %81 by %c1_i32_100 dim 1 : vector<4x512xf32>, i32 -> vector<4x512xf32>
    %cst_101 = arith.constant dense<0.000000e+00> : vector<4x512xf32>
    %128 = tpu.matmul %126, %127, %cst_101 {dimension_numbers = #tpu.dot_dimension_numbers<[1], [0], [0], [1], [0, 0, 1, 1], [], []>} : vector<4x4xf32>, vector<4x512xf32>, vector<4x512xf32> -> vector<4x512xf32>
    %c3_102 = arith.constant 3 : index
    %c0_103 = arith.constant 0 : index
    %c0_104 = arith.constant 0 : index
    %129 = vector.load %arg5[%c3_102, %c0_103, %c0_104] : memref<9x4x4xf32, #tpu.memory_space<vmem>>, vector<1x4x4xf32>
    %130 = vector.shape_cast %129 : vector<1x4x4xf32> to vector<4x4xf32>
    %c1_i32_105 = arith.constant 1 : i32
    %131 = tpu.dynamic_rotate %1 by %c1_i32_105 dim 1 : vector<4x512xf32>, i32 -> vector<4x512xf32>
    %cst_106 = arith.constant dense<0.000000e+00> : vector<4x512xf32>
    %132 = tpu.matmul %130, %131, %cst_106 {dimension_numbers = #tpu.dot_dimension_numbers<[1], [0], [0], [1], [0, 0, 1, 1], [], []>} : vector<4x4xf32>, vector<4x512xf32>, vector<4x512xf32> -> vector<4x512xf32>
    %133 = arith.addf %128, %132 : vector<4x512xf32>
    %c3_107 = arith.constant 3 : index
    %c0_108 = arith.constant 0 : index
    %c0_109 = arith.constant 0 : index
    %134 = vector.load %arg7[%c3_107, %c0_108, %c0_109] : memref<9x1x512xf32, #tpu.memory_space<vmem>>, vector<1x1x512xf32>
    %135 = vector.shape_cast %134 : vector<1x1x512xf32> to vector<1x512xf32>
    %136 = vector.broadcast %135 : vector<1x512xf32> to vector<4x512xf32>
    %137 = arith.mulf %133, %136 : vector<4x512xf32>
    %138 = arith.addf %124, %137 : vector<4x512xf32>
    %c4_110 = arith.constant 4 : index
    %c0_111 = arith.constant 0 : index
    %c0_112 = arith.constant 0 : index
    %139 = vector.load %arg4[%c4_110, %c0_111, %c0_112] : memref<9x4x4xf32, #tpu.memory_space<vmem>>, vector<1x4x4xf32>
    %140 = vector.shape_cast %139 : vector<1x4x4xf32> to vector<4x4xf32>
    %cst_113 = arith.constant dense<0.000000e+00> : vector<4x512xf32>
    %141 = tpu.matmul %140, %81, %cst_113 {dimension_numbers = #tpu.dot_dimension_numbers<[1], [0], [0], [1], [0, 0, 1, 1], [], []>} : vector<4x4xf32>, vector<4x512xf32>, vector<4x512xf32> -> vector<4x512xf32>
    %c4_114 = arith.constant 4 : index
    %c0_115 = arith.constant 0 : index
    %c0_116 = arith.constant 0 : index
    %142 = vector.load %arg5[%c4_114, %c0_115, %c0_116] : memref<9x4x4xf32, #tpu.memory_space<vmem>>, vector<1x4x4xf32>
    %143 = vector.shape_cast %142 : vector<1x4x4xf32> to vector<4x4xf32>
    %cst_117 = arith.constant dense<0.000000e+00> : vector<4x512xf32>
    %144 = tpu.matmul %143, %1, %cst_117 {dimension_numbers = #tpu.dot_dimension_numbers<[1], [0], [0], [1], [0, 0, 1, 1], [], []>} : vector<4x4xf32>, vector<4x512xf32>, vector<4x512xf32> -> vector<4x512xf32>
    %145 = arith.addf %141, %144 : vector<4x512xf32>
    %146 = arith.addf %138, %145 : vector<4x512xf32>
    %c5_118 = arith.constant 5 : index
    %c0_119 = arith.constant 0 : index
    %c0_120 = arith.constant 0 : index
    %147 = vector.load %arg4[%c5_118, %c0_119, %c0_120] : memref<9x4x4xf32, #tpu.memory_space<vmem>>, vector<1x4x4xf32>
    %148 = vector.shape_cast %147 : vector<1x4x4xf32> to vector<4x4xf32>
    %c511_i32_121 = arith.constant 511 : i32
    %149 = tpu.dynamic_rotate %81 by %c511_i32_121 dim 1 : vector<4x512xf32>, i32 -> vector<4x512xf32>
    %cst_122 = arith.constant dense<0.000000e+00> : vector<4x512xf32>
    %150 = tpu.matmul %148, %149, %cst_122 {dimension_numbers = #tpu.dot_dimension_numbers<[1], [0], [0], [1], [0, 0, 1, 1], [], []>} : vector<4x4xf32>, vector<4x512xf32>, vector<4x512xf32> -> vector<4x512xf32>
    %c5_123 = arith.constant 5 : index
    %c0_124 = arith.constant 0 : index
    %c0_125 = arith.constant 0 : index
    %151 = vector.load %arg5[%c5_123, %c0_124, %c0_125] : memref<9x4x4xf32, #tpu.memory_space<vmem>>, vector<1x4x4xf32>
    %152 = vector.shape_cast %151 : vector<1x4x4xf32> to vector<4x4xf32>
    %c511_i32_126 = arith.constant 511 : i32
    %153 = tpu.dynamic_rotate %1 by %c511_i32_126 dim 1 : vector<4x512xf32>, i32 -> vector<4x512xf32>
    %cst_127 = arith.constant dense<0.000000e+00> : vector<4x512xf32>
    %154 = tpu.matmul %152, %153, %cst_127 {dimension_numbers = #tpu.dot_dimension_numbers<[1], [0], [0], [1], [0, 0, 1, 1], [], []>} : vector<4x4xf32>, vector<4x512xf32>, vector<4x512xf32> -> vector<4x512xf32>
    %155 = arith.addf %150, %154 : vector<4x512xf32>
    %c5_128 = arith.constant 5 : index
    %c0_129 = arith.constant 0 : index
    %c0_130 = arith.constant 0 : index
    %156 = vector.load %arg7[%c5_128, %c0_129, %c0_130] : memref<9x1x512xf32, #tpu.memory_space<vmem>>, vector<1x1x512xf32>
    %157 = vector.shape_cast %156 : vector<1x1x512xf32> to vector<1x512xf32>
    %158 = vector.broadcast %157 : vector<1x512xf32> to vector<4x512xf32>
    %159 = arith.mulf %155, %158 : vector<4x512xf32>
    %160 = arith.addf %146, %159 : vector<4x512xf32>
    %c6_131 = arith.constant 6 : index
    %c0_132 = arith.constant 0 : index
    %c0_133 = arith.constant 0 : index
    %161 = vector.load %arg4[%c6_131, %c0_132, %c0_133] : memref<9x4x4xf32, #tpu.memory_space<vmem>>, vector<1x4x4xf32>
    %162 = vector.shape_cast %161 : vector<1x4x4xf32> to vector<4x4xf32>
    %c497_i32_134 = arith.constant 497 : i32
    %163 = tpu.dynamic_rotate %81 by %c497_i32_134 dim 1 : vector<4x512xf32>, i32 -> vector<4x512xf32>
    %cst_135 = arith.constant dense<0.000000e+00> : vector<4x512xf32>
    %164 = tpu.matmul %162, %163, %cst_135 {dimension_numbers = #tpu.dot_dimension_numbers<[1], [0], [0], [1], [0, 0, 1, 1], [], []>} : vector<4x4xf32>, vector<4x512xf32>, vector<4x512xf32> -> vector<4x512xf32>
    %c6_136 = arith.constant 6 : index
    %c0_137 = arith.constant 0 : index
    %c0_138 = arith.constant 0 : index
    %165 = vector.load %arg5[%c6_136, %c0_137, %c0_138] : memref<9x4x4xf32, #tpu.memory_space<vmem>>, vector<1x4x4xf32>
    %166 = vector.shape_cast %165 : vector<1x4x4xf32> to vector<4x4xf32>
    %c497_i32_139 = arith.constant 497 : i32
    %167 = tpu.dynamic_rotate %1 by %c497_i32_139 dim 1 : vector<4x512xf32>, i32 -> vector<4x512xf32>
    %cst_140 = arith.constant dense<0.000000e+00> : vector<4x512xf32>
    %168 = tpu.matmul %166, %167, %cst_140 {dimension_numbers = #tpu.dot_dimension_numbers<[1], [0], [0], [1], [0, 0, 1, 1], [], []>} : vector<4x4xf32>, vector<4x512xf32>, vector<4x512xf32> -> vector<4x512xf32>
    %169 = arith.addf %164, %168 : vector<4x512xf32>
    %c6_141 = arith.constant 6 : index
    %c0_142 = arith.constant 0 : index
    %c0_143 = arith.constant 0 : index
    %170 = vector.load %arg7[%c6_141, %c0_142, %c0_143] : memref<9x1x512xf32, #tpu.memory_space<vmem>>, vector<1x1x512xf32>
    %171 = vector.shape_cast %170 : vector<1x1x512xf32> to vector<1x512xf32>
    %172 = vector.broadcast %171 : vector<1x512xf32> to vector<4x512xf32>
    %173 = arith.mulf %169, %172 : vector<4x512xf32>
    %174 = arith.addf %160, %173 : vector<4x512xf32>
    %c7_144 = arith.constant 7 : index
    %c0_145 = arith.constant 0 : index
    %c0_146 = arith.constant 0 : index
    %175 = vector.load %arg4[%c7_144, %c0_145, %c0_146] : memref<9x4x4xf32, #tpu.memory_space<vmem>>, vector<1x4x4xf32>
    %176 = vector.shape_cast %175 : vector<1x4x4xf32> to vector<4x4xf32>
    %c496_i32_147 = arith.constant 496 : i32
    %177 = tpu.dynamic_rotate %81 by %c496_i32_147 dim 1 : vector<4x512xf32>, i32 -> vector<4x512xf32>
    %cst_148 = arith.constant dense<0.000000e+00> : vector<4x512xf32>
    %178 = tpu.matmul %176, %177, %cst_148 {dimension_numbers = #tpu.dot_dimension_numbers<[1], [0], [0], [1], [0, 0, 1, 1], [], []>} : vector<4x4xf32>, vector<4x512xf32>, vector<4x512xf32> -> vector<4x512xf32>
    %c7_149 = arith.constant 7 : index
    %c0_150 = arith.constant 0 : index
    %c0_151 = arith.constant 0 : index
    %179 = vector.load %arg5[%c7_149, %c0_150, %c0_151] : memref<9x4x4xf32, #tpu.memory_space<vmem>>, vector<1x4x4xf32>
    %180 = vector.shape_cast %179 : vector<1x4x4xf32> to vector<4x4xf32>
    %c496_i32_152 = arith.constant 496 : i32
    %181 = tpu.dynamic_rotate %1 by %c496_i32_152 dim 1 : vector<4x512xf32>, i32 -> vector<4x512xf32>
    %cst_153 = arith.constant dense<0.000000e+00> : vector<4x512xf32>
    %182 = tpu.matmul %180, %181, %cst_153 {dimension_numbers = #tpu.dot_dimension_numbers<[1], [0], [0], [1], [0, 0, 1, 1], [], []>} : vector<4x4xf32>, vector<4x512xf32>, vector<4x512xf32> -> vector<4x512xf32>
    %183 = arith.addf %178, %182 : vector<4x512xf32>
    %c7_154 = arith.constant 7 : index
    %c0_155 = arith.constant 0 : index
    %c0_156 = arith.constant 0 : index
    %184 = vector.load %arg7[%c7_154, %c0_155, %c0_156] : memref<9x1x512xf32, #tpu.memory_space<vmem>>, vector<1x1x512xf32>
    %185 = vector.shape_cast %184 : vector<1x1x512xf32> to vector<1x512xf32>
    %186 = vector.broadcast %185 : vector<1x512xf32> to vector<4x512xf32>
    %187 = arith.mulf %183, %186 : vector<4x512xf32>
    %188 = arith.addf %174, %187 : vector<4x512xf32>
    %c8_157 = arith.constant 8 : index
    %c0_158 = arith.constant 0 : index
    %c0_159 = arith.constant 0 : index
    %189 = vector.load %arg4[%c8_157, %c0_158, %c0_159] : memref<9x4x4xf32, #tpu.memory_space<vmem>>, vector<1x4x4xf32>
    %190 = vector.shape_cast %189 : vector<1x4x4xf32> to vector<4x4xf32>
    %c495_i32_160 = arith.constant 495 : i32
    %191 = tpu.dynamic_rotate %81 by %c495_i32_160 dim 1 : vector<4x512xf32>, i32 -> vector<4x512xf32>
    %cst_161 = arith.constant dense<0.000000e+00> : vector<4x512xf32>
    %192 = tpu.matmul %190, %191, %cst_161 {dimension_numbers = #tpu.dot_dimension_numbers<[1], [0], [0], [1], [0, 0, 1, 1], [], []>} : vector<4x4xf32>, vector<4x512xf32>, vector<4x512xf32> -> vector<4x512xf32>
    %c8_162 = arith.constant 8 : index
    %c0_163 = arith.constant 0 : index
    %c0_164 = arith.constant 0 : index
    %193 = vector.load %arg5[%c8_162, %c0_163, %c0_164] : memref<9x4x4xf32, #tpu.memory_space<vmem>>, vector<1x4x4xf32>
    %194 = vector.shape_cast %193 : vector<1x4x4xf32> to vector<4x4xf32>
    %c495_i32_165 = arith.constant 495 : i32
    %195 = tpu.dynamic_rotate %1 by %c495_i32_165 dim 1 : vector<4x512xf32>, i32 -> vector<4x512xf32>
    %cst_166 = arith.constant dense<0.000000e+00> : vector<4x512xf32>
    %196 = tpu.matmul %194, %195, %cst_166 {dimension_numbers = #tpu.dot_dimension_numbers<[1], [0], [0], [1], [0, 0, 1, 1], [], []>} : vector<4x4xf32>, vector<4x512xf32>, vector<4x512xf32> -> vector<4x512xf32>
    %197 = arith.addf %192, %196 : vector<4x512xf32>
    %c8_167 = arith.constant 8 : index
    %c0_168 = arith.constant 0 : index
    %c0_169 = arith.constant 0 : index
    %198 = vector.load %arg7[%c8_167, %c0_168, %c0_169] : memref<9x1x512xf32, #tpu.memory_space<vmem>>, vector<1x1x512xf32>
    %199 = vector.shape_cast %198 : vector<1x1x512xf32> to vector<1x512xf32>
    %200 = vector.broadcast %199 : vector<1x512xf32> to vector<4x512xf32>
    %201 = arith.mulf %197, %200 : vector<4x512xf32>
    %202 = arith.addf %188, %201 : vector<4x512xf32>
    %c0_170 = arith.constant 0 : index
    %c1_171 = arith.constant 1 : index
    %203 = vector.load %arg6[%c0_170, %c1_171] : memref<4x3xf32, #tpu.memory_space<vmem>>, vector<4x1xf32>
    %204 = vector.broadcast %203 : vector<4x1xf32> to vector<4x512xf32>
    %205 = arith.addf %202, %204 : vector<4x512xf32>
    %cst_172 = arith.constant 0.000000e+00 : f32
    %206 = vector.broadcast %cst_172 : f32 to vector<4x512xf32>
    %207 = arith.maximumf %205, %206 : vector<4x512xf32>
    %cst_173 = arith.constant 0.000000e+00 : f32
    %208 = vector.broadcast %cst_173 : f32 to vector<4x512xf32>
    %c17_i32_174 = arith.constant 17 : i32
    %209 = tpu.dynamic_rotate %207 by %c17_i32_174 dim 1 : vector<4x512xf32>, i32 -> vector<4x512xf32>
    %c0_175 = arith.constant 0 : index
    %c0_176 = arith.constant 0 : index
    %c0_177 = arith.constant 0 : index
    %210 = vector.load %arg8[%c0_175, %c0_176, %c0_177] : memref<9x4x512xf32, #tpu.memory_space<vmem>>, vector<1x4x512xf32>
    %211 = vector.shape_cast %210 : vector<1x4x512xf32> to vector<4x512xf32>
    %212 = arith.mulf %209, %211 : vector<4x512xf32>
    %213 = arith.addf %208, %212 : vector<4x512xf32>
    %c16_i32_178 = arith.constant 16 : i32
    %214 = tpu.dynamic_rotate %207 by %c16_i32_178 dim 1 : vector<4x512xf32>, i32 -> vector<4x512xf32>
    %c1_179 = arith.constant 1 : index
    %c0_180 = arith.constant 0 : index
    %c0_181 = arith.constant 0 : index
    %215 = vector.load %arg8[%c1_179, %c0_180, %c0_181] : memref<9x4x512xf32, #tpu.memory_space<vmem>>, vector<1x4x512xf32>
    %216 = vector.shape_cast %215 : vector<1x4x512xf32> to vector<4x512xf32>
    %217 = arith.mulf %214, %216 : vector<4x512xf32>
    %218 = arith.addf %213, %217 : vector<4x512xf32>
    %c15_i32_182 = arith.constant 15 : i32
    %219 = tpu.dynamic_rotate %207 by %c15_i32_182 dim 1 : vector<4x512xf32>, i32 -> vector<4x512xf32>
    %c2_183 = arith.constant 2 : index
    %c0_184 = arith.constant 0 : index
    %c0_185 = arith.constant 0 : index
    %220 = vector.load %arg8[%c2_183, %c0_184, %c0_185] : memref<9x4x512xf32, #tpu.memory_space<vmem>>, vector<1x4x512xf32>
    %221 = vector.shape_cast %220 : vector<1x4x512xf32> to vector<4x512xf32>
    %222 = arith.mulf %219, %221 : vector<4x512xf32>
    %223 = arith.addf %218, %222 : vector<4x512xf32>
    %c1_i32_186 = arith.constant 1 : i32
    %224 = tpu.dynamic_rotate %207 by %c1_i32_186 dim 1 : vector<4x512xf32>, i32 -> vector<4x512xf32>
    %c3_187 = arith.constant 3 : index
    %c0_188 = arith.constant 0 : index
    %c0_189 = arith.constant 0 : index
    %225 = vector.load %arg8[%c3_187, %c0_188, %c0_189] : memref<9x4x512xf32, #tpu.memory_space<vmem>>, vector<1x4x512xf32>
    %226 = vector.shape_cast %225 : vector<1x4x512xf32> to vector<4x512xf32>
    %227 = arith.mulf %224, %226 : vector<4x512xf32>
    %228 = arith.addf %223, %227 : vector<4x512xf32>
    %c4_190 = arith.constant 4 : index
    %c0_191 = arith.constant 0 : index
    %c0_192 = arith.constant 0 : index
    %229 = vector.load %arg8[%c4_190, %c0_191, %c0_192] : memref<9x4x512xf32, #tpu.memory_space<vmem>>, vector<1x4x512xf32>
    %230 = vector.shape_cast %229 : vector<1x4x512xf32> to vector<4x512xf32>
    %231 = arith.mulf %207, %230 : vector<4x512xf32>
    %232 = arith.addf %228, %231 : vector<4x512xf32>
    %c511_i32_193 = arith.constant 511 : i32
    %233 = tpu.dynamic_rotate %207 by %c511_i32_193 dim 1 : vector<4x512xf32>, i32 -> vector<4x512xf32>
    %c5_194 = arith.constant 5 : index
    %c0_195 = arith.constant 0 : index
    %c0_196 = arith.constant 0 : index
    %234 = vector.load %arg8[%c5_194, %c0_195, %c0_196] : memref<9x4x512xf32, #tpu.memory_space<vmem>>, vector<1x4x512xf32>
    %235 = vector.shape_cast %234 : vector<1x4x512xf32> to vector<4x512xf32>
    %236 = arith.mulf %233, %235 : vector<4x512xf32>
    %237 = arith.addf %232, %236 : vector<4x512xf32>
    %c497_i32_197 = arith.constant 497 : i32
    %238 = tpu.dynamic_rotate %207 by %c497_i32_197 dim 1 : vector<4x512xf32>, i32 -> vector<4x512xf32>
    %c6_198 = arith.constant 6 : index
    %c0_199 = arith.constant 0 : index
    %c0_200 = arith.constant 0 : index
    %239 = vector.load %arg8[%c6_198, %c0_199, %c0_200] : memref<9x4x512xf32, #tpu.memory_space<vmem>>, vector<1x4x512xf32>
    %240 = vector.shape_cast %239 : vector<1x4x512xf32> to vector<4x512xf32>
    %241 = arith.mulf %238, %240 : vector<4x512xf32>
    %242 = arith.addf %237, %241 : vector<4x512xf32>
    %c496_i32_201 = arith.constant 496 : i32
    %243 = tpu.dynamic_rotate %207 by %c496_i32_201 dim 1 : vector<4x512xf32>, i32 -> vector<4x512xf32>
    %c7_202 = arith.constant 7 : index
    %c0_203 = arith.constant 0 : index
    %c0_204 = arith.constant 0 : index
    %244 = vector.load %arg8[%c7_202, %c0_203, %c0_204] : memref<9x4x512xf32, #tpu.memory_space<vmem>>, vector<1x4x512xf32>
    %245 = vector.shape_cast %244 : vector<1x4x512xf32> to vector<4x512xf32>
    %246 = arith.mulf %243, %245 : vector<4x512xf32>
    %247 = arith.addf %242, %246 : vector<4x512xf32>
    %c495_i32_205 = arith.constant 495 : i32
    %248 = tpu.dynamic_rotate %207 by %c495_i32_205 dim 1 : vector<4x512xf32>, i32 -> vector<4x512xf32>
    %c8_206 = arith.constant 8 : index
    %c0_207 = arith.constant 0 : index
    %c0_208 = arith.constant 0 : index
    %249 = vector.load %arg8[%c8_206, %c0_207, %c0_208] : memref<9x4x512xf32, #tpu.memory_space<vmem>>, vector<1x4x512xf32>
    %250 = vector.shape_cast %249 : vector<1x4x512xf32> to vector<4x512xf32>
    %251 = arith.mulf %248, %250 : vector<4x512xf32>
    %252 = arith.addf %247, %251 : vector<4x512xf32>
    %c0_209 = arith.constant 0 : index
    %c2_210 = arith.constant 2 : index
    %253 = vector.load %arg6[%c0_209, %c2_210] : memref<4x3xf32, #tpu.memory_space<vmem>>, vector<4x1xf32>
    %254 = vector.broadcast %253 : vector<4x1xf32> to vector<4x512xf32>
    %255 = arith.addf %252, %254 : vector<4x512xf32>
    %cst_211 = arith.constant 0.000000e+00 : f32
    %256 = vector.broadcast %cst_211 : f32 to vector<4x512xf32>
    %257 = arith.maximumf %255, %256 : vector<4x512xf32>
    %c0_212 = arith.constant 0 : index
    %c0_213 = arith.constant 0 : index
    %258 = vector.load %arg9[%c0_212, %c0_213] : memref<4x512xf32, #tpu.memory_space<vmem>>, vector<4x512xf32>
    tpu.vector_store %arg9[%c0_212, %c0_213], %257 {strides = array<i32>} : memref<4x512xf32, #tpu.memory_space<vmem>>, vector<4x512xf32>,
    return
  }
  func.func @transform_0(%arg0: i32) -> (i32, i32) {
    %c0_i32 = arith.constant 0 : i32
    %c0_i32_0 = arith.constant 0 : i32
    return %c0_i32, %arg0 : i32, i32
  }
  func.func @transform_1(%arg0: i32) -> (i32, i32) {
    %c0_i32 = arith.constant 0 : i32
    %c0_i32_0 = arith.constant 0 : i32
    return %c0_i32, %arg0 : i32, i32
  }
  func.func @transform_2(%arg0: i32) -> (i32, i32, i32) {
    %c0_i32 = arith.constant 0 : i32
    %c0_i32_0 = arith.constant 0 : i32
    %c0_i32_1 = arith.constant 0 : i32
    %c0_i32_2 = arith.constant 0 : i32
    return %c0_i32, %c0_i32_0, %c0_i32_1 : i32, i32, i32
  }
  func.func @transform_3(%arg0: i32) -> (i32, i32, i32) {
    %c0_i32 = arith.constant 0 : i32
    %c0_i32_0 = arith.constant 0 : i32
    %c0_i32_1 = arith.constant 0 : i32
    %c0_i32_2 = arith.constant 0 : i32
    return %c0_i32, %c0_i32_0, %c0_i32_1 : i32, i32, i32
  }
  func.func @transform_4(%arg0: i32) -> (i32, i32, i32) {
    %c0_i32 = arith.constant 0 : i32
    %c0_i32_0 = arith.constant 0 : i32
    %c0_i32_1 = arith.constant 0 : i32
    %c0_i32_2 = arith.constant 0 : i32
    return %c0_i32, %c0_i32_0, %c0_i32_1 : i32, i32, i32
  }
  func.func @transform_5(%arg0: i32) -> (i32, i32) {
    %c0_i32 = arith.constant 0 : i32
    %c0_i32_0 = arith.constant 0 : i32
    %c0_i32_1 = arith.constant 0 : i32
    return %c0_i32, %c0_i32_0 : i32, i32
  }
  func.func @transform_6(%arg0: i32) -> (i32, i32, i32) {
    %c0_i32 = arith.constant 0 : i32
    %c0_i32_0 = arith.constant 0 : i32
    %c0_i32_1 = arith.constant 0 : i32
    %c0_i32_2 = arith.constant 0 : i32
    return %c0_i32, %c0_i32_0, %c0_i32_1 : i32, i32, i32
  }
  func.func @transform_7(%arg0: i32) -> (i32, i32, i32) {
    %c0_i32 = arith.constant 0 : i32
    %c0_i32_0 = arith.constant 0 : i32
    %c0_i32_1 = arith.constant 0 : i32
    %c0_i32_2 = arith.constant 0 : i32
    return %c0_i32, %c0_i32_0, %c0_i32_1 : i32, i32, i32
  }
  func.func @transform_8(%arg0: i32) -> (i32, i32) {
    %c0_i32 = arith.constant 0 : i32
    %c0_i32_0 = arith.constant 0 : i32
    return %c0_i32, %arg0 : i32, i32
  }
}

</mosaic_0001>

<llo_original>
// kernel: resblock_forward.1
$region0: #{resblock_forward.1}
  #allocation0 [shape = 'u32[]', space=smem, size = 0x4, offset = 0x4, fixed_abs, tag = 'smem constant byte address 0x4 - core index']
  #allocation1 [shape = 'u32[144,128]{1,0:T(1,128)}', space=vmem, size = 0x12000, scoped, tag = 'internal scratch']
  %s0 = inlined_call_operand.vmem [shape: f32[8,512], index: 0, kind: input, shape index: {}]
  %s1 = inlined_call_operand.vmem [shape: f32[4,512], index: 1, kind: input, shape index: {}]
  %s2 = inlined_call_operand.vmem [shape: f32[9,4,8], index: 2, kind: input, shape index: {}]
  %s3 = inlined_call_operand.vmem [shape: f32[9,4,4], index: 3, kind: input, shape index: {}]
  %s4 = inlined_call_operand.vmem [shape: f32[9,4,4], index: 4, kind: input, shape index: {}]
  %s5 = inlined_call_operand.vmem [shape: f32[4,3], index: 5, kind: input, shape index: {}]
  %s6 = inlined_call_operand.vmem [shape: f32[9,1,512], index: 6, kind: input, shape index: {}]
  %s7 = inlined_call_operand.vmem [shape: f32[9,4,512], index: 7, kind: input, shape index: {}]
  %s8 = inlined_call_operand.vmem [shape: f32[4,512], index: 8, kind: output, shape index: {}]
  %s9 = sld [smem:[#allocation0]]
  $region42: #{resblock_forward.1} parent=0
    _
  %s11 = ssub.s32 1, %s9
  %s12 = scalar_select 0, %s11, %s9
  // Predicated region
  $region2: #{resblock_forward.1} parent=0 // pred_check
    _
  $region3: #{resblock_forward.1} parent=0 // pred_check_branch
    %14 = sbr.rel (0) target = $region5
  $region4: #{resblock_forward.1} parent=0 // pred_region
    _
  $region5: #{resblock_forward.1} parent=0 // pred_fallthru
    _
  // Predicated region
  $region6: #{resblock_forward.1} parent=0 // pred_check
    _
  $region7: #{resblock_forward.1} parent=0 // pred_check_branch
    %16 = sbr.rel (0) target = $region9
  $region8: #{resblock_forward.1} parent=0 // pred_region
    _
  $region9: #{resblock_forward.1} parent=0 // pred_fallthru
    _
  // Predicated region
  $region10: #{resblock_forward.1} parent=0 // pred_check
    _
  $region11: #{resblock_forward.1} parent=0 // pred_check_branch
    %18 = sbr.rel (0) target = $region13
  $region12: #{resblock_forward.1} parent=0 // pred_region
    _
  $region13: #{resblock_forward.1} parent=0 // pred_fallthru
    _
  // Predicated region
  $region14: #{resblock_forward.1} parent=0 // pred_check
    _
  $region15: #{resblock_forward.1} parent=0 // pred_check_branch
    %20 = sbr.rel (0) target = $region17
  $region16: #{resblock_forward.1} parent=0 // pred_region
    _
  $region17: #{resblock_forward.1} parent=0 // pred_fallthru
    _
  // Predicated region
  $region18: #{resblock_forward.1} parent=0 // pred_check
    _
  $region19: #{resblock_forward.1} parent=0 // pred_check_branch
    %22 = sbr.rel (0) target = $region21
  $region20: #{resblock_forward.1} parent=0 // pred_region
    _
  $region21: #{resblock_forward.1} parent=0 // pred_fallthru
    _
  // Predicated region
  $region22: #{resblock_forward.1} parent=0 // pred_check
    _
  $region23: #{resblock_forward.1} parent=0 // pred_check_branch
    %24 = sbr.rel (0) target = $region25
  $region24: #{resblock_forward.1} parent=0 // pred_region
    _
  $region25: #{resblock_forward.1} parent=0 // pred_fallthru
    _
  // Predicated region
  $region26: #{resblock_forward.1} parent=0 // pred_check
    _
  $region27: #{resblock_forward.1} parent=0 // pred_check_branch
    %26 = sbr.rel (0) target = $region29
  $region28: #{resblock_forward.1} parent=0 // pred_region
    _
  $region29: #{resblock_forward.1} parent=0 // pred_fallthru
    _
  // Predicated region
  $region30: #{resblock_forward.1} parent=0 // pred_check
    _
  $region31: #{resblock_forward.1} parent=0 // pred_check_branch
    %28 = sbr.rel (0) target = $region33
  $region32: #{resblock_forward.1} parent=0 // pred_region
    _
  $region33: #{resblock_forward.1} parent=0 // pred_fallthru
    _
  %v29 = vld [vmem:[%s0] sm:$0xff]
  %v30 = vld [vmem:[%s0 + $0x8] sm:$0xff]
  %v31 = vld [vmem:[%s0 + $0x10] sm:$0xff]
  %v32 = vld [vmem:[%s0 + $0x18] sm:$0xff]
  %v33 = vld [vmem:[%s1] sm:$0xff]
  %v34 = vld [vmem:[%s1 + $0x8] sm:$0xff]
  %v35 = vld [vmem:[%s2] sm:$0xf]
  %36 = vrot.lane.b32.xlu0 %v29, 17
  %v37 = vpop.permute.xlu0 %36
  %38 = vrot.lane.b32.xlu0 %v30, 17
  %v39 = vpop.permute.xlu0 %38
  %40 = vrot.lane.b32.xlu0 %v31, 17
  %v41 = vpop.permute.xlu0 %40
  %42 = vrot.lane.b32.xlu0 %v32, 17
  %v43 = vpop.permute.xlu0 %42
  %v44 = vlaneseq
  %v45 = vand.u32 %v44, 127
  %vm46 = vcmp.lt.s32.totalorder %v45, 17
  %v47 = vsel %vm46, %v41, %v43
  %v48 = vsel %vm46, %v39, %v41
  %v49 = vsel %vm46, %v37, %v39
  %v50 = vsel %vm46, %v43, %v37
  %vm51 = vcmask 64512
  %v53 = vsel %vm51, %v35, 0
  %55 = vmatprep.subr.mxu0 %v49
  %56 = vmatpush1.msra.mxu0 %v50
  %57 = vmatprep.subr.mxu0 0.0
  %58 = vmatpush1.msra.mxu0 0.0
  %59 = vmatprep.subr.mxu0 0.0
  %60 = vmatpush1.msra.mxu0 0.0
  %61 = vmatprep.subr.mxu0 0.0
  %62 = vmatpush1.msra.mxu0 0.0
  %63 = vmatprep.subr.mxu0 0.0
  %64 = vmatpush1.msra.mxu0 0.0
  %65 = vmatprep.subr.mxu0 0.0
  %66 = vmatpush1.msra.mxu0 0.0
  %67 = vmatprep.subr.mxu0 0.0
  %68 = vmatpush1.msra.mxu0 0.0
  %69 = vmatprep.subr.mxu0 0.0
  %70 = vmatpush1.msra.mxu0 0.0
  %71 = vmatprep.subr.mxu0 0.0
  %72 = vmatpush1.msra.mxu0 0.0
  %73 = vmatprep.subr.mxu0 0.0
  %74 = vmatpush1.msra.mxu0 0.0
  %75 = vmatprep.subr.mxu0 0.0
  %76 = vmatpush1.msra.mxu0 0.0
  %77 = vmatprep.subr.mxu0 0.0
  %78 = vmatpush1.msra.mxu0 0.0
  %79 = vmatprep.subr.mxu0 0.0
  %80 = vmatpush1.msra.mxu0 0.0
  %81 = vmatprep.subr.mxu0 0.0
  %82 = vmatpush1.msra.mxu0 0.0
  %83 = vmatprep.subr.mxu0 0.0
  %84 = vmatpush1.msra.mxu0 0.0
  %85 = vmatprep.subr.mxu0 0.0
  %86 = vmatpush1.msra.mxu0 0.0
  %87 = vmatprep.subr.mxu0 0.0
  %88 = vmatpush1.msra.mxu0 0.0
  %89 = vmatprep.subr.mxu0 0.0
  %90 = vmatpush1.msra.mxu0 0.0
  %91 = vmatprep.subr.mxu0 0.0
  %92 = vmatpush1.msra.mxu0 0.0
  %93 = vmatprep.subr.mxu0 0.0
  %94 = vmatpush1.msra.mxu0 0.0
  %95 = vmatprep.subr.mxu0 0.0
  %96 = vmatpush1.msra.mxu0 0.0
  %97 = vmatprep.subr.mxu0 0.0
  %98 = vmatpush1.msra.mxu0 0.0
  %99 = vmatprep.subr.mxu0 0.0
  %100 = vmatpush1.msra.mxu0 0.0
  %101 = vmatprep.subr.mxu0 0.0
  %102 = vmatpush1.msra.mxu0 0.0
  %103 = vmatprep.subr.mxu0 0.0
  %104 = vmatpush1.msra.mxu0 0.0
  %105 = vmatprep.subr.mxu0 0.0
  %106 = vmatpush1.msra.mxu0 0.0
  %107 = vmatprep.subr.mxu0 0.0
  %108 = vmatpush1.msra.mxu0 0.0
  %109 = vmatprep.subr.mxu0 0.0
  %110 = vmatpush1.msra.mxu0 0.0
  %111 = vmatprep.subr.mxu0 0.0
  %112 = vmatpush1.msra.mxu0 0.0
  %113 = vmatprep.subr.mxu0 0.0
  %114 = vmatpush1.msra.mxu0 0.0
  %115 = vmatprep.subr.mxu0 0.0
  %116 = vmatpush1.msra.mxu0 0.0
  %117 = vmatprep.subr.mxu0 0.0
  %118 = vmatpush1.msra.mxu0 0.0
  %119 = vmatprep.mubr.f32.mxu0 0.0
  %120 = vmatmul.mubr.f32.gmra.mrb[0].mxu0 %v53
  %v121 = vpop.f32.mrb[0].mxu0
  %v122 = vadd.f32 0.0, %v121
  %v123 = vpop.f32.mrb[0].mxu0
  %v124 = vadd.f32 0.0, %v123
  %125 = vdwg.mxu0
  %126 = vmatprep.subr.mxu0 %v47
  %127 = vmatpush1.msra.mxu0 %v48
  %128 = vmatprep.subr.mxu0 0.0
  %129 = vmatpush1.msra.mxu0 0.0
  %130 = vmatprep.subr.mxu0 0.0
  %131 = vmatpush1.msra.mxu0 0.0
  %132 = vmatprep.subr.mxu0 0.0
  %133 = vmatpush1.msra.mxu0 0.0
  %134 = vmatprep.subr.mxu0 0.0
  %135 = vmatpush1.msra.mxu0 0.0
  %136 = vmatprep.subr.mxu0 0.0
  %137 = vmatpush1.msra.mxu0 0.0
  %138 = vmatprep.subr.mxu0 0.0
  %139 = vmatpush1.msra.mxu0 0.0
  %140 = vmatprep.subr.mxu0 0.0
  %141 = vmatpush1.msra.mxu0 0.0
  %142 = vmatprep.subr.mxu0 0.0
  %143 = vmatpush1.msra.mxu0 0.0
  %144 = vmatprep.subr.mxu0 0.0
  %145 = vmatpush1.msra.mxu0 0.0
  %146 = vmatprep.subr.mxu0 0.0
  %147 = vmatpush1.msra.mxu0 0.0
  %148 = vmatprep.subr.mxu0 0.0
  %149 = vmatpush1.msra.mxu0 0.0
  %150 = vmatprep.subr.mxu0 0.0
  %151 = vmatpush1.msra.mxu0 0.0
  %152 = vmatprep.subr.mxu0 0.0
  %153 = vmatpush1.msra.mxu0 0.0
  %154 = vmatprep.subr.mxu0 0.0
  %155 = vmatpush1.msra.mxu0 0.0
  %156 = vmatprep.subr.mxu0 0.0
  %157 = vmatpush1.msra.mxu0 0.0
  %158 = vmatprep.subr.mxu0 0.0
  %159 = vmatpush1.msra.mxu0 0.0
  %160 = vmatprep.subr.mxu0 0.0
  %161 = vmatpush1.msra.mxu0 0.0
  %162 = vmatprep.subr.mxu0 0.0
  %163 = vmatpush1.msra.mxu0 0.0
  %164 = vmatprep.subr.mxu0 0.0
  %165 = vmatpush1.msra.mxu0 0.0
  %166 = vmatprep.subr.mxu0 0.0
  %167 = vmatpush1.msra.mxu0 0.0
  %168 = vmatprep.subr.mxu0 0.0
  %169 = vmatpush1.msra.mxu0 0.0
  %170 = vmatprep.subr.mxu0 0.0
  %171 = vmatpush1.msra.mxu0 0.0
  %172 = vmatprep.subr.mxu0 0.0
  %173 = vmatpush1.msra.mxu0 0.0
  %174 = vmatprep.subr.mxu0 0.0
  %175 = vmatpush1.msra.mxu0 0.0
  %176 = vmatprep.subr.mxu0 0.0
  %177 = vmatpush1.msra.mxu0 0.0
  %178 = vmatprep.subr.mxu0 0.0
  %179 = vmatpush1.msra.mxu0 0.0
  %180 = vmatprep.subr.mxu0 0.0
  %181 = vmatpush1.msra.mxu0 0.0
  %182 = vmatprep.subr.mxu0 0.0
  %183 = vmatpush1.msra.mxu0 0.0
  %184 = vmatprep.subr.mxu0 0.0
  %185 = vmatpush1.msra.mxu0 0.0
  %186 = vmatprep.subr.mxu0 0.0
  %187 = vmatpush1.msra.mxu0 0.0
  %188 = vmatprep.subr.mxu0 0.0
  %189 = vmatpush1.msra.mxu0 0.0
  %190 = vmatprep.mubr.f32.mxu0 0.0
  %191 = vmatmul.mubr.f32.gmra.mrb[0].mxu0 %v53
  %v192 = vpop.f32.mrb[0].mxu0
  %v193 = vadd.f32 0.0, %v192
  %v194 = vpop.f32.mrb[0].mxu0
  %v195 = vadd.f32 0.0, %v194
  %196 = vdwg.mxu0
  %v197 = vld [vmem:[%s6] sm:$0xf]
  %v199 = vlaneseq
  %v200 = vshrl.u32 %v199, 7
  %v201 = vsub.s32 0, %v200
  %v202 = vrot.slane %v197, %v201
  %v203 = vlaneseq
  %v204 = vshrl.u32 %v203, 7
  %v205 = vsub.s32 1, %v204
  %v206 = vrot.slane %v197, %v205
  %v207 = vlaneseq
  %v208 = vshrl.u32 %v207, 7
  %v209 = vsub.s32 2, %v208
  %v210 = vrot.slane %v197, %v209
  %v211 = vlaneseq
  %v212 = vshrl.u32 %v211, 7
  %v213 = vsub.s32 3, %v212
  %v214 = vrot.slane %v197, %v213
  %v219 = vmul.f32 %v122, %v202
  %v220 = vmul.f32 %v124, %v206
  %v221 = vmul.f32 %v193, %v210
  %v222 = vmul.f32 %v195, %v214
  %v223 = vadd.f32 %v219, 0.0
  %v224 = vadd.f32 %v220, 0.0
  %v225 = vadd.f32 %v221, 0.0
  %v226 = vadd.f32 %v222, 0.0
  %s227 = scalar_lea.vmem %s2, 4
  %v228 = vld [vmem:[%s227] sm:$0xf]
  %229 = vrot.lane.b32.xlu0 %v29, 16
  %v230 = vpop.permute.xlu0 %229
  %231 = vrot.lane.b32.xlu0 %v30, 16
  %v232 = vpop.permute.xlu0 %231
  %233 = vrot.lane.b32.xlu0 %v31, 16
  %v234 = vpop.permute.xlu0 %233
  %235 = vrot.lane.b32.xlu0 %v32, 16
  %v236 = vpop.permute.xlu0 %235
  %vm237 = vcmp.lt.s32.totalorder %v45, 16
  %v238 = vsel %vm237, %v234, %v236
  %v239 = vsel %vm237, %v232, %v234
  %v240 = vsel %vm237, %v230, %v232
  %v241 = vsel %vm237, %v236, %v230
  %v243 = vsel %vm51, %v228, 0
  %245 = vmatprep.subr.mxu0 %v240
  %246 = vmatpush1.msra.mxu0 %v241
  %247 = vmatprep.subr.mxu0 0.0
  %248 = vmatpush1.msra.mxu0 0.0
  %249 = vmatprep.subr.mxu0 0.0
  %250 = vmatpush1.msra.mxu0 0.0
  %251 = vmatprep.subr.mxu0 0.0
  %252 = vmatpush1.msra.mxu0 0.0
  %253 = vmatprep.subr.mxu0 0.0
  %254 = vmatpush1.msra.mxu0 0.0
  %255 = vmatprep.subr.mxu0 0.0
  %256 = vmatpush1.msra.mxu0 0.0
  %257 = vmatprep.subr.mxu0 0.0
  %258 = vmatpush1.msra.mxu0 0.0
  %259 = vmatprep.subr.mxu0 0.0
  %260 = vmatpush1.msra.mxu0 0.0
  %261 = vmatprep.subr.mxu0 0.0
  %262 = vmatpush1.msra.mxu0 0.0
  %263 = vmatprep.subr.mxu0 0.0
  %264 = vmatpush1.msra.mxu0 0.0
  %265 = vmatprep.subr.mxu0 0.0
  %266 = vmatpush1.msra.mxu0 0.0
  %267 = vmatprep.subr.mxu0 0.0
  %268 = vmatpush1.msra.mxu0 0.0
  %269 = vmatprep.subr.mxu0 0.0
  %270 = vmatpush1.msra.mxu0 0.0
  %271 = vmatprep.subr.mxu0 0.0
  %272 = vmatpush1.msra.mxu0 0.0
  %273 = vmatprep.subr.mxu0 0.0
  %274 = vmatpush1.msra.mxu0 0.0
  %275 = vmatprep.subr.mxu0 0.0
  %276 = vmatpush1.msra.mxu0 0.0
  %277 = vmatprep.subr.mxu0 0.0
  %278 = vmatpush1.msra.mxu0 0.0
  %279 = vmatprep.subr.mxu0 0.0
  %280 = vmatpush1.msra.mxu0 0.0
  %281 = vmatprep.subr.mxu0 0.0
  %282 = vmatpush1.msra.mxu0 0.0
  %283 = vmatprep.subr.mxu0 0.0
  %284 = vmatpush1.msra.mxu0 0.0
  %285 = vmatprep.subr.mxu0 0.0
  %286 = vmatpush1.msra.mxu0 0.0
  %287 = vmatprep.subr.mxu0 0.0
  %288 = vmatpush1.msra.mxu0 0.0
  %289 = vmatprep.subr.mxu0 0.0
  %290 = vmatpush1.msra.mxu0 0.0
  %291 = vmatprep.subr.mxu0 0.0
  %292 = vmatpush1.msra.mxu0 0.0
  %293 = vmatprep.subr.mxu0 0.0
  %294 = vmatpush1.msra.mxu0 0.0
  %295 = vmatprep.subr.mxu0 0.0
  %296 = vmatpush1.msra.mxu0 0.0
  %297 = vmatprep.subr.mxu0 0.0
  %298 = vmatpush1.msra.mxu0 0.0
  %299 = vmatprep.subr.mxu0 0.0
  %300 = vmatpush1.msra.mxu0 0.0
  %301 = vmatprep.subr.mxu0 0.0
  %302 = vmatpush1.msra.mxu0 0.0
  %303 = vmatprep.subr.mxu0 0.0
  %304 = vmatpush1.msra.mxu0 0.0
  %305 = vmatprep.subr.mxu0 0.0
  %306 = vmatpush1.msra.mxu0 0.0
  %307 = vmatprep.subr.mxu0 0.0
  %308 = vmatpush1.msra.mxu0 0.0
  %309 = vmatprep.mubr.f32.mxu0 0.0
  %310 = vmatmul.mubr.f32.gmra.mrb[0].mxu0 %v243
  %v311 = vpop.f32.mrb[0].mxu0
  %v312 = vadd.f32 0.0, %v311
  %v313 = vpop.f32.mrb[0].mxu0
  %v314 = vadd.f32 0.0, %v313
  %315 = vdwg.mxu0
  %316 = vmatprep.subr.mxu0 %v238
  %317 = vmatpush1.msra.mxu0 %v239
  %318 = vmatprep.subr.mxu0 0.0
  %319 = vmatpush1.msra.mxu0 0.0
  %320 = vmatprep.subr.mxu0 0.0
  %321 = vmatpush1.msra.mxu0 0.0
  %322 = vmatprep.subr.mxu0 0.0
  %323 = vmatpush1.msra.mxu0 0.0
  %324 = vmatprep.subr.mxu0 0.0
  %325 = vmatpush1.msra.mxu0 0.0
  %326 = vmatprep.subr.mxu0 0.0
  %327 = vmatpush1.msra.mxu0 0.0
  %328 = vmatprep.subr.mxu0 0.0
  %329 = vmatpush1.msra.mxu0 0.0
  %330 = vmatprep.subr.mxu0 0.0
  %331 = vmatpush1.msra.mxu0 0.0
  %332 = vmatprep.subr.mxu0 0.0
  %333 = vmatpush1.msra.mxu0 0.0
  %334 = vmatprep.subr.mxu0 0.0
  %335 = vmatpush1.msra.mxu0 0.0
  %336 = vmatprep.subr.mxu0 0.0
  %337 = vmatpush1.msra.mxu0 0.0
  %338 = vmatprep.subr.mxu0 0.0
  %339 = vmatpush1.msra.mxu0 0.0
  %340 = vmatprep.subr.mxu0 0.0
  %341 = vmatpush1.msra.mxu0 0.0
  %342 = vmatprep.subr.mxu0 0.0
  %343 = vmatpush1.msra.mxu0 0.0
  %344 = vmatprep.subr.mxu0 0.0
  %345 = vmatpush1.msra.mxu0 0.0
  %346 = vmatprep.subr.mxu0 0.0
  %347 = vmatpush1.msra.mxu0 0.0
  %348 = vmatprep.subr.mxu0 0.0
  %349 = vmatpush1.msra.mxu0 0.0
  %350 = vmatprep.subr.mxu0 0.0
  %351 = vmatpush1.msra.mxu0 0.0
  %352 = vmatprep.subr.mxu0 0.0
  %353 = vmatpush1.msra.mxu0 0.0
  %354 = vmatprep.subr.mxu0 0.0
  %355 = vmatpush1.msra.mxu0 0.0
  %356 = vmatprep.subr.mxu0 0.0
  %357 = vmatpush1.msra.mxu0 0.0
  %358 = vmatprep.subr.mxu0 0.0
  %359 = vmatpush1.msra.mxu0 0.0
  %360 = vmatprep.subr.mxu0 0.0
  %361 = vmatpush1.msra.mxu0 0.0
  %362 = vmatprep.subr.mxu0 0.0
  %363 = vmatpush1.msra.mxu0 0.0
  %364 = vmatprep.subr.mxu0 0.0
  %365 = vmatpush1.msra.mxu0 0.0
  %366 = vmatprep.subr.mxu0 0.0
  %367 = vmatpush1.msra.mxu0 0.0
  %368 = vmatprep.subr.mxu0 0.0
  %369 = vmatpush1.msra.mxu0 0.0
  %370 = vmatprep.subr.mxu0 0.0
  %371 = vmatpush1.msra.mxu0 0.0
  %372 = vmatprep.subr.mxu0 0.0
  %373 = vmatpush1.msra.mxu0 0.0
  %374 = vmatprep.subr.mxu0 0.0
  %375 = vmatpush1.msra.mxu0 0.0
  %376 = vmatprep.subr.mxu0 0.0
  %377 = vmatpush1.msra.mxu0 0.0
  %378 = vmatprep.subr.mxu0 0.0
  %379 = vmatpush1.msra.mxu0 0.0
  %380 = vmatprep.mubr.f32.mxu0 0.0
  %381 = vmatmul.mubr.f32.gmra.mrb[0].mxu0 %v243
  %v382 = vpop.f32.mrb[0].mxu0
  %v383 = vadd.f32 0.0, %v382
  %v384 = vpop.f32.mrb[0].mxu0
  %v385 = vadd.f32 0.0, %v384
  %386 = vdwg.mxu0
  %s387 = scalar_lea.vmem %s6, 4
  %v388 = vld [vmem:[%s387] sm:$0xf]
  %v390 = vlaneseq
  %v391 = vshrl.u32 %v390, 7
  %v392 = vsub.s32 0, %v391
  %v393 = vrot.slane %v388, %v392
  %v394 = vlaneseq
  %v395 = vshrl.u32 %v394, 7
  %v396 = vsub.s32 1, %v395
  %v397 = vrot.slane %v388, %v396
  %v398 = vlaneseq
  %v399 = vshrl.u32 %v398, 7
  %v400 = vsub.s32 2, %v399
  %v401 = vrot.slane %v388, %v400
  %v402 = vlaneseq
  %v403 = vshrl.u32 %v402, 7
  %v404 = vsub.s32 3, %v403
  %v405 = vrot.slane %v388, %v404
  %v410 = vmul.f32 %v312, %v393
  %v411 = vmul.f32 %v314, %v397
  %v412 = vmul.f32 %v383, %v401
  %v413 = vmul.f32 %v385, %v405
  %v414 = vadd.f32 %v223, %v410
  %v415 = vadd.f32 %v224, %v411
  %v416 = vadd.f32 %v225, %v412
  %v417 = vadd.f32 %v226, %v413
  %s418 = scalar_lea.vmem %s2, 8
  %v419 = vld [vmem:[%s418] sm:$0xf]
  %420 = vrot.lane.b32.xlu0 %v29, 15
  %v421 = vpop.permute.xlu0 %420
  %422 = vrot.lane.b32.xlu0 %v30, 15
  %v423 = vpop.permute.xlu0 %422
  %424 = vrot.lane.b32.xlu0 %v31, 15
  %v425 = vpop.permute.xlu0 %424
  %426 = vrot.lane.b32.xlu0 %v32, 15
  %v427 = vpop.permute.xlu0 %426
  %vm428 = vcmp.lt.s32.totalorder %v45, 15
  %v429 = vsel %vm428, %v425, %v427
  %v430 = vsel %vm428, %v423, %v425
  %v431 = vsel %vm428, %v421, %v423
  %v432 = vsel %vm428, %v427, %v421
  %v434 = vsel %vm51, %v419, 0
  %436 = vmatprep.subr.mxu0 %v431
  %437 = vmatpush1.msra.mxu0 %v432
  %438 = vmatprep.subr.mxu0 0.0
  %439 = vmatpush1.msra.mxu0 0.0
  %440 = vmatprep.subr.mxu0 0.0
  %441 = vmatpush1.msra.mxu0 0.0
  %442 = vmatprep.subr.mxu0 0.0
  %443 = vmatpush1.msra.mxu0 0.0
  %444 = vmatprep.subr.mxu0 0.0
  %445 = vmatpush1.msra.mxu0 0.0
  %446 = vmatprep.subr.mxu0 0.0
  %447 = vmatpush1.msra.mxu0 0.0
  %448 = vmatprep.subr.mxu0 0.0
  %449 = vmatpush1.msra.mxu0 0.0
  %450 = vmatprep.subr.mxu0 0.0
  %451 = vmatpush1.msra.mxu0 0.0
  %452 = vmatprep.subr.mxu0 0.0
  %453 = vmatpush1.msra.mxu0 0.0
  %454 = vmatprep.subr.mxu0 0.0
  %455 = vmatpush1.msra.mxu0 0.0
  %456 = vmatprep.subr.mxu0 0.0
  %457 = vmatpush1.msra.mxu0 0.0
  %458 = vmatprep.subr.mxu0 0.0
  %459 = vmatpush1.msra.mxu0 0.0
  %460 = vmatprep.subr.mxu0 0.0
  %461 = vmatpush1.msra.mxu0 0.0
  %462 = vmatprep.subr.mxu0 0.0
  %463 = vmatpush1.msra.mxu0 0.0
  %464 = vmatprep.subr.mxu0 0.0
  %465 = vmatpush1.msra.mxu0 0.0
  %466 = vmatprep.subr.mxu0 0.0
  %467 = vmatpush1.msra.mxu0 0.0
  %468 = vmatprep.subr.mxu0 0.0
  %469 = vmatpush1.msra.mxu0 0.0
  %470 = vmatprep.subr.mxu0 0.0
  %471 = vmatpush1.msra.mxu0 0.0
  %472 = vmatprep.subr.mxu0 0.0
  %473 = vmatpush1.msra.mxu0 0.0
  %474 = vmatprep.subr.mxu0 0.0
  %475 = vmatpush1.msra.mxu0 0.0
  %476 = vmatprep.subr.mxu0 0.0
  %477 = vmatpush1.msra.mxu0 0.0
  %478 = vmatprep.subr.mxu0 0.0
  %479 = vmatpush1.msra.mxu0 0.0
  %480 = vmatprep.subr.mxu0 0.0
  %481 = vmatpush1.msra.mxu0 0.0
  %482 = vmatprep.subr.mxu0 0.0
  %483 = vmatpush1.msra.mxu0 0.0
  %484 = vmatprep.subr.mxu0 0.0
  %485 = vmatpush1.msra.mxu0 0.0
  %486 = vmatprep.subr.mxu0 0.0
  %487 = vmatpush1.msra.mxu0 0.0
  %488 = vmatprep.subr.mxu0 0.0
  %489 = vmatpush1.msra.mxu0 0.0
  %490 = vmatprep.subr.mxu0 0.0
  %491 = vmatpush1.msra.mxu0 0.0
  %492 = vmatprep.subr.mxu0 0.0
  %493 = vmatpush1.msra.mxu0 0.0
  %494 = vmatprep.subr.mxu0 0.0
  %495 = vmatpush1.msra.mxu0 0.0
  %496 = vmatprep.subr.mxu0 0.0
  %497 = vmatpush1.msra.mxu0 0.0
  %498 = vmatprep.subr.mxu0 0.0
  %499 = vmatpush1.msra.mxu0 0.0
  %500 = vmatprep.mubr.f32.mxu0 0.0
  %501 = vmatmul.mubr.f32.gmra.mrb[0].mxu0 %v434
  %v502 = vpop.f32.mrb[0].mxu0
  %v503 = vadd.f32 0.0, %v502
  %v504 = vpop.f32.mrb[0].mxu0
  %v505 = vadd.f32 0.0, %v504
  %506 = vdwg.mxu0
  %507 = vmatprep.subr.mxu0 %v429
  %508 = vmatpush1.msra.mxu0 %v430
  %509 = vmatprep.subr.mxu0 0.0
  %510 = vmatpush1.msra.mxu0 0.0
  %511 = vmatprep.subr.mxu0 0.0
  %512 = vmatpush1.msra.mxu0 0.0
  %513 = vmatprep.subr.mxu0 0.0
  %514 = vmatpush1.msra.mxu0 0.0
  %515 = vmatprep.subr.mxu0 0.0
  %516 = vmatpush1.msra.mxu0 0.0
  %517 = vmatprep.subr.mxu0 0.0
  %518 = vmatpush1.msra.mxu0 0.0
  %519 = vmatprep.subr.mxu0 0.0
  %520 = vmatpush1.msra.mxu0 0.0
  %521 = vmatprep.subr.mxu0 0.0
  %522 = vmatpush1.msra.mxu0 0.0
  %523 = vmatprep.subr.mxu0 0.0
  %524 = vmatpush1.msra.mxu0 0.0
  %525 = vmatprep.subr.mxu0 0.0
  %526 = vmatpush1.msra.mxu0 0.0
  %527 = vmatprep.subr.mxu0 0.0
  %528 = vmatpush1.msra.mxu0 0.0
  %529 = vmatprep.subr.mxu0 0.0
  %530 = vmatpush1.msra.mxu0 0.0
  %531 = vmatprep.subr.mxu0 0.0
  %532 = vmatpush1.msra.mxu0 0.0
  %533 = vmatprep.subr.mxu0 0.0
  %534 = vmatpush1.msra.mxu0 0.0
  %535 = vmatprep.subr.mxu0 0.0
  %536 = vmatpush1.msra.mxu0 0.0
  %537 = vmatprep.subr.mxu0 0.0
  %538 = vmatpush1.msra.mxu0 0.0
  %539 = vmatprep.subr.mxu0 0.0
  %540 = vmatpush1.msra.mxu0 0.0
  %541 = vmatprep.subr.mxu0 0.0
  %542 = vmatpush1.msra.mxu0 0.0
  %543 = vmatprep.subr.mxu0 0.0
  %544 = vmatpush1.msra.mxu0 0.0
  %545 = vmatprep.subr.mxu0 0.0
  %546 = vmatpush1.msra.mxu0 0.0
  %547 = vmatprep.subr.mxu0 0.0
  %548 = vmatpush1.msra.mxu0 0.0
  %549 = vmatprep.subr.mxu0 0.0
  %550 = vmatpush1.msra.mxu0 0.0
  %551 = vmatprep.subr.mxu0 0.0
  %552 = vmatpush1.msra.mxu0 0.0
  %553 = vmatprep.subr.mxu0 0.0
  %554 = vmatpush1.msra.mxu0 0.0
  %555 = vmatprep.subr.mxu0 0.0
  %556 = vmatpush1.msra.mxu0 0.0
  %557 = vmatprep.subr.mxu0 0.0
  %558 = vmatpush1.msra.mxu0 0.0
  %559 = vmatprep.subr.mxu0 0.0
  %560 = vmatpush1.msra.mxu0 0.0
  %561 = vmatprep.subr.mxu0 0.0
  %562 = vmatpush1.msra.mxu0 0.0
  %563 = vmatprep.subr.mxu0 0.0
  %564 = vmatpush1.msra.mxu0 0.0
  %565 = vmatprep.subr.mxu0 0.0
  %566 = vmatpush1.msra.mxu0 0.0
  %567 = vmatprep.subr.mxu0 0.0
  %568 = vmatpush1.msra.mxu0 0.0
  %569 = vmatprep.subr.mxu0 0.0
  %570 = vmatpush1.msra.mxu0 0.0
  %571 = vmatprep.mubr.f32.mxu0 0.0
  %572 = vmatmul.mubr.f32.gmra.mrb[0].mxu0 %v434
  %v573 = vpop.f32.mrb[0].mxu0
  %v574 = vadd.f32 0.0, %v573
  %v575 = vpop.f32.mrb[0].mxu0
  %v576 = vadd.f32 0.0, %v575
  %577 = vdwg.mxu0
  %s578 = scalar_lea.vmem %s6, 8
  %v579 = vld [vmem:[%s578] sm:$0xf]
  %v581 = vlaneseq
  %v582 = vshrl.u32 %v581, 7
  %v583 = vsub.s32 0, %v582
  %v584 = vrot.slane %v579, %v583
  %v585 = vlaneseq
  %v586 = vshrl.u32 %v585, 7
  %v587 = vsub.s32 1, %v586
  %v588 = vrot.slane %v579, %v587
  %v589 = vlaneseq
  %v590 = vshrl.u32 %v589, 7
  %v591 = vsub.s32 2, %v590
  %v592 = vrot.slane %v579, %v591
  %v593 = vlaneseq
  %v594 = vshrl.u32 %v593, 7
  %v595 = vsub.s32 3, %v594
  %v596 = vrot.slane %v579, %v595
  %v601 = vmul.f32 %v503, %v584
  %v602 = vmul.f32 %v505, %v588
  %v603 = vmul.f32 %v574, %v592
  %v604 = vmul.f32 %v576, %v596
  %v605 = vadd.f32 %v414, %v601
  %v606 = vadd.f32 %v415, %v602
  %v607 = vadd.f32 %v416, %v603
  %v608 = vadd.f32 %v417, %v604
  %s609 = scalar_lea.vmem %s2, 12
  %v610 = vld [vmem:[%s609] sm:$0xf]
  %611 = vrot.lane.b32.xlu0 %v29, 1
  %v612 = vpop.permute.xlu0 %611
  %613 = vrot.lane.b32.xlu0 %v30, 1
  %v614 = vpop.permute.xlu0 %613
  %615 = vrot.lane.b32.xlu0 %v31, 1
  %v616 = vpop.permute.xlu0 %615
  %617 = vrot.lane.b32.xlu0 %v32, 1
  %v618 = vpop.permute.xlu0 %617
  %vm619 = vcmp.lt.s32.totalorder %v45, 1
  %v620 = vsel %vm619, %v616, %v618
  %v621 = vsel %vm619, %v614, %v616
  %v622 = vsel %vm619, %v612, %v614
  %v623 = vsel %vm619, %v618, %v612
  %v625 = vsel %vm51, %v610, 0
  %627 = vmatprep.subr.mxu0 %v622
  %628 = vmatpush1.msra.mxu0 %v623
  %629 = vmatprep.subr.mxu0 0.0
  %630 = vmatpush1.msra.mxu0 0.0
  %631 = vmatprep.subr.mxu0 0.0
  %632 = vmatpush1.msra.mxu0 0.0
  %633 = vmatprep.subr.mxu0 0.0
  %634 = vmatpush1.msra.mxu0 0.0
  %635 = vmatprep.subr.mxu0 0.0
  %636 = vmatpush1.msra.mxu0 0.0
  %637 = vmatprep.subr.mxu0 0.0
  %638 = vmatpush1.msra.mxu0 0.0
  %639 = vmatprep.subr.mxu0 0.0
  %640 = vmatpush1.msra.mxu0 0.0
  %641 = vmatprep.subr.mxu0 0.0
  %642 = vmatpush1.msra.mxu0 0.0
  %643 = vmatprep.subr.mxu0 0.0
  %644 = vmatpush1.msra.mxu0 0.0
  %645 = vmatprep.subr.mxu0 0.0
  %646 = vmatpush1.msra.mxu0 0.0
  %647 = vmatprep.subr.mxu0 0.0
  %648 = vmatpush1.msra.mxu0 0.0
  %649 = vmatprep.subr.mxu0 0.0
  %650 = vmatpush1.msra.mxu0 0.0
  %651 = vmatprep.subr.mxu0 0.0
  %652 = vmatpush1.msra.mxu0 0.0
  %653 = vmatprep.subr.mxu0 0.0
  %654 = vmatpush1.msra.mxu0 0.0
  %655 = vmatprep.subr.mxu0 0.0
  %656 = vmatpush1.msra.mxu0 0.0
  %657 = vmatprep.subr.mxu0 0.0
  %658 = vmatpush1.msra.mxu0 0.0
  %659 = vmatprep.subr.mxu0 0.0
  %660 = vmatpush1.msra.mxu0 0.0
  %661 = vmatprep.subr.mxu0 0.0
  %662 = vmatpush1.msra.mxu0 0.0
  %663 = vmatprep.subr.mxu0 0.0
  %664 = vmatpush1.msra.mxu0 0.0
  %665 = vmatprep.subr.mxu0 0.0
  %666 = vmatpush1.msra.mxu0 0.0
  %667 = vmatprep.subr.mxu0 0.0
  %668 = vmatpush1.msra.mxu0 0.0
  %669 = vmatprep.subr.mxu0 0.0
  %670 = vmatpush1.msra.mxu0 0.0
  %671 = vmatprep.subr.mxu0 0.0
  %672 = vmatpush1.msra.mxu0 0.0
  %673 = vmatprep.subr.mxu0 0.0
  %674 = vmatpush1.msra.mxu0 0.0
  %675 = vmatprep.subr.mxu0 0.0
  %676 = vmatpush1.msra.mxu0 0.0
  %677 = vmatprep.subr.mxu0 0.0
  %678 = vmatpush1.msra.mxu0 0.0
  %679 = vmatprep.subr.mxu0 0.0
  %680 = vmatpush1.msra.mxu0 0.0
  %681 = vmatprep.subr.mxu0 0.0
  %682 = vmatpush1.msra.mxu0 0.0
  %683 = vmatprep.subr.mxu0 0.0
  %684 = vmatpush1.msra.mxu0 0.0
  %685 = vmatprep.subr.mxu0 0.0
  %686 = vmatpush1.msra.mxu0 0.0
  %687 = vmatprep.subr.mxu0 0.0
  %688 = vmatpush1.msra.mxu0 0.0
  %689 = vmatprep.subr.mxu0 0.0
  %690 = vmatpush1.msra.mxu0 0.0
  %691 = vmatprep.mubr.f32.mxu0 0.0
  %692 = vmatmul.mubr.f32.gmra.mrb[0].mxu0 %v625
  %v693 = vpop.f32.mrb[0].mxu0
  %v694 = vadd.f32 0.0, %v693
  %v695 = vpop.f32.mrb[0].mxu0
  %v696 = vadd.f32 0.0, %v695
  %697 = vdwg.mxu0
  %698 = vmatprep.subr.mxu0 %v620
  %699 = vmatpush1.msra.mxu0 %v621
  %700 = vmatprep.subr.mxu0 0.0
  %701 = vmatpush1.msra.mxu0 0.0
  %702 = vmatprep.subr.mxu0 0.0
  %703 = vmatpush1.msra.mxu0 0.0
  %704 = vmatprep.subr.mxu0 0.0
  %705 = vmatpush1.msra.mxu0 0.0
  %706 = vmatprep.subr.mxu0 0.0
  %707 = vmatpush1.msra.mxu0 0.0
  %708 = vmatprep.subr.mxu0 0.0
  %709 = vmatpush1.msra.mxu0 0.0
  %710 = vmatprep.subr.mxu0 0.0
  %711 = vmatpush1.msra.mxu0 0.0
  %712 = vmatprep.subr.mxu0 0.0
  %713 = vmatpush1.msra.mxu0 0.0
  %714 = vmatprep.subr.mxu0 0.0
  %715 = vmatpush1.msra.mxu0 0.0
  %716 = vmatprep.subr.mxu0 0.0
  %717 = vmatpush1.msra.mxu0 0.0
  %718 = vmatprep.subr.mxu0 0.0
  %719 = vmatpush1.msra.mxu0 0.0
  %720 = vmatprep.subr.mxu0 0.0
  %721 = vmatpush1.msra.mxu0 0.0
  %722 = vmatprep.subr.mxu0 0.0
  %723 = vmatpush1.msra.mxu0 0.0
  %724 = vmatprep.subr.mxu0 0.0
  %725 = vmatpush1.msra.mxu0 0.0
  %726 = vmatprep.subr.mxu0 0.0
  %727 = vmatpush1.msra.mxu0 0.0
  %728 = vmatprep.subr.mxu0 0.0
  %729 = vmatpush1.msra.mxu0 0.0
  %730 = vmatprep.subr.mxu0 0.0
  %731 = vmatpush1.msra.mxu0 0.0
  %732 = vmatprep.subr.mxu0 0.0
  %733 = vmatpush1.msra.mxu0 0.0
  %734 = vmatprep.subr.mxu0 0.0
  %735 = vmatpush1.msra.mxu0 0.0
  %736 = vmatprep.subr.mxu0 0.0
  %737 = vmatpush1.msra.mxu0 0.0
  %738 = vmatprep.subr.mxu0 0.0
  %739 = vmatpush1.msra.mxu0 0.0
  %740 = vmatprep.subr.mxu0 0.0
  %741 = vmatpush1.msra.mxu0 0.0
  %742 = vmatprep.subr.mxu0 0.0
  %743 = vmatpush1.msra.mxu0 0.0
  %744 = vmatprep.subr.mxu0 0.0
  %745 = vmatpush1.msra.mxu0 0.0
  %746 = vmatprep.subr.mxu0 0.0
  %747 = vmatpush1.msra.mxu0 0.0
  %748 = vmatprep.subr.mxu0 0.0
  %749 = vmatpush1.msra.mxu0 0.0
  %750 = vmatprep.subr.mxu0 0.0
  %751 = vmatpush1.msra.mxu0 0.0
  %752 = vmatprep.subr.mxu0 0.0
  %753 = vmatpush1.msra.mxu0 0.0
  %754 = vmatprep.subr.mxu0 0.0
  %755 = vmatpush1.msra.mxu0 0.0
  %756 = vmatprep.subr.mxu0 0.0
  %757 = vmatpush1.msra.mxu0 0.0
  %758 = vmatprep.subr.mxu0 0.0
  %759 = vmatpush1.msra.mxu0 0.0
  %760 = vmatprep.subr.mxu0 0.0
  %761 = vmatpush1.msra.mxu0 0.0
  %762 = vmatprep.mubr.f32.mxu0 0.0
  %763 = vmatmul.mubr.f32.gmra.mrb[0].mxu0 %v625
  %v764 = vpop.f32.mrb[0].mxu0
  %v765 = vadd.f32 0.0, %v764
  %v766 = vpop.f32.mrb[0].mxu0
  %v767 = vadd.f32 0.0, %v766
  %768 = vdwg.mxu0
  %s769 = scalar_lea.vmem %s6, 12
  %v770 = vld [vmem:[%s769] sm:$0xf]
  %v772 = vlaneseq
  %v773 = vshrl.u32 %v772, 7
  %v774 = vsub.s32 0, %v773
  %v775 = vrot.slane %v770, %v774
  %v776 = vlaneseq
  %v777 = vshrl.u32 %v776, 7
  %v778 = vsub.s32 1, %v777
  %v779 = vrot.slane %v770, %v778
  %v780 = vlaneseq
  %v781 = vshrl.u32 %v780, 7
  %v782 = vsub.s32 2, %v781
  %v783 = vrot.slane %v770, %v782
  %v784 = vlaneseq
  %v785 = vshrl.u32 %v784, 7
  %v786 = vsub.s32 3, %v785
  %v787 = vrot.slane %v770, %v786
  %v792 = vmul.f32 %v694, %v775
  %v793 = vmul.f32 %v696, %v779
  %v794 = vmul.f32 %v765, %v783
  %v795 = vmul.f32 %v767, %v787
  %v796 = vadd.f32 %v605, %v792
  %v797 = vadd.f32 %v606, %v793
  %v798 = vadd.f32 %v607, %v794
  %v799 = vadd.f32 %v608, %v795
  %s800 = scalar_lea.vmem %s2, 16
  %v801 = vld [vmem:[%s800] sm:$0xf]
  %v803 = vsel %vm51, %v801, 0
  %805 = vmatprep.subr.mxu0 %v30
  %806 = vmatpush1.msra.mxu0 %v29
  %807 = vmatprep.subr.mxu0 0.0
  %808 = vmatpush1.msra.mxu0 0.0
  %809 = vmatprep.subr.mxu0 0.0
  %810 = vmatpush1.msra.mxu0 0.0
  %811 = vmatprep.subr.mxu0 0.0
  %812 = vmatpush1.msra.mxu0 0.0
  %813 = vmatprep.subr.mxu0 0.0
  %814 = vmatpush1.msra.mxu0 0.0
  %815 = vmatprep.subr.mxu0 0.0
  %816 = vmatpush1.msra.mxu0 0.0
  %817 = vmatprep.subr.mxu0 0.0
  %818 = vmatpush1.msra.mxu0 0.0
  %819 = vmatprep.subr.mxu0 0.0
  %820 = vmatpush1.msra.mxu0 0.0
  %821 = vmatprep.subr.mxu0 0.0
  %822 = vmatpush1.msra.mxu0 0.0
  %823 = vmatprep.subr.mxu0 0.0
  %824 = vmatpush1.msra.mxu0 0.0
  %825 = vmatprep.subr.mxu0 0.0
  %826 = vmatpush1.msra.mxu0 0.0
  %827 = vmatprep.subr.mxu0 0.0
  %828 = vmatpush1.msra.mxu0 0.0
  %829 = vmatprep.subr.mxu0 0.0
  %830 = vmatpush1.msra.mxu0 0.0
  %831 = vmatprep.subr.mxu0 0.0
  %832 = vmatpush1.msra.mxu0 0.0
  %833 = vmatprep.subr.mxu0 0.0
  %834 = vmatpush1.msra.mxu0 0.0
  %835 = vmatprep.subr.mxu0 0.0
  %836 = vmatpush1.msra.mxu0 0.0
  %837 = vmatprep.subr.mxu0 0.0
  %838 = vmatpush1.msra.mxu0 0.0
  %839 = vmatprep.subr.mxu0 0.0
  %840 = vmatpush1.msra.mxu0 0.0
  %841 = vmatprep.subr.mxu0 0.0
  %842 = vmatpush1.msra.mxu0 0.0
  %843 = vmatprep.subr.mxu0 0.0
  %844 = vmatpush1.msra.mxu0 0.0
  %845 = vmatprep.subr.mxu0 0.0
  %846 = vmatpush1.msra.mxu0 0.0
  %847 = vmatprep.subr.mxu0 0.0
  %848 = vmatpush1.msra.mxu0 0.0
  %849 = vmatprep.subr.mxu0 0.0
  %850 = vmatpush1.msra.mxu0 0.0
  %851 = vmatprep.subr.mxu0 0.0
  %852 = vmatpush1.msra.mxu0 0.0
  %853 = vmatprep.subr.mxu0 0.0
  %854 = vmatpush1.msra.mxu0 0.0
  %855 = vmatprep.subr.mxu0 0.0
  %856 = vmatpush1.msra.mxu0 0.0
  %857 = vmatprep.subr.mxu0 0.0
  %858 = vmatpush1.msra.mxu0 0.0
  %859 = vmatprep.subr.mxu0 0.0
  %860 = vmatpush1.msra.mxu0 0.0
  %861 = vmatprep.subr.mxu0 0.0
  %862 = vmatpush1.msra.mxu0 0.0
  %863 = vmatprep.subr.mxu0 0.0
  %864 = vmatpush1.msra.mxu0 0.0
  %865 = vmatprep.subr.mxu0 0.0
  %866 = vmatpush1.msra.mxu0 0.0
  %867 = vmatprep.subr.mxu0 0.0
  %868 = vmatpush1.msra.mxu0 0.0
  %869 = vmatprep.mubr.f32.mxu0 0.0
  %870 = vmatmul.mubr.f32.gmra.mrb[0].mxu0 %v803
  %v871 = vpop.f32.mrb[0].mxu0
  %v872 = vadd.f32 0.0, %v871
  %v873 = vpop.f32.mrb[0].mxu0
  %v874 = vadd.f32 0.0, %v873
  %875 = vdwg.mxu0
  %876 = vmatprep.subr.mxu0 %v32
  %877 = vmatpush1.msra.mxu0 %v31
  %878 = vmatprep.subr.mxu0 0.0
  %879 = vmatpush1.msra.mxu0 0.0
  %880 = vmatprep.subr.mxu0 0.0
  %881 = vmatpush1.msra.mxu0 0.0
  %882 = vmatprep.subr.mxu0 0.0
  %883 = vmatpush1.msra.mxu0 0.0
  %884 = vmatprep.subr.mxu0 0.0
  %885 = vmatpush1.msra.mxu0 0.0
  %886 = vmatprep.subr.mxu0 0.0
  %887 = vmatpush1.msra.mxu0 0.0
  %888 = vmatprep.subr.mxu0 0.0
  %889 = vmatpush1.msra.mxu0 0.0
  %890 = vmatprep.subr.mxu0 0.0
  %891 = vmatpush1.msra.mxu0 0.0
  %892 = vmatprep.subr.mxu0 0.0
  %893 = vmatpush1.msra.mxu0 0.0
  %894 = vmatprep.subr.mxu0 0.0
  %895 = vmatpush1.msra.mxu0 0.0
  %896 = vmatprep.subr.mxu0 0.0
  %897 = vmatpush1.msra.mxu0 0.0
  %898 = vmatprep.subr.mxu0 0.0
  %899 = vmatpush1.msra.mxu0 0.0
  %900 = vmatprep.subr.mxu0 0.0
  %901 = vmatpush1.msra.mxu0 0.0
  %902 = vmatprep.subr.mxu0 0.0
  %903 = vmatpush1.msra.mxu0 0.0
  %904 = vmatprep.subr.mxu0 0.0
  %905 = vmatpush1.msra.mxu0 0.0
  %906 = vmatprep.subr.mxu0 0.0
  %907 = vmatpush1.msra.mxu0 0.0
  %908 = vmatprep.subr.mxu0 0.0
  %909 = vmatpush1.msra.mxu0 0.0
  %910 = vmatprep.subr.mxu0 0.0
  %911 = vmatpush1.msra.mxu0 0.0
  %912 = vmatprep.subr.mxu0 0.0
  %913 = vmatpush1.msra.mxu0 0.0
  %914 = vmatprep.subr.mxu0 0.0
  %915 = vmatpush1.msra.mxu0 0.0
  %916 = vmatprep.subr.mxu0 0.0
  %917 = vmatpush1.msra.mxu0 0.0
  %918 = vmatprep.subr.mxu0 0.0
  %919 = vmatpush1.msra.mxu0 0.0
  %920 = vmatprep.subr.mxu0 0.0
  %921 = vmatpush1.msra.mxu0 0.0
  %922 = vmatprep.subr.mxu0 0.0
  %923 = vmatpush1.msra.mxu0 0.0
  %924 = vmatprep.subr.mxu0 0.0
  %925 = vmatpush1.msra.mxu0 0.0
  %926 = vmatprep.subr.mxu0 0.0
  %927 = vmatpush1.msra.mxu0 0.0
  %928 = vmatprep.subr.mxu0 0.0
  %929 = vmatpush1.msra.mxu0 0.0
  %930 = vmatprep.subr.mxu0 0.0
  %931 = vmatpush1.msra.mxu0 0.0
  %932 = vmatprep.subr.mxu0 0.0
  %933 = vmatpush1.msra.mxu0 0.0
  %934 = vmatprep.subr.mxu0 0.0
  %935 = vmatpush1.msra.mxu0 0.0
  %936 = vmatprep.subr.mxu0 0.0
  %937 = vmatpush1.msra.mxu0 0.0
  %938 = vmatprep.subr.mxu0 0.0
  %939 = vmatpush1.msra.mxu0 0.0
  %940 = vmatprep.mubr.f32.mxu0 0.0
  %941 = vmatmul.mubr.f32.gmra.mrb[0].mxu0 %v803
  %v942 = vpop.f32.mrb[0].mxu0
  %v943 = vadd.f32 0.0, %v942
  %v944 = vpop.f32.mrb[0].mxu0
  %v945 = vadd.f32 0.0, %v944
  %946 = vdwg.mxu0
  %v947 = vadd.f32 %v796, %v872
  %v948 = vadd.f32 %v797, %v874
  %v949 = vadd.f32 %v798, %v943
  %v950 = vadd.f32 %v799, %v945
  %s951 = scalar_lea.vmem %s2, 20
  %v952 = vld [vmem:[%s951] sm:$0xf]
  %953 = vrot.lane.b32.xlu0 %v29, 127
  %v954 = vpop.permute.xlu0 %953
  %955 = vrot.lane.b32.xlu0 %v30, 127
  %v956 = vpop.permute.xlu0 %955
  %957 = vrot.lane.b32.xlu0 %v31, 127
  %v958 = vpop.permute.xlu0 %957
  %959 = vrot.lane.b32.xlu0 %v32, 127
  %v960 = vpop.permute.xlu0 %959
  %vm961 = vcmp.lt.s32.totalorder %v45, 127
  %v962 = vsel %vm961, %v958, %v960
  %v963 = vsel %vm961, %v956, %v958
  %v964 = vsel %vm961, %v954, %v956
  %v965 = vsel %vm961, %v960, %v954
  %v967 = vsel %vm51, %v952, 0
  %969 = vmatprep.subr.mxu0 %v963
  %970 = vmatpush1.msra.mxu0 %v964
  %971 = vmatprep.subr.mxu0 0.0
  %972 = vmatpush1.msra.mxu0 0.0
  %973 = vmatprep.subr.mxu0 0.0
  %974 = vmatpush1.msra.mxu0 0.0
  %975 = vmatprep.subr.mxu0 0.0
  %976 = vmatpush1.msra.mxu0 0.0
  %977 = vmatprep.subr.mxu0 0.0
  %978 = vmatpush1.msra.mxu0 0.0
  %979 = vmatprep.subr.mxu0 0.0
  %980 = vmatpush1.msra.mxu0 0.0
  %981 = vmatprep.subr.mxu0 0.0
  %982 = vmatpush1.msra.mxu0 0.0
  %983 = vmatprep.subr.mxu0 0.0
  %984 = vmatpush1.msra.mxu0 0.0
  %985 = vmatprep.subr.mxu0 0.0
  %986 = vmatpush1.msra.mxu0 0.0
  %987 = vmatprep.subr.mxu0 0.0
  %988 = vmatpush1.msra.mxu0 0.0
  %989 = vmatprep.subr.mxu0 0.0
  %990 = vmatpush1.msra.mxu0 0.0
  %991 = vmatprep.subr.mxu0 0.0
  %992 = vmatpush1.msra.mxu0 0.0
  %993 = vmatprep.subr.mxu0 0.0
  %994 = vmatpush1.msra.mxu0 0.0
  %995 = vmatprep.subr.mxu0 0.0
  %996 = vmatpush1.msra.mxu0 0.0
  %997 = vmatprep.subr.mxu0 0.0
  %998 = vmatpush1.msra.mxu0 0.0
  %999 = vmatprep.subr.mxu0 0.0
  %1000 = vmatpush1.msra.mxu0 0.0
  %1001 = vmatprep.subr.mxu0 0.0
  %1002 = vmatpush1.msra.mxu0 0.0
  %1003 = vmatprep.subr.mxu0 0.0
  %1004 = vmatpush1.msra.mxu0 0.0
  %1005 = vmatprep.subr.mxu0 0.0
  %1006 = vmatpush1.msra.mxu0 0.0
  %1007 = vmatprep.subr.mxu0 0.0
  %1008 = vmatpush1.msra.mxu0 0.0
  %1009 = vmatprep.subr.mxu0 0.0
  %1010 = vmatpush1.msra.mxu0 0.0
  %1011 = vmatprep.subr.mxu0 0.0
  %1012 = vmatpush1.msra.mxu0 0.0
  %1013 = vmatprep.subr.mxu0 0.0
  %1014 = vmatpush1.msra.mxu0 0.0
  %1015 = vmatprep.subr.mxu0 0.0
  %1016 = vmatpush1.msra.mxu0 0.0
  %1017 = vmatprep.subr.mxu0 0.0
  %1018 = vmatpush1.msra.mxu0 0.0
  %1019 = vmatprep.subr.mxu0 0.0
  %1020 = vmatpush1.msra.mxu0 0.0
  %1021 = vmatprep.subr.mxu0 0.0
  %1022 = vmatpush1.msra.mxu0 0.0
  %1023 = vmatprep.subr.mxu0 0.0
  %1024 = vmatpush1.msra.mxu0 0.0
  %1025 = vmatprep.subr.mxu0 0.0
  %1026 = vmatpush1.msra.mxu0 0.0
  %1027 = vmatprep.subr.mxu0 0.0
  %1028 = vmatpush1.msra.mxu0 0.0
  %1029 = vmatprep.subr.mxu0 0.0
  %1030 = vmatpush1.msra.mxu0 0.0
  %1031 = vmatprep.subr.mxu0 0.0
  %1032 = vmatpush1.msra.mxu0 0.0
  %1033 = vmatprep.mubr.f32.mxu0 0.0
  %1034 = vmatmul.mubr.f32.gmra.mrb[0].mxu0 %v967
  %v1035 = vpop.f32.mrb[0].mxu0
  %v1036 = vadd.f32 0.0, %v1035
  %v1037 = vpop.f32.mrb[0].mxu0
  %v1038 = vadd.f32 0.0, %v1037
  %1039 = vdwg.mxu0
  %1040 = vmatprep.subr.mxu0 %v965
  %1041 = vmatpush1.msra.mxu0 %v962
  %1042 = vmatprep.subr.mxu0 0.0
  %1043 = vmatpush1.msra.mxu0 0.0
  %1044 = vmatprep.subr.mxu0 0.0
  %1045 = vmatpush1.msra.mxu0 0.0
  %1046 = vmatprep.subr.mxu0 0.0
  %1047 = vmatpush1.msra.mxu0 0.0
  %1048 = vmatprep.subr.mxu0 0.0
  %1049 = vmatpush1.msra.mxu0 0.0
  %1050 = vmatprep.subr.mxu0 0.0
  %1051 = vmatpush1.msra.mxu0 0.0
  %1052 = vmatprep.subr.mxu0 0.0
  %1053 = vmatpush1.msra.mxu0 0.0
  %1054 = vmatprep.subr.mxu0 0.0
  %1055 = vmatpush1.msra.mxu0 0.0
  %1056 = vmatprep.subr.mxu0 0.0
  %1057 = vmatpush1.msra.mxu0 0.0
  %1058 = vmatprep.subr.mxu0 0.0
  %1059 = vmatpush1.msra.mxu0 0.0
  %1060 = vmatprep.subr.mxu0 0.0
  %1061 = vmatpush1.msra.mxu0 0.0
  %1062 = vmatprep.subr.mxu0 0.0
  %1063 = vmatpush1.msra.mxu0 0.0
  %1064 = vmatprep.subr.mxu0 0.0
  %1065 = vmatpush1.msra.mxu0 0.0
  %1066 = vmatprep.subr.mxu0 0.0
  %1067 = vmatpush1.msra.mxu0 0.0
  %1068 = vmatprep.subr.mxu0 0.0
  %1069 = vmatpush1.msra.mxu0 0.0
  %1070 = vmatprep.subr.mxu0 0.0
  %1071 = vmatpush1.msra.mxu0 0.0
  %1072 = vmatprep.subr.mxu0 0.0
  %1073 = vmatpush1.msra.mxu0 0.0
  %1074 = vmatprep.subr.mxu0 0.0
  %1075 = vmatpush1.msra.mxu0 0.0
  %1076 = vmatprep.subr.mxu0 0.0
  %1077 = vmatpush1.msra.mxu0 0.0
  %1078 = vmatprep.subr.mxu0 0.0
  %1079 = vmatpush1.msra.mxu0 0.0
  %1080 = vmatprep.subr.mxu0 0.0
  %1081 = vmatpush1.msra.mxu0 0.0
  %1082 = vmatprep.subr.mxu0 0.0
  %1083 = vmatpush1.msra.mxu0 0.0
  %1084 = vmatprep.subr.mxu0 0.0
  %1085 = vmatpush1.msra.mxu0 0.0
  %1086 = vmatprep.subr.mxu0 0.0
  %1087 = vmatpush1.msra.mxu0 0.0
  %1088 = vmatprep.subr.mxu0 0.0
  %1089 = vmatpush1.msra.mxu0 0.0
  %1090 = vmatprep.subr.mxu0 0.0
  %1091 = vmatpush1.msra.mxu0 0.0
  %1092 = vmatprep.subr.mxu0 0.0
  %1093 = vmatpush1.msra.mxu0 0.0
  %1094 = vmatprep.subr.mxu0 0.0
  %1095 = vmatpush1.msra.mxu0 0.0
  %1096 = vmatprep.subr.mxu0 0.0
  %1097 = vmatpush1.msra.mxu0 0.0
  %1098 = vmatprep.subr.mxu0 0.0
  %1099 = vmatpush1.msra.mxu0 0.0
  %1100 = vmatprep.subr.mxu0 0.0
  %1101 = vmatpush1.msra.mxu0 0.0
  %1102 = vmatprep.subr.mxu0 0.0
  %1103 = vmatpush1.msra.mxu0 0.0
  %1104 = vmatprep.mubr.f32.mxu0 0.0
  %1105 = vmatmul.mubr.f32.gmra.mrb[0].mxu0 %v967
  %v1106 = vpop.f32.mrb[0].mxu0
  %v1107 = vadd.f32 0.0, %v1106
  %v1108 = vpop.f32.mrb[0].mxu0
  %v1109 = vadd.f32 0.0, %v1108
  %1110 = vdwg.mxu0
  %s1111 = scalar_lea.vmem %s6, 20
  %v1112 = vld [vmem:[%s1111] sm:$0xf]
  %v1114 = vlaneseq
  %v1115 = vshrl.u32 %v1114, 7
  %v1116 = vsub.s32 0, %v1115
  %v1117 = vrot.slane %v1112, %v1116
  %v1118 = vlaneseq
  %v1119 = vshrl.u32 %v1118, 7
  %v1120 = vsub.s32 1, %v1119
  %v1121 = vrot.slane %v1112, %v1120
  %v1122 = vlaneseq
  %v1123 = vshrl.u32 %v1122, 7
  %v1124 = vsub.s32 2, %v1123
  %v1125 = vrot.slane %v1112, %v1124
  %v1126 = vlaneseq
  %v1127 = vshrl.u32 %v1126, 7
  %v1128 = vsub.s32 3, %v1127
  %v1129 = vrot.slane %v1112, %v1128
  %v1134 = vmul.f32 %v1036, %v1117
  %v1135 = vmul.f32 %v1038, %v1121
  %v1136 = vmul.f32 %v1107, %v1125
  %v1137 = vmul.f32 %v1109, %v1129
  %v1138 = vadd.f32 %v947, %v1134
  %v1139 = vadd.f32 %v948, %v1135
  %v1140 = vadd.f32 %v949, %v1136
  %v1141 = vadd.f32 %v950, %v1137
  %s1142 = scalar_lea.vmem %s2, 24
  %v1143 = vld [vmem:[%s1142] sm:$0xf]
  %1144 = vrot.lane.b32.xlu0 %v29, 113
  %v1145 = vpop.permute.xlu0 %1144
  %1146 = vrot.lane.b32.xlu0 %v30, 113
  %v1147 = vpop.permute.xlu0 %1146
  %1148 = vrot.lane.b32.xlu0 %v31, 113
  %v1149 = vpop.permute.xlu0 %1148
  %1150 = vrot.lane.b32.xlu0 %v32, 113
  %v1151 = vpop.permute.xlu0 %1150
  %vm1152 = vcmp.lt.s32.totalorder %v45, 113
  %v1153 = vsel %vm1152, %v1149, %v1151
  %v1154 = vsel %vm1152, %v1147, %v1149
  %v1155 = vsel %vm1152, %v1145, %v1147
  %v1156 = vsel %vm1152, %v1151, %v1145
  %v1158 = vsel %vm51, %v1143, 0
  %1160 = vmatprep.subr.mxu0 %v1154
  %1161 = vmatpush1.msra.mxu0 %v1155
  %1162 = vmatprep.subr.mxu0 0.0
  %1163 = vmatpush1.msra.mxu0 0.0
  %1164 = vmatprep.subr.mxu0 0.0
  %1165 = vmatpush1.msra.mxu0 0.0
  %1166 = vmatprep.subr.mxu0 0.0
  %1167 = vmatpush1.msra.mxu0 0.0
  %1168 = vmatprep.subr.mxu0 0.0
  %1169 = vmatpush1.msra.mxu0 0.0
  %1170 = vmatprep.subr.mxu0 0.0
  %1171 = vmatpush1.msra.mxu0 0.0
  %1172 = vmatprep.subr.mxu0 0.0
  %1173 = vmatpush1.msra.mxu0 0.0
  %1174 = vmatprep.subr.mxu0 0.0
  %1175 = vmatpush1.msra.mxu0 0.0
  %1176 = vmatprep.subr.mxu0 0.0
  %1177 = vmatpush1.msra.mxu0 0.0
  %1178 = vmatprep.subr.mxu0 0.0
  %1179 = vmatpush1.msra.mxu0 0.0
  %1180 = vmatprep.subr.mxu0 0.0
  %1181 = vmatpush1.msra.mxu0 0.0
  %1182 = vmatprep.subr.mxu0 0.0
  %1183 = vmatpush1.msra.mxu0 0.0
  %1184 = vmatprep.subr.mxu0 0.0
  %1185 = vmatpush1.msra.mxu0 0.0
  %1186 = vmatprep.subr.mxu0 0.0
  %1187 = vmatpush1.msra.mxu0 0.0
  %1188 = vmatprep.subr.mxu0 0.0
  %1189 = vmatpush1.msra.mxu0 0.0
  %1190 = vmatprep.subr.mxu0 0.0
  %1191 = vmatpush1.msra.mxu0 0.0
  %1192 = vmatprep.subr.mxu0 0.0
  %1193 = vmatpush1.msra.mxu0 0.0
  %1194 = vmatprep.subr.mxu0 0.0
  %1195 = vmatpush1.msra.mxu0 0.0
  %1196 = vmatprep.subr.mxu0 0.0
  %1197 = vmatpush1.msra.mxu0 0.0
  %1198 = vmatprep.subr.mxu0 0.0
  %1199 = vmatpush1.msra.mxu0 0.0
  %1200 = vmatprep.subr.mxu0 0.0
  %1201 = vmatpush1.msra.mxu0 0.0
  %1202 = vmatprep.subr.mxu0 0.0
  %1203 = vmatpush1.msra.mxu0 0.0
  %1204 = vmatprep.subr.mxu0 0.0
  %1205 = vmatpush1.msra.mxu0 0.0
  %1206 = vmatprep.subr.mxu0 0.0
  %1207 = vmatpush1.msra.mxu0 0.0
  %1208 = vmatprep.subr.mxu0 0.0
  %1209 = vmatpush1.msra.mxu0 0.0
  %1210 = vmatprep.subr.mxu0 0.0
  %1211 = vmatpush1.msra.mxu0 0.0
  %1212 = vmatprep.subr.mxu0 0.0
  %1213 = vmatpush1.msra.mxu0 0.0
  %1214 = vmatprep.subr.mxu0 0.0
  %1215 = vmatpush1.msra.mxu0 0.0
  %1216 = vmatprep.subr.mxu0 0.0
  %1217 = vmatpush1.msra.mxu0 0.0
  %1218 = vmatprep.subr.mxu0 0.0
  %1219 = vmatpush1.msra.mxu0 0.0
  %1220 = vmatprep.subr.mxu0 0.0
  %1221 = vmatpush1.msra.mxu0 0.0
  %1222 = vmatprep.subr.mxu0 0.0
  %1223 = vmatpush1.msra.mxu0 0.0
  %1224 = vmatprep.mubr.f32.mxu0 0.0
  %1225 = vmatmul.mubr.f32.gmra.mrb[0].mxu0 %v1158
  %v1226 = vpop.f32.mrb[0].mxu0
  %v1227 = vadd.f32 0.0, %v1226
  %v1228 = vpop.f32.mrb[0].mxu0
  %v1229 = vadd.f32 0.0, %v1228
  %1230 = vdwg.mxu0
  %1231 = vmatprep.subr.mxu0 %v1156
  %1232 = vmatpush1.msra.mxu0 %v1153
  %1233 = vmatprep.subr.mxu0 0.0
  %1234 = vmatpush1.msra.mxu0 0.0
  %1235 = vmatprep.subr.mxu0 0.0
  %1236 = vmatpush1.msra.mxu0 0.0
  %1237 = vmatprep.subr.mxu0 0.0
  %1238 = vmatpush1.msra.mxu0 0.0
  %1239 = vmatprep.subr.mxu0 0.0
  %1240 = vmatpush1.msra.mxu0 0.0
  %1241 = vmatprep.subr.mxu0 0.0
  %1242 = vmatpush1.msra.mxu0 0.0
  %1243 = vmatprep.subr.mxu0 0.0
  %1244 = vmatpush1.msra.mxu0 0.0
  %1245 = vmatprep.subr.mxu0 0.0
  %1246 = vmatpush1.msra.mxu0 0.0
  %1247 = vmatprep.subr.mxu0 0.0
  %1248 = vmatpush1.msra.mxu0 0.0
  %1249 = vmatprep.subr.mxu0 0.0
  %1250 = vmatpush1.msra.mxu0 0.0
  %1251 = vmatprep.subr.mxu0 0.0
  %1252 = vmatpush1.msra.mxu0 0.0
  %1253 = vmatprep.subr.mxu0 0.0
  %1254 = vmatpush1.msra.mxu0 0.0
  %1255 = vmatprep.subr.mxu0 0.0
  %1256 = vmatpush1.msra.mxu0 0.0
  %1257 = vmatprep.subr.mxu0 0.0
  %1258 = vmatpush1.msra.mxu0 0.0
  %1259 = vmatprep.subr.mxu0 0.0
  %1260 = vmatpush1.msra.mxu0 0.0
  %1261 = vmatprep.subr.mxu0 0.0
  %1262 = vmatpush1.msra.mxu0 0.0
  %1263 = vmatprep.subr.mxu0 0.0
  %1264 = vmatpush1.msra.mxu0 0.0
  %1265 = vmatprep.subr.mxu0 0.0
  %1266 = vmatpush1.msra.mxu0 0.0
  %1267 = vmatprep.subr.mxu0 0.0
  %1268 = vmatpush1.msra.mxu0 0.0
  %1269 = vmatprep.subr.mxu0 0.0
  %1270 = vmatpush1.msra.mxu0 0.0
  %1271 = vmatprep.subr.mxu0 0.0
  %1272 = vmatpush1.msra.mxu0 0.0
  %1273 = vmatprep.subr.mxu0 0.0
  %1274 = vmatpush1.msra.mxu0 0.0
  %1275 = vmatprep.subr.mxu0 0.0
  %1276 = vmatpush1.msra.mxu0 0.0
  %1277 = vmatprep.subr.mxu0 0.0
  %1278 = vmatpush1.msra.mxu0 0.0
  %1279 = vmatprep.subr.mxu0 0.0
  %1280 = vmatpush1.msra.mxu0 0.0
  %1281 = vmatprep.subr.mxu0 0.0
  %1282 = vmatpush1.msra.mxu0 0.0
  %1283 = vmatprep.subr.mxu0 0.0
  %1284 = vmatpush1.msra.mxu0 0.0
  %1285 = vmatprep.subr.mxu0 0.0
  %1286 = vmatpush1.msra.mxu0 0.0
  %1287 = vmatprep.subr.mxu0 0.0
  %1288 = vmatpush1.msra.mxu0 0.0
  %1289 = vmatprep.subr.mxu0 0.0
  %1290 = vmatpush1.msra.mxu0 0.0
  %1291 = vmatprep.subr.mxu0 0.0
  %1292 = vmatpush1.msra.mxu0 0.0
  %1293 = vmatprep.subr.mxu0 0.0
  %1294 = vmatpush1.msra.mxu0 0.0
  %1295 = vmatprep.mubr.f32.mxu0 0.0
  %1296 = vmatmul.mubr.f32.gmra.mrb[0].mxu0 %v1158
  %v1297 = vpop.f32.mrb[0].mxu0
  %v1298 = vadd.f32 0.0, %v1297
  %v1299 = vpop.f32.mrb[0].mxu0
  %v1300 = vadd.f32 0.0, %v1299
  %1301 = vdwg.mxu0
  %s1302 = scalar_lea.vmem %s6, 24
  %v1303 = vld [vmem:[%s1302] sm:$0xf]
  %v1305 = vlaneseq
  %v1306 = vshrl.u32 %v1305, 7
  %v1307 = vsub.s32 0, %v1306
  %v1308 = vrot.slane %v1303, %v1307
  %v1309 = vlaneseq
  %v1310 = vshrl.u32 %v1309, 7
  %v1311 = vsub.s32 1, %v1310
  %v1312 = vrot.slane %v1303, %v1311
  %v1313 = vlaneseq
  %v1314 = vshrl.u32 %v1313, 7
  %v1315 = vsub.s32 2, %v1314
  %v1316 = vrot.slane %v1303, %v1315
  %v1317 = vlaneseq
  %v1318 = vshrl.u32 %v1317, 7
  %v1319 = vsub.s32 3, %v1318
  %v1320 = vrot.slane %v1303, %v1319
  %v1325 = vmul.f32 %v1227, %v1308
  %v1326 = vmul.f32 %v1229, %v1312
  %v1327 = vmul.f32 %v1298, %v1316
  %v1328 = vmul.f32 %v1300, %v1320
  %v1329 = vadd.f32 %v1138, %v1325
  %v1330 = vadd.f32 %v1139, %v1326
  %v1331 = vadd.f32 %v1140, %v1327
  %v1332 = vadd.f32 %v1141, %v1328
  %s1333 = scalar_lea.vmem %s2, 28
  %v1334 = vld [vmem:[%s1333] sm:$0xf]
  %1335 = vrot.lane.b32.xlu0 %v29, 112
  %v1336 = vpop.permute.xlu0 %1335
  %1337 = vrot.lane.b32.xlu0 %v30, 112
  %v1338 = vpop.permute.xlu0 %1337
  %1339 = vrot.lane.b32.xlu0 %v31, 112
  %v1340 = vpop.permute.xlu0 %1339
  %1341 = vrot.lane.b32.xlu0 %v32, 112
  %v1342 = vpop.permute.xlu0 %1341
  %vm1343 = vcmp.lt.s32.totalorder %v45, 112
  %v1344 = vsel %vm1343, %v1340, %v1342
  %v1345 = vsel %vm1343, %v1338, %v1340
  %v1346 = vsel %vm1343, %v1336, %v1338
  %v1347 = vsel %vm1343, %v1342, %v1336
  %v1349 = vsel %vm51, %v1334, 0
  %1351 = vmatprep.subr.mxu0 %v1345
  %1352 = vmatpush1.msra.mxu0 %v1346
  %1353 = vmatprep.subr.mxu0 0.0
  %1354 = vmatpush1.msra.mxu0 0.0
  %1355 = vmatprep.subr.mxu0 0.0
  %1356 = vmatpush1.msra.mxu0 0.0
  %1357 = vmatprep.subr.mxu0 0.0
  %1358 = vmatpush1.msra.mxu0 0.0
  %1359 = vmatprep.subr.mxu0 0.0
  %1360 = vmatpush1.msra.mxu0 0.0
  %1361 = vmatprep.subr.mxu0 0.0
  %1362 = vmatpush1.msra.mxu0 0.0
  %1363 = vmatprep.subr.mxu0 0.0
  %1364 = vmatpush1.msra.mxu0 0.0
  %1365 = vmatprep.subr.mxu0 0.0
  %1366 = vmatpush1.msra.mxu0 0.0
  %1367 = vmatprep.subr.mxu0 0.0
  %1368 = vmatpush1.msra.mxu0 0.0
  %1369 = vmatprep.subr.mxu0 0.0
  %1370 = vmatpush1.msra.mxu0 0.0
  %1371 = vmatprep.subr.mxu0 0.0
  %1372 = vmatpush1.msra.mxu0 0.0
  %1373 = vmatprep.subr.mxu0 0.0
  %1374 = vmatpush1.msra.mxu0 0.0
  %1375 = vmatprep.subr.mxu0 0.0
  %1376 = vmatpush1.msra.mxu0 0.0
  %1377 = vmatprep.subr.mxu0 0.0
  %1378 = vmatpush1.msra.mxu0 0.0
  %1379 = vmatprep.subr.mxu0 0.0
  %1380 = vmatpush1.msra.mxu0 0.0
  %1381 = vmatprep.subr.mxu0 0.0
  %1382 = vmatpush1.msra.mxu0 0.0
  %1383 = vmatprep.subr.mxu0 0.0
  %1384 = vmatpush1.msra.mxu0 0.0
  %1385 = vmatprep.subr.mxu0 0.0
  %1386 = vmatpush1.msra.mxu0 0.0
  %1387 = vmatprep.subr.mxu0 0.0
  %1388 = vmatpush1.msra.mxu0 0.0
  %1389 = vmatprep.subr.mxu0 0.0
  %1390 = vmatpush1.msra.mxu0 0.0
  %1391 = vmatprep.subr.mxu0 0.0
  %1392 = vmatpush1.msra.mxu0 0.0
  %1393 = vmatprep.subr.mxu0 0.0
  %1394 = vmatpush1.msra.mxu0 0.0
  %1395 = vmatprep.subr.mxu0 0.0
  %1396 = vmatpush1.msra.mxu0 0.0
  %1397 = vmatprep.subr.mxu0 0.0
  %1398 = vmatpush1.msra.mxu0 0.0
  %1399 = vmatprep.subr.mxu0 0.0
  %1400 = vmatpush1.msra.mxu0 0.0
  %1401 = vmatprep.subr.mxu0 0.0
  %1402 = vmatpush1.msra.mxu0 0.0
  %1403 = vmatprep.subr.mxu0 0.0
  %1404 = vmatpush1.msra.mxu0 0.0
  %1405 = vmatprep.subr.mxu0 0.0
  %1406 = vmatpush1.msra.mxu0 0.0
  %1407 = vmatprep.subr.mxu0 0.0
  %1408 = vmatpush1.msra.mxu0 0.0
  %1409 = vmatprep.subr.mxu0 0.0
  %1410 = vmatpush1.msra.mxu0 0.0
  %1411 = vmatprep.subr.mxu0 0.0
  %1412 = vmatpush1.msra.mxu0 0.0
  %1413 = vmatprep.subr.mxu0 0.0
  %1414 = vmatpush1.msra.mxu0 0.0
  %1415 = vmatprep.mubr.f32.mxu0 0.0
  %1416 = vmatmul.mubr.f32.gmra.mrb[0].mxu0 %v1349
  %v1417 = vpop.f32.mrb[0].mxu0
  %v1418 = vadd.f32 0.0, %v1417
  %v1419 = vpop.f32.mrb[0].mxu0
  %v1420 = vadd.f32 0.0, %v1419
  %1421 = vdwg.mxu0
  %1422 = vmatprep.subr.mxu0 %v1347
  %1423 = vmatpush1.msra.mxu0 %v1344
  %1424 = vmatprep.subr.mxu0 0.0
  %1425 = vmatpush1.msra.mxu0 0.0
  %1426 = vmatprep.subr.mxu0 0.0
  %1427 = vmatpush1.msra.mxu0 0.0
  %1428 = vmatprep.subr.mxu0 0.0
  %1429 = vmatpush1.msra.mxu0 0.0
  %1430 = vmatprep.subr.mxu0 0.0
  %1431 = vmatpush1.msra.mxu0 0.0
  %1432 = vmatprep.subr.mxu0 0.0
  %1433 = vmatpush1.msra.mxu0 0.0
  %1434 = vmatprep.subr.mxu0 0.0
  %1435 = vmatpush1.msra.mxu0 0.0
  %1436 = vmatprep.subr.mxu0 0.0
  %1437 = vmatpush1.msra.mxu0 0.0
  %1438 = vmatprep.subr.mxu0 0.0
  %1439 = vmatpush1.msra.mxu0 0.0
  %1440 = vmatprep.subr.mxu0 0.0
  %1441 = vmatpush1.msra.mxu0 0.0
  %1442 = vmatprep.subr.mxu0 0.0
  %1443 = vmatpush1.msra.mxu0 0.0
  %1444 = vmatprep.subr.mxu0 0.0
  %1445 = vmatpush1.msra.mxu0 0.0
  %1446 = vmatprep.subr.mxu0 0.0
  %1447 = vmatpush1.msra.mxu0 0.0
  %1448 = vmatprep.subr.mxu0 0.0
  %1449 = vmatpush1.msra.mxu0 0.0
  %1450 = vmatprep.subr.mxu0 0.0
  %1451 = vmatpush1.msra.mxu0 0.0
  %1452 = vmatprep.subr.mxu0 0.0
  %1453 = vmatpush1.msra.mxu0 0.0
  %1454 = vmatprep.subr.mxu0 0.0
  %1455 = vmatpush1.msra.mxu0 0.0
  %1456 = vmatprep.subr.mxu0 0.0
  %1457 = vmatpush1.msra.mxu0 0.0
  %1458 = vmatprep.subr.mxu0 0.0
  %1459 = vmatpush1.msra.mxu0 0.0
  %1460 = vmatprep.subr.mxu0 0.0
  %1461 = vmatpush1.msra.mxu0 0.0
  %1462 = vmatprep.subr.mxu0 0.0
  %1463 = vmatpush1.msra.mxu0 0.0
  %1464 = vmatprep.subr.mxu0 0.0
  %1465 = vmatpush1.msra.mxu0 0.0
  %1466 = vmatprep.subr.mxu0 0.0
  %1467 = vmatpush1.msra.mxu0 0.0
  %1468 = vmatprep.subr.mxu0 0.0
  %1469 = vmatpush1.msra.mxu0 0.0
  %1470 = vmatprep.subr.mxu0 0.0
  %1471 = vmatpush1.msra.mxu0 0.0
  %1472 = vmatprep.subr.mxu0 0.0
  %1473 = vmatpush1.msra.mxu0 0.0
  %1474 = vmatprep.subr.mxu0 0.0
  %1475 = vmatpush1.msra.mxu0 0.0
  %1476 = vmatprep.subr.mxu0 0.0
  %1477 = vmatpush1.msra.mxu0 0.0
  %1478 = vmatprep.subr.mxu0 0.0
  %1479 = vmatpush1.msra.mxu0 0.0
  %1480 = vmatprep.subr.mxu0 0.0
  %1481 = vmatpush1.msra.mxu0 0.0
  %1482 = vmatprep.subr.mxu0 0.0
  %1483 = vmatpush1.msra.mxu0 0.0
  %1484 = vmatprep.subr.mxu0 0.0
  %1485 = vmatpush1.msra.mxu0 0.0
  %1486 = vmatprep.mubr.f32.mxu0 0.0
  %1487 = vmatmul.mubr.f32.gmra.mrb[0].mxu0 %v1349
  %v1488 = vpop.f32.mrb[0].mxu0
  %v1489 = vadd.f32 0.0, %v1488
  %v1490 = vpop.f32.mrb[0].mxu0
  %v1491 = vadd.f32 0.0, %v1490
  %1492 = vdwg.mxu0
  %s1493 = scalar_lea.vmem %s6, 28
  %v1494 = vld [vmem:[%s1493] sm:$0xf]
  %v1496 = vlaneseq
  %v1497 = vshrl.u32 %v1496, 7
  %v1498 = vsub.s32 0, %v1497
  %v1499 = vrot.slane %v1494, %v1498
  %v1500 = vlaneseq
  %v1501 = vshrl.u32 %v1500, 7
  %v1502 = vsub.s32 1, %v1501
  %v1503 = vrot.slane %v1494, %v1502
  %v1504 = vlaneseq
  %v1505 = vshrl.u32 %v1504, 7
  %v1506 = vsub.s32 2, %v1505
  %v1507 = vrot.slane %v1494, %v1506
  %v1508 = vlaneseq
  %v1509 = vshrl.u32 %v1508, 7
  %v1510 = vsub.s32 3, %v1509
  %v1511 = vrot.slane %v1494, %v1510
  %v1516 = vmul.f32 %v1418, %v1499
  %v1517 = vmul.f32 %v1420, %v1503
  %v1518 = vmul.f32 %v1489, %v1507
  %v1519 = vmul.f32 %v1491, %v1511
  %v1520 = vadd.f32 %v1329, %v1516
  %v1521 = vadd.f32 %v1330, %v1517
  %v1522 = vadd.f32 %v1331, %v1518
  %v1523 = vadd.f32 %v1332, %v1519
  %s1524 = scalar_lea.vmem %s2, 32
  %v1525 = vld [vmem:[%s1524] sm:$0xf]
  %1526 = vrot.lane.b32.xlu0 %v29, 111
  %v1527 = vpop.permute.xlu0 %1526
  %1528 = vrot.lane.b32.xlu0 %v30, 111
  %v1529 = vpop.permute.xlu0 %1528
  %1530 = vrot.lane.b32.xlu0 %v31, 111
  %v1531 = vpop.permute.xlu0 %1530
  %1532 = vrot.lane.b32.xlu0 %v32, 111
  %v1533 = vpop.permute.xlu0 %1532
  %vm1534 = vcmp.lt.s32.totalorder %v45, 111
  %v1535 = vsel %vm1534, %v1531, %v1533
  %v1536 = vsel %vm1534, %v1529, %v1531
  %v1537 = vsel %vm1534, %v1527, %v1529
  %v1538 = vsel %vm1534, %v1533, %v1527
  %v1540 = vsel %vm51, %v1525, 0
  %1542 = vmatprep.subr.mxu0 %v1536
  %1543 = vmatpush1.msra.mxu0 %v1537
  %1544 = vmatprep.subr.mxu0 0.0
  %1545 = vmatpush1.msra.mxu0 0.0
  %1546 = vmatprep.subr.mxu0 0.0
  %1547 = vmatpush1.msra.mxu0 0.0
  %1548 = vmatprep.subr.mxu0 0.0
  %1549 = vmatpush1.msra.mxu0 0.0
  %1550 = vmatprep.subr.mxu0 0.0
  %1551 = vmatpush1.msra.mxu0 0.0
  %1552 = vmatprep.subr.mxu0 0.0
  %1553 = vmatpush1.msra.mxu0 0.0
  %1554 = vmatprep.subr.mxu0 0.0
  %1555 = vmatpush1.msra.mxu0 0.0
  %1556 = vmatprep.subr.mxu0 0.0
  %1557 = vmatpush1.msra.mxu0 0.0
  %1558 = vmatprep.subr.mxu0 0.0
  %1559 = vmatpush1.msra.mxu0 0.0
  %1560 = vmatprep.subr.mxu0 0.0
  %1561 = vmatpush1.msra.mxu0 0.0
  %1562 = vmatprep.subr.mxu0 0.0
  %1563 = vmatpush1.msra.mxu0 0.0
  %1564 = vmatprep.subr.mxu0 0.0
  %1565 = vmatpush1.msra.mxu0 0.0
  %1566 = vmatprep.subr.mxu0 0.0
  %1567 = vmatpush1.msra.mxu0 0.0
  %1568 = vmatprep.subr.mxu0 0.0
  %1569 = vmatpush1.msra.mxu0 0.0
  %1570 = vmatprep.subr.mxu0 0.0
  %1571 = vmatpush1.msra.mxu0 0.0
  %1572 = vmatprep.subr.mxu0 0.0
  %1573 = vmatpush1.msra.mxu0 0.0
  %1574 = vmatprep.subr.mxu0 0.0
  %1575 = vmatpush1.msra.mxu0 0.0
  %1576 = vmatprep.subr.mxu0 0.0
  %1577 = vmatpush1.msra.mxu0 0.0
  %1578 = vmatprep.subr.mxu0 0.0
  %1579 = vmatpush1.msra.mxu0 0.0
  %1580 = vmatprep.subr.mxu0 0.0
  %1581 = vmatpush1.msra.mxu0 0.0
  %1582 = vmatprep.subr.mxu0 0.0
  %1583 = vmatpush1.msra.mxu0 0.0
  %1584 = vmatprep.subr.mxu0 0.0
  %1585 = vmatpush1.msra.mxu0 0.0
  %1586 = vmatprep.subr.mxu0 0.0
  %1587 = vmatpush1.msra.mxu0 0.0
  %1588 = vmatprep.subr.mxu0 0.0
  %1589 = vmatpush1.msra.mxu0 0.0
  %1590 = vmatprep.subr.mxu0 0.0
  %1591 = vmatpush1.msra.mxu0 0.0
  %1592 = vmatprep.subr.mxu0 0.0
  %1593 = vmatpush1.msra.mxu0 0.0
  %1594 = vmatprep.subr.mxu0 0.0
  %1595 = vmatpush1.msra.mxu0 0.0
  %1596 = vmatprep.subr.mxu0 0.0
  %1597 = vmatpush1.msra.mxu0 0.0
  %1598 = vmatprep.subr.mxu0 0.0
  %1599 = vmatpush1.msra.mxu0 0.0
  %1600 = vmatprep.subr.mxu0 0.0
  %1601 = vmatpush1.msra.mxu0 0.0
  %1602 = vmatprep.subr.mxu0 0.0
  %1603 = vmatpush1.msra.mxu0 0.0
  %1604 = vmatprep.subr.mxu0 0.0
  %1605 = vmatpush1.msra.mxu0 0.0
  %1606 = vmatprep.mubr.f32.mxu0 0.0
  %1607 = vmatmul.mubr.f32.gmra.mrb[0].mxu0 %v1540
  %v1608 = vpop.f32.mrb[0].mxu0
  %v1609 = vadd.f32 0.0, %v1608
  %v1610 = vpop.f32.mrb[0].mxu0
  %v1611 = vadd.f32 0.0, %v1610
  %1612 = vdwg.mxu0
  %1613 = vmatprep.subr.mxu0 %v1538
  %1614 = vmatpush1.msra.mxu0 %v1535
  %1615 = vmatprep.subr.mxu0 0.0
  %1616 = vmatpush1.msra.mxu0 0.0
  %1617 = vmatprep.subr.mxu0 0.0
  %1618 = vmatpush1.msra.mxu0 0.0
  %1619 = vmatprep.subr.mxu0 0.0
  %1620 = vmatpush1.msra.mxu0 0.0
  %1621 = vmatprep.subr.mxu0 0.0
  %1622 = vmatpush1.msra.mxu0 0.0
  %1623 = vmatprep.subr.mxu0 0.0
  %1624 = vmatpush1.msra.mxu0 0.0
  %1625 = vmatprep.subr.mxu0 0.0
  %1626 = vmatpush1.msra.mxu0 0.0
  %1627 = vmatprep.subr.mxu0 0.0
  %1628 = vmatpush1.msra.mxu0 0.0
  %1629 = vmatprep.subr.mxu0 0.0
  %1630 = vmatpush1.msra.mxu0 0.0
  %1631 = vmatprep.subr.mxu0 0.0
  %1632 = vmatpush1.msra.mxu0 0.0
  %1633 = vmatprep.subr.mxu0 0.0
  %1634 = vmatpush1.msra.mxu0 0.0
  %1635 = vmatprep.subr.mxu0 0.0
  %1636 = vmatpush1.msra.mxu0 0.0
  %1637 = vmatprep.subr.mxu0 0.0
  %1638 = vmatpush1.msra.mxu0 0.0
  %1639 = vmatprep.subr.mxu0 0.0
  %1640 = vmatpush1.msra.mxu0 0.0
  %1641 = vmatprep.subr.mxu0 0.0
  %1642 = vmatpush1.msra.mxu0 0.0
  %1643 = vmatprep.subr.mxu0 0.0
  %1644 = vmatpush1.msra.mxu0 0.0
  %1645 = vmatprep.subr.mxu0 0.0
  %1646 = vmatpush1.msra.mxu0 0.0
  %1647 = vmatprep.subr.mxu0 0.0
  %1648 = vmatpush1.msra.mxu0 0.0
  %1649 = vmatprep.subr.mxu0 0.0
  %1650 = vmatpush1.msra.mxu0 0.0
  %1651 = vmatprep.subr.mxu0 0.0
  %1652 = vmatpush1.msra.mxu0 0.0
  %1653 = vmatprep.subr.mxu0 0.0
  %1654 = vmatpush1.msra.mxu0 0.0
  %1655 = vmatprep.subr.mxu0 0.0
  %1656 = vmatpush1.msra.mxu0 0.0
  %1657 = vmatprep.subr.mxu0 0.0
  %1658 = vmatpush1.msra.mxu0 0.0
  %1659 = vmatprep.subr.mxu0 0.0
  %1660 = vmatpush1.msra.mxu0 0.0
  %1661 = vmatprep.subr.mxu0 0.0
  %1662 = vmatpush1.msra.mxu0 0.0
  %1663 = vmatprep.subr.mxu0 0.0
  %1664 = vmatpush1.msra.mxu0 0.0
  %1665 = vmatprep.subr.mxu0 0.0
  %1666 = vmatpush1.msra.mxu0 0.0
  %1667 = vmatprep.subr.mxu0 0.0
  %1668 = vmatpush1.msra.mxu0 0.0
  %1669 = vmatprep.subr.mxu0 0.0
  %1670 = vmatpush1.msra.mxu0 0.0
  %1671 = vmatprep.subr.mxu0 0.0
  %1672 = vmatpush1.msra.mxu0 0.0
  %1673 = vmatprep.subr.mxu0 0.0
  %1674 = vmatpush1.msra.mxu0 0.0
  %1675 = vmatprep.subr.mxu0 0.0
  %1676 = vmatpush1.msra.mxu0 0.0
  %1677 = vmatprep.mubr.f32.mxu0 0.0
  %1678 = vmatmul.mubr.f32.gmra.mrb[0].mxu0 %v1540
  %v1679 = vpop.f32.mrb[0].mxu0
  %v1680 = vadd.f32 0.0, %v1679
  %v1681 = vpop.f32.mrb[0].mxu0
  %v1682 = vadd.f32 0.0, %v1681
  %1683 = vdwg.mxu0
  %s1684 = scalar_lea.vmem %s6, 32
  %v1685 = vld [vmem:[%s1684] sm:$0xf]
  %v1687 = vlaneseq
  %v1688 = vshrl.u32 %v1687, 7
  %v1689 = vsub.s32 0, %v1688
  %v1690 = vrot.slane %v1685, %v1689
  %v1691 = vlaneseq
  %v1692 = vshrl.u32 %v1691, 7
  %v1693 = vsub.s32 1, %v1692
  %v1694 = vrot.slane %v1685, %v1693
  %v1695 = vlaneseq
  %v1696 = vshrl.u32 %v1695, 7
  %v1697 = vsub.s32 2, %v1696
  %v1698 = vrot.slane %v1685, %v1697
  %v1699 = vlaneseq
  %v1700 = vshrl.u32 %v1699, 7
  %v1701 = vsub.s32 3, %v1700
  %v1702 = vrot.slane %v1685, %v1701
  %v1707 = vmul.f32 %v1609, %v1690
  %v1708 = vmul.f32 %v1611, %v1694
  %v1709 = vmul.f32 %v1680, %v1698
  %v1710 = vmul.f32 %v1682, %v1702
  %v1711 = vadd.f32 %v1520, %v1707
  %v1712 = vadd.f32 %v1521, %v1708
  %v1713 = vadd.f32 %v1522, %v1709
  %v1714 = vadd.f32 %v1523, %v1710
  %v1715 = vld [vmem:[%s5] sm:$0xf]
  %1717 = vset.pattern.permute.xlu0 0
  %1718 = vperm.xlu0 %1717, %v1715
  %v1719 = vpop.permute.xlu0 %1718
  %v1721 = vadd.f32 %v1711, %v1719
  %v1722 = vadd.f32 %v1712, %v1719
  %v1723 = vadd.f32 %v1713, %v1719
  %v1724 = vadd.f32 %v1714, %v1719
  %v1725 = vld [vmem:[%s3] sm:$0xf]
  %1726 = vrot.lane.b32.xlu0 %v1721, 17
  %v1727 = vpop.permute.xlu0 %1726
  %1728 = vrot.lane.b32.xlu0 %v1722, 17
  %v1729 = vpop.permute.xlu0 %1728
  %1730 = vrot.lane.b32.xlu0 %v1723, 17
  %v1731 = vpop.permute.xlu0 %1730
  %1732 = vrot.lane.b32.xlu0 %v1724, 17
  %v1733 = vpop.permute.xlu0 %1732
  %v1734 = vsel %vm46, %v1731, %v1733
  %v1735 = vsel %vm46, %v1729, %v1731
  %v1736 = vsel %vm46, %v1727, %v1729
  %v1737 = vsel %vm46, %v1733, %v1727
  %v1738 = vld [vmem:[%s4] sm:$0xf]
  %v1741 = vcombine.high %v33, %v33
  %v1742 = vcombine.high %v34, %v34
  %1745 = vrot.lane.b32.xlu0 %v33, 17
  %v1746 = vpop.permute.xlu0 %1745
  %1747 = vrot.lane.b32.xlu0 %v1741, 17
  %v1748 = vpop.permute.xlu0 %1747
  %1749 = vrot.lane.b32.xlu0 %v34, 17
  %v1750 = vpop.permute.xlu0 %1749
  %1751 = vrot.lane.b32.xlu0 %v1742, 17
  %v1752 = vpop.permute.xlu0 %1751
  %v1753 = vsel %vm46, %v1750, %v1752
  %v1754 = vsel %vm46, %v1748, %v1750
  %v1755 = vsel %vm46, %v1746, %v1748
  %v1756 = vsel %vm46, %v1752, %v1746
  %vm1757 = vcmask 31744
  %v1759 = vsel %vm1757, %v1738, 0
  %vm1761 = vcmask 1043456
  %v1763 = vsel %vm1761, %v1756, 0
  %v1766 = vsel %vm1761, %v1755, 0
  %v1769 = vsel %vm1761, %v1754, 0
  %v1772 = vsel %vm1761, %v1753, 0
  %1774 = vmatprep.subr.mxu0 %v1766
  %1775 = vmatpush1.msra.mxu0 %v1763
  %1776 = vmatprep.subr.mxu0 0.0
  %1777 = vmatpush1.msra.mxu0 0.0
  %1778 = vmatprep.subr.mxu0 0.0
  %1779 = vmatpush1.msra.mxu0 0.0
  %1780 = vmatprep.subr.mxu0 0.0
  %1781 = vmatpush1.msra.mxu0 0.0
  %1782 = vmatprep.subr.mxu0 0.0
  %1783 = vmatpush1.msra.mxu0 0.0
  %1784 = vmatprep.subr.mxu0 0.0
  %1785 = vmatpush1.msra.mxu0 0.0
  %1786 = vmatprep.subr.mxu0 0.0
  %1787 = vmatpush1.msra.mxu0 0.0
  %1788 = vmatprep.subr.mxu0 0.0
  %1789 = vmatpush1.msra.mxu0 0.0
  %1790 = vmatprep.subr.mxu0 0.0
  %1791 = vmatpush1.msra.mxu0 0.0
  %1792 = vmatprep.subr.mxu0 0.0
  %1793 = vmatpush1.msra.mxu0 0.0
  %1794 = vmatprep.subr.mxu0 0.0
  %1795 = vmatpush1.msra.mxu0 0.0
  %1796 = vmatprep.subr.mxu0 0.0
  %1797 = vmatpush1.msra.mxu0 0.0
  %1798 = vmatprep.subr.mxu0 0.0
  %1799 = vmatpush1.msra.mxu0 0.0
  %1800 = vmatprep.subr.mxu0 0.0
  %1801 = vmatpush1.msra.mxu0 0.0
  %1802 = vmatprep.subr.mxu0 0.0
  %1803 = vmatpush1.msra.mxu0 0.0
  %1804 = vmatprep.subr.mxu0 0.0
  %1805 = vmatpush1.msra.mxu0 0.0
  %1806 = vmatprep.subr.mxu0 0.0
  %1807 = vmatpush1.msra.mxu0 0.0
  %1808 = vmatprep.subr.mxu0 0.0
  %1809 = vmatpush1.msra.mxu0 0.0
  %1810 = vmatprep.subr.mxu0 0.0
  %1811 = vmatpush1.msra.mxu0 0.0
  %1812 = vmatprep.subr.mxu0 0.0
  %1813 = vmatpush1.msra.mxu0 0.0
  %1814 = vmatprep.subr.mxu0 0.0
  %1815 = vmatpush1.msra.mxu0 0.0
  %1816 = vmatprep.subr.mxu0 0.0
  %1817 = vmatpush1.msra.mxu0 0.0
  %1818 = vmatprep.subr.mxu0 0.0
  %1819 = vmatpush1.msra.mxu0 0.0
  %1820 = vmatprep.subr.mxu0 0.0
  %1821 = vmatpush1.msra.mxu0 0.0
  %1822 = vmatprep.subr.mxu0 0.0
  %1823 = vmatpush1.msra.mxu0 0.0
  %1824 = vmatprep.subr.mxu0 0.0
  %1825 = vmatpush1.msra.mxu0 0.0
  %1826 = vmatprep.subr.mxu0 0.0
  %1827 = vmatpush1.msra.mxu0 0.0
  %1828 = vmatprep.subr.mxu0 0.0
  %1829 = vmatpush1.msra.mxu0 0.0
  %1830 = vmatprep.subr.mxu0 0.0
  %1831 = vmatpush1.msra.mxu0 0.0
  %1832 = vmatprep.subr.mxu0 0.0
  %1833 = vmatpush1.msra.mxu0 0.0
  %1834 = vmatprep.subr.mxu0 0.0
  %1835 = vmatpush1.msra.mxu0 0.0
  %1836 = vmatprep.subr.mxu0 0.0
  %1837 = vmatpush1.msra.mxu0 0.0
  %1838 = vmatprep.mubr.f32.mxu0 0.0
  %1839 = vmatmul.mubr.f32.gmra.mrb[0].mxu0 %v1759
  %v1840 = vpop.f32.mrb[0].mxu0
  %v1841 = vadd.f32 0.0, %v1840
  %v1842 = vpop.f32.mrb[0].mxu0
  %v1843 = vadd.f32 0.0, %v1842
  %1844 = vdwg.mxu0
  %1845 = vmatprep.subr.mxu0 %v1772
  %1846 = vmatpush1.msra.mxu0 %v1769
  %1847 = vmatprep.subr.mxu0 0.0
  %1848 = vmatpush1.msra.mxu0 0.0
  %1849 = vmatprep.subr.mxu0 0.0
  %1850 = vmatpush1.msra.mxu0 0.0
  %1851 = vmatprep.subr.mxu0 0.0
  %1852 = vmatpush1.msra.mxu0 0.0
  %1853 = vmatprep.subr.mxu0 0.0
  %1854 = vmatpush1.msra.mxu0 0.0
  %1855 = vmatprep.subr.mxu0 0.0
  %1856 = vmatpush1.msra.mxu0 0.0
  %1857 = vmatprep.subr.mxu0 0.0
  %1858 = vmatpush1.msra.mxu0 0.0
  %1859 = vmatprep.subr.mxu0 0.0
  %1860 = vmatpush1.msra.mxu0 0.0
  %1861 = vmatprep.subr.mxu0 0.0
  %1862 = vmatpush1.msra.mxu0 0.0
  %1863 = vmatprep.subr.mxu0 0.0
  %1864 = vmatpush1.msra.mxu0 0.0
  %1865 = vmatprep.subr.mxu0 0.0
  %1866 = vmatpush1.msra.mxu0 0.0
  %1867 = vmatprep.subr.mxu0 0.0
  %1868 = vmatpush1.msra.mxu0 0.0
  %1869 = vmatprep.subr.mxu0 0.0
  %1870 = vmatpush1.msra.mxu0 0.0
  %1871 = vmatprep.subr.mxu0 0.0
  %1872 = vmatpush1.msra.mxu0 0.0
  %1873 = vmatprep.subr.mxu0 0.0
  %1874 = vmatpush1.msra.mxu0 0.0
  %1875 = vmatprep.subr.mxu0 0.0
  %1876 = vmatpush1.msra.mxu0 0.0
  %1877 = vmatprep.subr.mxu0 0.0
  %1878 = vmatpush1.msra.mxu0 0.0
  %1879 = vmatprep.subr.mxu0 0.0
  %1880 = vmatpush1.msra.mxu0 0.0
  %1881 = vmatprep.subr.mxu0 0.0
  %1882 = vmatpush1.msra.mxu0 0.0
  %1883 = vmatprep.subr.mxu0 0.0
  %1884 = vmatpush1.msra.mxu0 0.0
  %1885 = vmatprep.subr.mxu0 0.0
  %1886 = vmatpush1.msra.mxu0 0.0
  %1887 = vmatprep.subr.mxu0 0.0
  %1888 = vmatpush1.msra.mxu0 0.0
  %1889 = vmatprep.subr.mxu0 0.0
  %1890 = vmatpush1.msra.mxu0 0.0
  %1891 = vmatprep.subr.mxu0 0.0
  %1892 = vmatpush1.msra.mxu0 0.0
  %1893 = vmatprep.subr.mxu0 0.0
  %1894 = vmatpush1.msra.mxu0 0.0
  %1895 = vmatprep.subr.mxu0 0.0
  %1896 = vmatpush1.msra.mxu0 0.0
  %1897 = vmatprep.subr.mxu0 0.0
  %1898 = vmatpush1.msra.mxu0 0.0
  %1899 = vmatprep.subr.mxu0 0.0
  %1900 = vmatpush1.msra.mxu0 0.0
  %1901 = vmatprep.subr.mxu0 0.0
  %1902 = vmatpush1.msra.mxu0 0.0
  %1903 = vmatprep.subr.mxu0 0.0
  %1904 = vmatpush1.msra.mxu0 0.0
  %1905 = vmatprep.subr.mxu0 0.0
  %1906 = vmatpush1.msra.mxu0 0.0
  %1907 = vmatprep.subr.mxu0 0.0
  %1908 = vmatpush1.msra.mxu0 0.0
  %1909 = vmatprep.mubr.f32.mxu0 0.0
  %1910 = vmatmul.mubr.f32.gmra.mrb[0].mxu0 %v1759
  %v1911 = vpop.f32.mrb[0].mxu0
  %v1912 = vadd.f32 0.0, %v1911
  %v1913 = vpop.f32.mrb[0].mxu0
  %v1914 = vadd.f32 0.0, %v1913
  %1915 = vdwg.mxu0
  %v1917 = vsel %vm1757, %v1725, 0
  %v1920 = vsel %vm1761, %v1737, 0
  %v1923 = vsel %vm1761, %v1736, 0
  %v1926 = vsel %vm1761, %v1735, 0
  %v1929 = vsel %vm1761, %v1734, 0
  %1931 = vmatprep.subr.mxu0 %v1923
  %1932 = vmatpush1.msra.mxu0 %v1920
  %1933 = vmatprep.subr.mxu0 0.0
  %1934 = vmatpush1.msra.mxu0 0.0
  %1935 = vmatprep.subr.mxu0 0.0
  %1936 = vmatpush1.msra.mxu0 0.0
  %1937 = vmatprep.subr.mxu0 0.0
  %1938 = vmatpush1.msra.mxu0 0.0
  %1939 = vmatprep.subr.mxu0 0.0
  %1940 = vmatpush1.msra.mxu0 0.0
  %1941 = vmatprep.subr.mxu0 0.0
  %1942 = vmatpush1.msra.mxu0 0.0
  %1943 = vmatprep.subr.mxu0 0.0
  %1944 = vmatpush1.msra.mxu0 0.0
  %1945 = vmatprep.subr.mxu0 0.0
  %1946 = vmatpush1.msra.mxu0 0.0
  %1947 = vmatprep.subr.mxu0 0.0
  %1948 = vmatpush1.msra.mxu0 0.0
  %1949 = vmatprep.subr.mxu0 0.0
  %1950 = vmatpush1.msra.mxu0 0.0
  %1951 = vmatprep.subr.mxu0 0.0
  %1952 = vmatpush1.msra.mxu0 0.0
  %1953 = vmatprep.subr.mxu0 0.0
  %1954 = vmatpush1.msra.mxu0 0.0
  %1955 = vmatprep.subr.mxu0 0.0
  %1956 = vmatpush1.msra.mxu0 0.0
  %1957 = vmatprep.subr.mxu0 0.0
  %1958 = vmatpush1.msra.mxu0 0.0
  %1959 = vmatprep.subr.mxu0 0.0
  %1960 = vmatpush1.msra.mxu0 0.0
  %1961 = vmatprep.subr.mxu0 0.0
  %1962 = vmatpush1.msra.mxu0 0.0
  %1963 = vmatprep.subr.mxu0 0.0
  %1964 = vmatpush1.msra.mxu0 0.0
  %1965 = vmatprep.subr.mxu0 0.0
  %1966 = vmatpush1.msra.mxu0 0.0
  %1967 = vmatprep.subr.mxu0 0.0
  %1968 = vmatpush1.msra.mxu0 0.0
  %1969 = vmatprep.subr.mxu0 0.0
  %1970 = vmatpush1.msra.mxu0 0.0
  %1971 = vmatprep.subr.mxu0 0.0
  %1972 = vmatpush1.msra.mxu0 0.0
  %1973 = vmatprep.subr.mxu0 0.0
  %1974 = vmatpush1.msra.mxu0 0.0
  %1975 = vmatprep.subr.mxu0 0.0
  %1976 = vmatpush1.msra.mxu0 0.0
  %1977 = vmatprep.subr.mxu0 0.0
  %1978 = vmatpush1.msra.mxu0 0.0
  %1979 = vmatprep.subr.mxu0 0.0
  %1980 = vmatpush1.msra.mxu0 0.0
  %1981 = vmatprep.subr.mxu0 0.0
  %1982 = vmatpush1.msra.mxu0 0.0
  %1983 = vmatprep.subr.mxu0 0.0
  %1984 = vmatpush1.msra.mxu0 0.0
  %1985 = vmatprep.subr.mxu0 0.0
  %1986 = vmatpush1.msra.mxu0 0.0
  %1987 = vmatprep.subr.mxu0 0.0
  %1988 = vmatpush1.msra.mxu0 0.0
  %1989 = vmatprep.subr.mxu0 0.0
  %1990 = vmatpush1.msra.mxu0 0.0
  %1991 = vmatprep.subr.mxu0 0.0
  %1992 = vmatpush1.msra.mxu0 0.0
  %1993 = vmatprep.subr.mxu0 0.0
  %1994 = vmatpush1.msra.mxu0 0.0
  %1995 = vmatprep.mubr.f32.mxu0 0.0
  %1996 = vmatmul.mubr.f32.gmra.mrb[0].mxu0 %v1917
  %v1997 = vpop.f32.mrb[0].mxu0
  %v1998 = vadd.f32 %v1841, %v1997
  %v1999 = vpop.f32.mrb[0].mxu0
  %v2000 = vadd.f32 %v1843, %v1999
  %2001 = vdwg.mxu0
  %2002 = vmatprep.subr.mxu0 %v1929
  %2003 = vmatpush1.msra.mxu0 %v1926
  %2004 = vmatprep.subr.mxu0 0.0
  %2005 = vmatpush1.msra.mxu0 0.0
  %2006 = vmatprep.subr.mxu0 0.0
  %2007 = vmatpush1.msra.mxu0 0.0
  %2008 = vmatprep.subr.mxu0 0.0
  %2009 = vmatpush1.msra.mxu0 0.0
  %2010 = vmatprep.subr.mxu0 0.0
  %2011 = vmatpush1.msra.mxu0 0.0
  %2012 = vmatprep.subr.mxu0 0.0
  %2013 = vmatpush1.msra.mxu0 0.0
  %2014 = vmatprep.subr.mxu0 0.0
  %2015 = vmatpush1.msra.mxu0 0.0
  %2016 = vmatprep.subr.mxu0 0.0
  %2017 = vmatpush1.msra.mxu0 0.0
  %2018 = vmatprep.subr.mxu0 0.0
  %2019 = vmatpush1.msra.mxu0 0.0
  %2020 = vmatprep.subr.mxu0 0.0
  %2021 = vmatpush1.msra.mxu0 0.0
  %2022 = vmatprep.subr.mxu0 0.0
  %2023 = vmatpush1.msra.mxu0 0.0
  %2024 = vmatprep.subr.mxu0 0.0
  %2025 = vmatpush1.msra.mxu0 0.0
  %2026 = vmatprep.subr.mxu0 0.0
  %2027 = vmatpush1.msra.mxu0 0.0
  %2028 = vmatprep.subr.mxu0 0.0
  %2029 = vmatpush1.msra.mxu0 0.0
  %2030 = vmatprep.subr.mxu0 0.0
  %2031 = vmatpush1.msra.mxu0 0.0
  %2032 = vmatprep.subr.mxu0 0.0
  %2033 = vmatpush1.msra.mxu0 0.0
  %2034 = vmatprep.subr.mxu0 0.0
  %2035 = vmatpush1.msra.mxu0 0.0
  %2036 = vmatprep.subr.mxu0 0.0
  %2037 = vmatpush1.msra.mxu0 0.0
  %2038 = vmatprep.subr.mxu0 0.0
  %2039 = vmatpush1.msra.mxu0 0.0
  %2040 = vmatprep.subr.mxu0 0.0
  %2041 = vmatpush1.msra.mxu0 0.0
  %2042 = vmatprep.subr.mxu0 0.0
  %2043 = vmatpush1.msra.mxu0 0.0
  %2044 = vmatprep.subr.mxu0 0.0
  %2045 = vmatpush1.msra.mxu0 0.0
  %2046 = vmatprep.subr.mxu0 0.0
  %2047 = vmatpush1.msra.mxu0 0.0
  %2048 = vmatprep.subr.mxu0 0.0
  %2049 = vmatpush1.msra.mxu0 0.0
  %2050 = vmatprep.subr.mxu0 0.0
  %2051 = vmatpush1.msra.mxu0 0.0
  %2052 = vmatprep.subr.mxu0 0.0
  %2053 = vmatpush1.msra.mxu0 0.0
  %2054 = vmatprep.subr.mxu0 0.0
  %2055 = vmatpush1.msra.mxu0 0.0
  %2056 = vmatprep.subr.mxu0 0.0
  %2057 = vmatpush1.msra.mxu0 0.0
  %2058 = vmatprep.subr.mxu0 0.0
  %2059 = vmatpush1.msra.mxu0 0.0
  %2060 = vmatprep.subr.mxu0 0.0
  %2061 = vmatpush1.msra.mxu0 0.0
  %2062 = vmatprep.subr.mxu0 0.0
  %2063 = vmatpush1.msra.mxu0 0.0
  %2064 = vmatprep.subr.mxu0 0.0
  %2065 = vmatpush1.msra.mxu0 0.0
  %2066 = vmatprep.mubr.f32.mxu0 0.0
  %2067 = vmatmul.mubr.f32.gmra.mrb[0].mxu0 %v1917
  %v2068 = vpop.f32.mrb[0].mxu0
  %v2069 = vadd.f32 %v1912, %v2068
  %v2070 = vpop.f32.mrb[0].mxu0
  %v2071 = vadd.f32 %v1914, %v2070
  %2072 = vdwg.mxu0
  %v2073 = vmul.f32 %v1998, %v202
  %v2074 = vmul.f32 %v2000, %v206
  %v2075 = vmul.f32 %v2069, %v210
  %v2076 = vmul.f32 %v2071, %v214
  %v2077 = vadd.f32 %v2073, 0.0
  %v2078 = vadd.f32 %v2074, 0.0
  %v2079 = vadd.f32 %v2075, 0.0
  %v2080 = vadd.f32 %v2076, 0.0
  %s2081 = scalar_lea.vmem %s3, 4
  %v2082 = vld [vmem:[%s2081] sm:$0xf]
  %2083 = vrot.lane.b32.xlu0 %v1721, 16
  %v2084 = vpop.permute.xlu0 %2083
  %2085 = vrot.lane.b32.xlu0 %v1722, 16
  %v2086 = vpop.permute.xlu0 %2085
  %2087 = vrot.lane.b32.xlu0 %v1723, 16
  %v2088 = vpop.permute.xlu0 %2087
  %2089 = vrot.lane.b32.xlu0 %v1724, 16
  %v2090 = vpop.permute.xlu0 %2089
  %v2091 = vsel %vm237, %v2088, %v2090
  %v2092 = vsel %vm237, %v2086, %v2088
  %v2093 = vsel %vm237, %v2084, %v2086
  %v2094 = vsel %vm237, %v2090, %v2084
  %s2095 = scalar_lea.vmem %s4, 4
  %v2096 = vld [vmem:[%s2095] sm:$0xf]
  %2097 = vrot.lane.b32.xlu0 %v33, 16
  %v2098 = vpop.permute.xlu0 %2097
  %2099 = vrot.lane.b32.xlu0 %v1741, 16
  %v2100 = vpop.permute.xlu0 %2099
  %2101 = vrot.lane.b32.xlu0 %v34, 16
  %v2102 = vpop.permute.xlu0 %2101
  %2103 = vrot.lane.b32.xlu0 %v1742, 16
  %v2104 = vpop.permute.xlu0 %2103
  %v2105 = vsel %vm237, %v2102, %v2104
  %v2106 = vsel %vm237, %v2100, %v2102
  %v2107 = vsel %vm237, %v2098, %v2100
  %v2108 = vsel %vm237, %v2104, %v2098
  %v2110 = vsel %vm1757, %v2096, 0
  %v2113 = vsel %vm1761, %v2108, 0
  %v2116 = vsel %vm1761, %v2107, 0
  %v2119 = vsel %vm1761, %v2106, 0
  %v2122 = vsel %vm1761, %v2105, 0
  %2124 = vmatprep.subr.mxu0 %v2116
  %2125 = vmatpush1.msra.mxu0 %v2113
  %2126 = vmatprep.subr.mxu0 0.0
  %2127 = vmatpush1.msra.mxu0 0.0
  %2128 = vmatprep.subr.mxu0 0.0
  %2129 = vmatpush1.msra.mxu0 0.0
  %2130 = vmatprep.subr.mxu0 0.0
  %2131 = vmatpush1.msra.mxu0 0.0
  %2132 = vmatprep.subr.mxu0 0.0
  %2133 = vmatpush1.msra.mxu0 0.0
  %2134 = vmatprep.subr.mxu0 0.0
  %2135 = vmatpush1.msra.mxu0 0.0
  %2136 = vmatprep.subr.mxu0 0.0
  %2137 = vmatpush1.msra.mxu0 0.0
  %2138 = vmatprep.subr.mxu0 0.0
  %2139 = vmatpush1.msra.mxu0 0.0
  %2140 = vmatprep.subr.mxu0 0.0
  %2141 = vmatpush1.msra.mxu0 0.0
  %2142 = vmatprep.subr.mxu0 0.0
  %2143 = vmatpush1.msra.mxu0 0.0
  %2144 = vmatprep.subr.mxu0 0.0
  %2145 = vmatpush1.msra.mxu0 0.0
  %2146 = vmatprep.subr.mxu0 0.0
  %2147 = vmatpush1.msra.mxu0 0.0
  %2148 = vmatprep.subr.mxu0 0.0
  %2149 = vmatpush1.msra.mxu0 0.0
  %2150 = vmatprep.subr.mxu0 0.0
  %2151 = vmatpush1.msra.mxu0 0.0
  %2152 = vmatprep.subr.mxu0 0.0
  %2153 = vmatpush1.msra.mxu0 0.0
  %2154 = vmatprep.subr.mxu0 0.0
  %2155 = vmatpush1.msra.mxu0 0.0
  %2156 = vmatprep.subr.mxu0 0.0
  %2157 = vmatpush1.msra.mxu0 0.0
  %2158 = vmatprep.subr.mxu0 0.0
  %2159 = vmatpush1.msra.mxu0 0.0
  %2160 = vmatprep.subr.mxu0 0.0
  %2161 = vmatpush1.msra.mxu0 0.0
  %2162 = vmatprep.subr.mxu0 0.0
  %2163 = vmatpush1.msra.mxu0 0.0
  %2164 = vmatprep.subr.mxu0 0.0
  %2165 = vmatpush1.msra.mxu0 0.0
  %2166 = vmatprep.subr.mxu0 0.0
  %2167 = vmatpush1.msra.mxu0 0.0
  %2168 = vmatprep.subr.mxu0 0.0
  %2169 = vmatpush1.msra.mxu0 0.0
  %2170 = vmatprep.subr.mxu0 0.0
  %2171 = vmatpush1.msra.mxu0 0.0
  %2172 = vmatprep.subr.mxu0 0.0
  %2173 = vmatpush1.msra.mxu0 0.0
  %2174 = vmatprep.subr.mxu0 0.0
  %2175 = vmatpush1.msra.mxu0 0.0
  %2176 = vmatprep.subr.mxu0 0.0
  %2177 = vmatpush1.msra.mxu0 0.0
  %2178 = vmatprep.subr.mxu0 0.0
  %2179 = vmatpush1.msra.mxu0 0.0
  %2180 = vmatprep.subr.mxu0 0.0
  %2181 = vmatpush1.msra.mxu0 0.0
  %2182 = vmatprep.subr.mxu0 0.0
  %2183 = vmatpush1.msra.mxu0 0.0
  %2184 = vmatprep.subr.mxu0 0.0
  %2185 = vmatpush1.msra.mxu0 0.0
  %2186 = vmatprep.subr.mxu0 0.0
  %2187 = vmatpush1.msra.mxu0 0.0
  %2188 = vmatprep.mubr.f32.mxu0 0.0
  %2189 = vmatmul.mubr.f32.gmra.mrb[0].mxu0 %v2110
  %v2190 = vpop.f32.mrb[0].mxu0
  %v2191 = vadd.f32 0.0, %v2190
  %v2192 = vpop.f32.mrb[0].mxu0
  %v2193 = vadd.f32 0.0, %v2192
  %2194 = vdwg.mxu0
  %2195 = vmatprep.subr.mxu0 %v2122
  %2196 = vmatpush1.msra.mxu0 %v2119
  %2197 = vmatprep.subr.mxu0 0.0
  %2198 = vmatpush1.msra.mxu0 0.0
  %2199 = vmatprep.subr.mxu0 0.0
  %2200 = vmatpush1.msra.mxu0 0.0
  %2201 = vmatprep.subr.mxu0 0.0
  %2202 = vmatpush1.msra.mxu0 0.0
  %2203 = vmatprep.subr.mxu0 0.0
  %2204 = vmatpush1.msra.mxu0 0.0
  %2205 = vmatprep.subr.mxu0 0.0
  %2206 = vmatpush1.msra.mxu0 0.0
  %2207 = vmatprep.subr.mxu0 0.0
  %2208 = vmatpush1.msra.mxu0 0.0
  %2209 = vmatprep.subr.mxu0 0.0
  %2210 = vmatpush1.msra.mxu0 0.0
  %2211 = vmatprep.subr.mxu0 0.0
  %2212 = vmatpush1.msra.mxu0 0.0
  %2213 = vmatprep.subr.mxu0 0.0
  %2214 = vmatpush1.msra.mxu0 0.0
  %2215 = vmatprep.subr.mxu0 0.0
  %2216 = vmatpush1.msra.mxu0 0.0
  %2217 = vmatprep.subr.mxu0 0.0
  %2218 = vmatpush1.msra.mxu0 0.0
  %2219 = vmatprep.subr.mxu0 0.0
  %2220 = vmatpush1.msra.mxu0 0.0
  %2221 = vmatprep.subr.mxu0 0.0
  %2222 = vmatpush1.msra.mxu0 0.0
  %2223 = vmatprep.subr.mxu0 0.0
  %2224 = vmatpush1.msra.mxu0 0.0
  %2225 = vmatprep.subr.mxu0 0.0
  %2226 = vmatpush1.msra.mxu0 0.0
  %2227 = vmatprep.subr.mxu0 0.0
  %2228 = vmatpush1.msra.mxu0 0.0
  %2229 = vmatprep.subr.mxu0 0.0
  %2230 = vmatpush1.msra.mxu0 0.0
  %2231 = vmatprep.subr.mxu0 0.0
  %2232 = vmatpush1.msra.mxu0 0.0
  %2233 = vmatprep.subr.mxu0 0.0
  %2234 = vmatpush1.msra.mxu0 0.0
  %2235 = vmatprep.subr.mxu0 0.0
  %2236 = vmatpush1.msra.mxu0 0.0
  %2237 = vmatprep.subr.mxu0 0.0
  %2238 = vmatpush1.msra.mxu0 0.0
  %2239 = vmatprep.subr.mxu0 0.0
  %2240 = vmatpush1.msra.mxu0 0.0
  %2241 = vmatprep.subr.mxu0 0.0
  %2242 = vmatpush1.msra.mxu0 0.0
  %2243 = vmatprep.subr.mxu0 0.0
  %2244 = vmatpush1.msra.mxu0 0.0
  %2245 = vmatprep.subr.mxu0 0.0
  %2246 = vmatpush1.msra.mxu0 0.0
  %2247 = vmatprep.subr.mxu0 0.0
  %2248 = vmatpush1.msra.mxu0 0.0
  %2249 = vmatprep.subr.mxu0 0.0
  %2250 = vmatpush1.msra.mxu0 0.0
  %2251 = vmatprep.subr.mxu0 0.0
  %2252 = vmatpush1.msra.mxu0 0.0
  %2253 = vmatprep.subr.mxu0 0.0
  %2254 = vmatpush1.msra.mxu0 0.0
  %2255 = vmatprep.subr.mxu0 0.0
  %2256 = vmatpush1.msra.mxu0 0.0
  %2257 = vmatprep.subr.mxu0 0.0
  %2258 = vmatpush1.msra.mxu0 0.0
  %2259 = vmatprep.mubr.f32.mxu0 0.0
  %2260 = vmatmul.mubr.f32.gmra.mrb[0].mxu0 %v2110
  %v2261 = vpop.f32.mrb[0].mxu0
  %v2262 = vadd.f32 0.0, %v2261
  %v2263 = vpop.f32.mrb[0].mxu0
  %v2264 = vadd.f32 0.0, %v2263
  %2265 = vdwg.mxu0
  %v2267 = vsel %vm1757, %v2082, 0
  %v2270 = vsel %vm1761, %v2094, 0
  %v2273 = vsel %vm1761, %v2093, 0
  %v2276 = vsel %vm1761, %v2092, 0
  %v2279 = vsel %vm1761, %v2091, 0
  %2281 = vmatprep.subr.mxu0 %v2273
  %2282 = vmatpush1.msra.mxu0 %v2270
  %2283 = vmatprep.subr.mxu0 0.0
  %2284 = vmatpush1.msra.mxu0 0.0
  %2285 = vmatprep.subr.mxu0 0.0
  %2286 = vmatpush1.msra.mxu0 0.0
  %2287 = vmatprep.subr.mxu0 0.0
  %2288 = vmatpush1.msra.mxu0 0.0
  %2289 = vmatprep.subr.mxu0 0.0
  %2290 = vmatpush1.msra.mxu0 0.0
  %2291 = vmatprep.subr.mxu0 0.0
  %2292 = vmatpush1.msra.mxu0 0.0
  %2293 = vmatprep.subr.mxu0 0.0
  %2294 = vmatpush1.msra.mxu0 0.0
  %2295 = vmatprep.subr.mxu0 0.0
  %2296 = vmatpush1.msra.mxu0 0.0
  %2297 = vmatprep.subr.mxu0 0.0
  %2298 = vmatpush1.msra.mxu0 0.0
  %2299 = vmatprep.subr.mxu0 0.0
  %2300 = vmatpush1.msra.mxu0 0.0
  %2301 = vmatprep.subr.mxu0 0.0
  %2302 = vmatpush1.msra.mxu0 0.0
  %2303 = vmatprep.subr.mxu0 0.0
  %2304 = vmatpush1.msra.mxu0 0.0
  %2305 = vmatprep.subr.mxu0 0.0
  %2306 = vmatpush1.msra.mxu0 0.0
  %2307 = vmatprep.subr.mxu0 0.0
  %2308 = vmatpush1.msra.mxu0 0.0
  %2309 = vmatprep.subr.mxu0 0.0
  %2310 = vmatpush1.msra.mxu0 0.0
  %2311 = vmatprep.subr.mxu0 0.0
  %2312 = vmatpush1.msra.mxu0 0.0
  %2313 = vmatprep.subr.mxu0 0.0
  %2314 = vmatpush1.msra.mxu0 0.0
  %2315 = vmatprep.subr.mxu0 0.0
  %2316 = vmatpush1.msra.mxu0 0.0
  %2317 = vmatprep.subr.mxu0 0.0
  %2318 = vmatpush1.msra.mxu0 0.0
  %2319 = vmatprep.subr.mxu0 0.0
  %2320 = vmatpush1.msra.mxu0 0.0
  %2321 = vmatprep.subr.mxu0 0.0
  %2322 = vmatpush1.msra.mxu0 0.0
  %2323 = vmatprep.subr.mxu0 0.0
  %2324 = vmatpush1.msra.mxu0 0.0
  %2325 = vmatprep.subr.mxu0 0.0
  %2326 = vmatpush1.msra.mxu0 0.0
  %2327 = vmatprep.subr.mxu0 0.0
  %2328 = vmatpush1.msra.mxu0 0.0
  %2329 = vmatprep.subr.mxu0 0.0
  %2330 = vmatpush1.msra.mxu0 0.0
  %2331 = vmatprep.subr.mxu0 0.0
  %2332 = vmatpush1.msra.mxu0 0.0
  %2333 = vmatprep.subr.mxu0 0.0
  %2334 = vmatpush1.msra.mxu0 0.0
  %2335 = vmatprep.subr.mxu0 0.0
  %2336 = vmatpush1.msra.mxu0 0.0
  %2337 = vmatprep.subr.mxu0 0.0
  %2338 = vmatpush1.msra.mxu0 0.0
  %2339 = vmatprep.subr.mxu0 0.0
  %2340 = vmatpush1.msra.mxu0 0.0
  %2341 = vmatprep.subr.mxu0 0.0
  %2342 = vmatpush1.msra.mxu0 0.0
  %2343 = vmatprep.subr.mxu0 0.0
  %2344 = vmatpush1.msra.mxu0 0.0
  %2345 = vmatprep.mubr.f32.mxu0 0.0
  %2346 = vmatmul.mubr.f32.gmra.mrb[0].mxu0 %v2267
  %v2347 = vpop.f32.mrb[0].mxu0
  %v2348 = vadd.f32 %v2191, %v2347
  %v2349 = vpop.f32.mrb[0].mxu0
  %v2350 = vadd.f32 %v2193, %v2349
  %2351 = vdwg.mxu0
  %2352 = vmatprep.subr.mxu0 %v2279
  %2353 = vmatpush1.msra.mxu0 %v2276
  %2354 = vmatprep.subr.mxu0 0.0
  %2355 = vmatpush1.msra.mxu0 0.0
  %2356 = vmatprep.subr.mxu0 0.0
  %2357 = vmatpush1.msra.mxu0 0.0
  %2358 = vmatprep.subr.mxu0 0.0
  %2359 = vmatpush1.msra.mxu0 0.0
  %2360 = vmatprep.subr.mxu0 0.0
  %2361 = vmatpush1.msra.mxu0 0.0
  %2362 = vmatprep.subr.mxu0 0.0
  %2363 = vmatpush1.msra.mxu0 0.0
  %2364 = vmatprep.subr.mxu0 0.0
  %2365 = vmatpush1.msra.mxu0 0.0
  %2366 = vmatprep.subr.mxu0 0.0
  %2367 = vmatpush1.msra.mxu0 0.0
  %2368 = vmatprep.subr.mxu0 0.0
  %2369 = vmatpush1.msra.mxu0 0.0
  %2370 = vmatprep.subr.mxu0 0.0
  %2371 = vmatpush1.msra.mxu0 0.0
  %2372 = vmatprep.subr.mxu0 0.0
  %2373 = vmatpush1.msra.mxu0 0.0
  %2374 = vmatprep.subr.mxu0 0.0
  %2375 = vmatpush1.msra.mxu0 0.0
  %2376 = vmatprep.subr.mxu0 0.0
  %2377 = vmatpush1.msra.mxu0 0.0
  %2378 = vmatprep.subr.mxu0 0.0
  %2379 = vmatpush1.msra.mxu0 0.0
  %2380 = vmatprep.subr.mxu0 0.0
  %2381 = vmatpush1.msra.mxu0 0.0
  %2382 = vmatprep.subr.mxu0 0.0
  %2383 = vmatpush1.msra.mxu0 0.0
  %2384 = vmatprep.subr.mxu0 0.0
  %2385 = vmatpush1.msra.mxu0 0.0
  %2386 = vmatprep.subr.mxu0 0.0
  %2387 = vmatpush1.msra.mxu0 0.0
  %2388 = vmatprep.subr.mxu0 0.0
  %2389 = vmatpush1.msra.mxu0 0.0
  %2390 = vmatprep.subr.mxu0 0.0
  %2391 = vmatpush1.msra.mxu0 0.0
  %2392 = vmatprep.subr.mxu0 0.0
  %2393 = vmatpush1.msra.mxu0 0.0
  %2394 = vmatprep.subr.mxu0 0.0
  %2395 = vmatpush1.msra.mxu0 0.0
  %2396 = vmatprep.subr.mxu0 0.0
  %2397 = vmatpush1.msra.mxu0 0.0
  %2398 = vmatprep.subr.mxu0 0.0
  %2399 = vmatpush1.msra.mxu0 0.0
  %2400 = vmatprep.subr.mxu0 0.0
  %2401 = vmatpush1.msra.mxu0 0.0
  %2402 = vmatprep.subr.mxu0 0.0
  %2403 = vmatpush1.msra.mxu0 0.0
  %2404 = vmatprep.subr.mxu0 0.0
  %2405 = vmatpush1.msra.mxu0 0.0
  %2406 = vmatprep.subr.mxu0 0.0
  %2407 = vmatpush1.msra.mxu0 0.0
  %2408 = vmatprep.subr.mxu0 0.0
  %2409 = vmatpush1.msra.mxu0 0.0
  %2410 = vmatprep.subr.mxu0 0.0
  %2411 = vmatpush1.msra.mxu0 0.0
  %2412 = vmatprep.subr.mxu0 0.0
  %2413 = vmatpush1.msra.mxu0 0.0
  %2414 = vmatprep.subr.mxu0 0.0
  %2415 = vmatpush1.msra.mxu0 0.0
  %2416 = vmatprep.mubr.f32.mxu0 0.0
  %2417 = vmatmul.mubr.f32.gmra.mrb[0].mxu0 %v2267
  %v2418 = vpop.f32.mrb[0].mxu0
  %v2419 = vadd.f32 %v2262, %v2418
  %v2420 = vpop.f32.mrb[0].mxu0
  %v2421 = vadd.f32 %v2264, %v2420
  %2422 = vdwg.mxu0
  %v2423 = vmul.f32 %v2348, %v393
  %v2424 = vmul.f32 %v2350, %v397
  %v2425 = vmul.f32 %v2419, %v401
  %v2426 = vmul.f32 %v2421, %v405
  %v2427 = vadd.f32 %v2077, %v2423
  %v2428 = vadd.f32 %v2078, %v2424
  %v2429 = vadd.f32 %v2079, %v2425
  %v2430 = vadd.f32 %v2080, %v2426
  %s2431 = scalar_lea.vmem %s3, 8
  %v2432 = vld [vmem:[%s2431] sm:$0xf]
  %2433 = vrot.lane.b32.xlu0 %v1721, 15
  %v2434 = vpop.permute.xlu0 %2433
  %2435 = vrot.lane.b32.xlu0 %v1722, 15
  %v2436 = vpop.permute.xlu0 %2435
  %2437 = vrot.lane.b32.xlu0 %v1723, 15
  %v2438 = vpop.permute.xlu0 %2437
  %2439 = vrot.lane.b32.xlu0 %v1724, 15
  %v2440 = vpop.permute.xlu0 %2439
  %v2441 = vsel %vm428, %v2438, %v2440
  %v2442 = vsel %vm428, %v2436, %v2438
  %v2443 = vsel %vm428, %v2434, %v2436
  %v2444 = vsel %vm428, %v2440, %v2434
  %s2445 = scalar_lea.vmem %s4, 8
  %v2446 = vld [vmem:[%s2445] sm:$0xf]
  %2447 = vrot.lane.b32.xlu0 %v33, 15
  %v2448 = vpop.permute.xlu0 %2447
  %2449 = vrot.lane.b32.xlu0 %v1741, 15
  %v2450 = vpop.permute.xlu0 %2449
  %2451 = vrot.lane.b32.xlu0 %v34, 15
  %v2452 = vpop.permute.xlu0 %2451
  %2453 = vrot.lane.b32.xlu0 %v1742, 15
  %v2454 = vpop.permute.xlu0 %2453
  %v2455 = vsel %vm428, %v2452, %v2454
  %v2456 = vsel %vm428, %v2450, %v2452
  %v2457 = vsel %vm428, %v2448, %v2450
  %v2458 = vsel %vm428, %v2454, %v2448
  %v2460 = vsel %vm1757, %v2446, 0
  %v2463 = vsel %vm1761, %v2458, 0
  %v2466 = vsel %vm1761, %v2457, 0
  %v2469 = vsel %vm1761, %v2456, 0
  %v2472 = vsel %vm1761, %v2455, 0
  %2474 = vmatprep.subr.mxu0 %v2466
  %2475 = vmatpush1.msra.mxu0 %v2463
  %2476 = vmatprep.subr.mxu0 0.0
  %2477 = vmatpush1.msra.mxu0 0.0
  %2478 = vmatprep.subr.mxu0 0.0
  %2479 = vmatpush1.msra.mxu0 0.0
  %2480 = vmatprep.subr.mxu0 0.0
  %2481 = vmatpush1.msra.mxu0 0.0
  %2482 = vmatprep.subr.mxu0 0.0
  %2483 = vmatpush1.msra.mxu0 0.0
  %2484 = vmatprep.subr.mxu0 0.0
  %2485 = vmatpush1.msra.mxu0 0.0
  %2486 = vmatprep.subr.mxu0 0.0
  %2487 = vmatpush1.msra.mxu0 0.0
  %2488 = vmatprep.subr.mxu0 0.0
  %2489 = vmatpush1.msra.mxu0 0.0
  %2490 = vmatprep.subr.mxu0 0.0
  %2491 = vmatpush1.msra.mxu0 0.0
  %2492 = vmatprep.subr.mxu0 0.0
  %2493 = vmatpush1.msra.mxu0 0.0
  %2494 = vmatprep.subr.mxu0 0.0
  %2495 = vmatpush1.msra.mxu0 0.0
  %2496 = vmatprep.subr.mxu0 0.0
  %2497 = vmatpush1.msra.mxu0 0.0
  %2498 = vmatprep.subr.mxu0 0.0
  %2499 = vmatpush1.msra.mxu0 0.0
  %2500 = vmatprep.subr.mxu0 0.0
  %2501 = vmatpush1.msra.mxu0 0.0
  %2502 = vmatprep.subr.mxu0 0.0
  %2503 = vmatpush1.msra.mxu0 0.0
  %2504 = vmatprep.subr.mxu0 0.0
  %2505 = vmatpush1.msra.mxu0 0.0
  %2506 = vmatprep.subr.mxu0 0.0
  %2507 = vmatpush1.msra.mxu0 0.0
  %2508 = vmatprep.subr.mxu0 0.0
  %2509 = vmatpush1.msra.mxu0 0.0
  %2510 = vmatprep.subr.mxu0 0.0
  %2511 = vmatpush1.msra.mxu0 0.0
  %2512 = vmatprep.subr.mxu0 0.0
  %2513 = vmatpush1.msra.mxu0 0.0
  %2514 = vmatprep.subr.mxu0 0.0
  %2515 = vmatpush1.msra.mxu0 0.0
  %2516 = vmatprep.subr.mxu0 0.0
  %2517 = vmatpush1.msra.mxu0 0.0
  %2518 = vmatprep.subr.mxu0 0.0
  %2519 = vmatpush1.msra.mxu0 0.0
  %2520 = vmatprep.subr.mxu0 0.0
  %2521 = vmatpush1.msra.mxu0 0.0
  %2522 = vmatprep.subr.mxu0 0.0
  %2523 = vmatpush1.msra.mxu0 0.0
  %2524 = vmatprep.subr.mxu0 0.0
  %2525 = vmatpush1.msra.mxu0 0.0
  %2526 = vmatprep.subr.mxu0 0.0
  %2527 = vmatpush1.msra.mxu0 0.0
  %2528 = vmatprep.subr.mxu0 0.0
  %2529 = vmatpush1.msra.mxu0 0.0
  %2530 = vmatprep.subr.mxu0 0.0
  %2531 = vmatpush1.msra.mxu0 0.0
  %2532 = vmatprep.subr.mxu0 0.0
  %2533 = vmatpush1.msra.mxu0 0.0
  %2534 = vmatprep.subr.mxu0 0.0
  %2535 = vmatpush1.msra.mxu0 0.0
  %2536 = vmatprep.subr.mxu0 0.0
  %2537 = vmatpush1.msra.mxu0 0.0
  %2538 = vmatprep.mubr.f32.mxu0 0.0
  %2539 = vmatmul.mubr.f32.gmra.mrb[0].mxu0 %v2460
  %v2540 = vpop.f32.mrb[0].mxu0
  %v2541 = vadd.f32 0.0, %v2540
  %v2542 = vpop.f32.mrb[0].mxu0
  %v2543 = vadd.f32 0.0, %v2542
  %2544 = vdwg.mxu0
  %2545 = vmatprep.subr.mxu0 %v2472
  %2546 = vmatpush1.msra.mxu0 %v2469
  %2547 = vmatprep.subr.mxu0 0.0
  %2548 = vmatpush1.msra.mxu0 0.0
  %2549 = vmatprep.subr.mxu0 0.0
  %2550 = vmatpush1.msra.mxu0 0.0
  %2551 = vmatprep.subr.mxu0 0.0
  %2552 = vmatpush1.msra.mxu0 0.0
  %2553 = vmatprep.subr.mxu0 0.0
  %2554 = vmatpush1.msra.mxu0 0.0
  %2555 = vmatprep.subr.mxu0 0.0
  %2556 = vmatpush1.msra.mxu0 0.0
  %2557 = vmatprep.subr.mxu0 0.0
  %2558 = vmatpush1.msra.mxu0 0.0
  %2559 = vmatprep.subr.mxu0 0.0
  %2560 = vmatpush1.msra.mxu0 0.0
  %2561 = vmatprep.subr.mxu0 0.0
  %2562 = vmatpush1.msra.mxu0 0.0
  %2563 = vmatprep.subr.mxu0 0.0
  %2564 = vmatpush1.msra.mxu0 0.0
  %2565 = vmatprep.subr.mxu0 0.0
  %2566 = vmatpush1.msra.mxu0 0.0
  %2567 = vmatprep.subr.mxu0 0.0
  %2568 = vmatpush1.msra.mxu0 0.0
  %2569 = vmatprep.subr.mxu0 0.0
  %2570 = vmatpush1.msra.mxu0 0.0
  %2571 = vmatprep.subr.mxu0 0.0
  %2572 = vmatpush1.msra.mxu0 0.0
  %2573 = vmatprep.subr.mxu0 0.0
  %2574 = vmatpush1.msra.mxu0 0.0
  %2575 = vmatprep.subr.mxu0 0.0
  %2576 = vmatpush1.msra.mxu0 0.0
  %2577 = vmatprep.subr.mxu0 0.0
  %2578 = vmatpush1.msra.mxu0 0.0
  %2579 = vmatprep.subr.mxu0 0.0
  %2580 = vmatpush1.msra.mxu0 0.0
  %2581 = vmatprep.subr.mxu0 0.0
  %2582 = vmatpush1.msra.mxu0 0.0
  %2583 = vmatprep.subr.mxu0 0.0
  %2584 = vmatpush1.msra.mxu0 0.0
  %2585 = vmatprep.subr.mxu0 0.0
  %2586 = vmatpush1.msra.mxu0 0.0
  %2587 = vmatprep.subr.mxu0 0.0
  %2588 = vmatpush1.msra.mxu0 0.0
  %2589 = vmatprep.subr.mxu0 0.0
  %2590 = vmatpush1.msra.mxu0 0.0
  %2591 = vmatprep.subr.mxu0 0.0
  %2592 = vmatpush1.msra.mxu0 0.0
  %2593 = vmatprep.subr.mxu0 0.0
  %2594 = vmatpush1.msra.mxu0 0.0
  %2595 = vmatprep.subr.mxu0 0.0
  %2596 = vmatpush1.msra.mxu0 0.0
  %2597 = vmatprep.subr.mxu0 0.0
  %2598 = vmatpush1.msra.mxu0 0.0
  %2599 = vmatprep.subr.mxu0 0.0
  %2600 = vmatpush1.msra.mxu0 0.0
  %2601 = vmatprep.subr.mxu0 0.0
  %2602 = vmatpush1.msra.mxu0 0.0
  %2603 = vmatprep.subr.mxu0 0.0
  %2604 = vmatpush1.msra.mxu0 0.0
  %2605 = vmatprep.subr.mxu0 0.0
  %2606 = vmatpush1.msra.mxu0 0.0
  %2607 = vmatprep.subr.mxu0 0.0
  %2608 = vmatpush1.msra.mxu0 0.0
  %2609 = vmatprep.mubr.f32.mxu0 0.0
  %2610 = vmatmul.mubr.f32.gmra.mrb[0].mxu0 %v2460
  %v2611 = vpop.f32.mrb[0].mxu0
  %v2612 = vadd.f32 0.0, %v2611
  %v2613 = vpop.f32.mrb[0].mxu0
  %v2614 = vadd.f32 0.0, %v2613
  %2615 = vdwg.mxu0
  %v2617 = vsel %vm1757, %v2432, 0
  %v2620 = vsel %vm1761, %v2444, 0
  %v2623 = vsel %vm1761, %v2443, 0
  %v2626 = vsel %vm1761, %v2442, 0
  %v2629 = vsel %vm1761, %v2441, 0
  %2631 = vmatprep.subr.mxu0 %v2623
  %2632 = vmatpush1.msra.mxu0 %v2620
  %2633 = vmatprep.subr.mxu0 0.0
  %2634 = vmatpush1.msra.mxu0 0.0
  %2635 = vmatprep.subr.mxu0 0.0
  %2636 = vmatpush1.msra.mxu0 0.0
  %2637 = vmatprep.subr.mxu0 0.0
  %2638 = vmatpush1.msra.mxu0 0.0
  %2639 = vmatprep.subr.mxu0 0.0
  %2640 = vmatpush1.msra.mxu0 0.0
  %2641 = vmatprep.subr.mxu0 0.0
  %2642 = vmatpush1.msra.mxu0 0.0
  %2643 = vmatprep.subr.mxu0 0.0
  %2644 = vmatpush1.msra.mxu0 0.0
  %2645 = vmatprep.subr.mxu0 0.0
  %2646 = vmatpush1.msra.mxu0 0.0
  %2647 = vmatprep.subr.mxu0 0.0
  %2648 = vmatpush1.msra.mxu0 0.0
  %2649 = vmatprep.subr.mxu0 0.0
  %2650 = vmatpush1.msra.mxu0 0.0
  %2651 = vmatprep.subr.mxu0 0.0
  %2652 = vmatpush1.msra.mxu0 0.0
  %2653 = vmatprep.subr.mxu0 0.0
  %2654 = vmatpush1.msra.mxu0 0.0
  %2655 = vmatprep.subr.mxu0 0.0
  %2656 = vmatpush1.msra.mxu0 0.0
  %2657 = vmatprep.subr.mxu0 0.0
  %2658 = vmatpush1.msra.mxu0 0.0
  %2659 = vmatprep.subr.mxu0 0.0
  %2660 = vmatpush1.msra.mxu0 0.0
  %2661 = vmatprep.subr.mxu0 0.0
  %2662 = vmatpush1.msra.mxu0 0.0
  %2663 = vmatprep.subr.mxu0 0.0
  %2664 = vmatpush1.msra.mxu0 0.0
  %2665 = vmatprep.subr.mxu0 0.0
  %2666 = vmatpush1.msra.mxu0 0.0
  %2667 = vmatprep.subr.mxu0 0.0
  %2668 = vmatpush1.msra.mxu0 0.0
  %2669 = vmatprep.subr.mxu0 0.0
  %2670 = vmatpush1.msra.mxu0 0.0
  %2671 = vmatprep.subr.mxu0 0.0
  %2672 = vmatpush1.msra.mxu0 0.0
  %2673 = vmatprep.subr.mxu0 0.0
  %2674 = vmatpush1.msra.mxu0 0.0
  %2675 = vmatprep.subr.mxu0 0.0
  %2676 = vmatpush1.msra.mxu0 0.0
  %2677 = vmatprep.subr.mxu0 0.0
  %2678 = vmatpush1.msra.mxu0 0.0
  %2679 = vmatprep.subr.mxu0 0.0
  %2680 = vmatpush1.msra.mxu0 0.0
  %2681 = vmatprep.subr.mxu0 0.0
  %2682 = vmatpush1.msra.mxu0 0.0
  %2683 = vmatprep.subr.mxu0 0.0
  %2684 = vmatpush1.msra.mxu0 0.0
  %2685 = vmatprep.subr.mxu0 0.0
  %2686 = vmatpush1.msra.mxu0 0.0
  %2687 = vmatprep.subr.mxu0 0.0
  %2688 = vmatpush1.msra.mxu0 0.0
  %2689 = vmatprep.subr.mxu0 0.0
  %2690 = vmatpush1.msra.mxu0 0.0
  %2691 = vmatprep.subr.mxu0 0.0
  %2692 = vmatpush1.msra.mxu0 0.0
  %2693 = vmatprep.subr.mxu0 0.0
  %2694 = vmatpush1.msra.mxu0 0.0
  %2695 = vmatprep.mubr.f32.mxu0 0.0
  %2696 = vmatmul.mubr.f32.gmra.mrb[0].mxu0 %v2617
  %v2697 = vpop.f32.mrb[0].mxu0
  %v2698 = vadd.f32 %v2541, %v2697
  %v2699 = vpop.f32.mrb[0].mxu0
  %v2700 = vadd.f32 %v2543, %v2699
  %2701 = vdwg.mxu0
  %2702 = vmatprep.subr.mxu0 %v2629
  %2703 = vmatpush1.msra.mxu0 %v2626
  %2704 = vmatprep.subr.mxu0 0.0
  %2705 = vmatpush1.msra.mxu0 0.0
  %2706 = vmatprep.subr.mxu0 0.0
  %2707 = vmatpush1.msra.mxu0 0.0
  %2708 = vmatprep.subr.mxu0 0.0
  %2709 = vmatpush1.msra.mxu0 0.0
  %2710 = vmatprep.subr.mxu0 0.0
  %2711 = vmatpush1.msra.mxu0 0.0
  %2712 = vmatprep.subr.mxu0 0.0
  %2713 = vmatpush1.msra.mxu0 0.0
  %2714 = vmatprep.subr.mxu0 0.0
  %2715 = vmatpush1.msra.mxu0 0.0
  %2716 = vmatprep.subr.mxu0 0.0
  %2717 = vmatpush1.msra.mxu0 0.0
  %2718 = vmatprep.subr.mxu0 0.0
  %2719 = vmatpush1.msra.mxu0 0.0
  %2720 = vmatprep.subr.mxu0 0.0
  %2721 = vmatpush1.msra.mxu0 0.0
  %2722 = vmatprep.subr.mxu0 0.0
  %2723 = vmatpush1.msra.mxu0 0.0
  %2724 = vmatprep.subr.mxu0 0.0
  %2725 = vmatpush1.msra.mxu0 0.0
  %2726 = vmatprep.subr.mxu0 0.0
  %2727 = vmatpush1.msra.mxu0 0.0
  %2728 = vmatprep.subr.mxu0 0.0
  %2729 = vmatpush1.msra.mxu0 0.0
  %2730 = vmatprep.subr.mxu0 0.0
  %2731 = vmatpush1.msra.mxu0 0.0
  %2732 = vmatprep.subr.mxu0 0.0
  %2733 = vmatpush1.msra.mxu0 0.0
  %2734 = vmatprep.subr.mxu0 0.0
  %2735 = vmatpush1.msra.mxu0 0.0
  %2736 = vmatprep.subr.mxu0 0.0
  %2737 = vmatpush1.msra.mxu0 0.0
  %2738 = vmatprep.subr.mxu0 0.0
  %2739 = vmatpush1.msra.mxu0 0.0
  %2740 = vmatprep.subr.mxu0 0.0
  %2741 = vmatpush1.msra.mxu0 0.0
  %2742 = vmatprep.subr.mxu0 0.0
  %2743 = vmatpush1.msra.mxu0 0.0
  %2744 = vmatprep.subr.mxu0 0.0
  %2745 = vmatpush1.msra.mxu0 0.0
  %2746 = vmatprep.subr.mxu0 0.0
  %2747 = vmatpush1.msra.mxu0 0.0
  %2748 = vmatprep.subr.mxu0 0.0
  %2749 = vmatpush1.msra.mxu0 0.0
  %2750 = vmatprep.subr.mxu0 0.0
  %2751 = vmatpush1.msra.mxu0 0.0
  %2752 = vmatprep.subr.mxu0 0.0
  %2753 = vmatpush1.msra.mxu0 0.0
  %2754 = vmatprep.subr.mxu0 0.0
  %2755 = vmatpush1.msra.mxu0 0.0
  %2756 = vmatprep.subr.mxu0 0.0
  %2757 = vmatpush1.msra.mxu0 0.0
  %2758 = vmatprep.subr.mxu0 0.0
  %2759 = vmatpush1.msra.mxu0 0.0
  %2760 = vmatprep.subr.mxu0 0.0
  %2761 = vmatpush1.msra.mxu0 0.0
  %2762 = vmatprep.subr.mxu0 0.0
  %2763 = vmatpush1.msra.mxu0 0.0
  %2764 = vmatprep.subr.mxu0 0.0
  %2765 = vmatpush1.msra.mxu0 0.0
  %2766 = vmatprep.mubr.f32.mxu0 0.0
  %2767 = vmatmul.mubr.f32.gmra.mrb[0].mxu0 %v2617
  %v2768 = vpop.f32.mrb[0].mxu0
  %v2769 = vadd.f32 %v2612, %v2768
  %v2770 = vpop.f32.mrb[0].mxu0
  %v2771 = vadd.f32 %v2614, %v2770
  %2772 = vdwg.mxu0
  %v2773 = vmul.f32 %v2698, %v584
  %v2774 = vmul.f32 %v2700, %v588
  %v2775 = vmul.f32 %v2769, %v592
  %v2776 = vmul.f32 %v2771, %v596
  %v2777 = vadd.f32 %v2427, %v2773
  %v2778 = vadd.f32 %v2428, %v2774
  %v2779 = vadd.f32 %v2429, %v2775
  %v2780 = vadd.f32 %v2430, %v2776
  %s2781 = scalar_lea.vmem %s3, 12
  %v2782 = vld [vmem:[%s2781] sm:$0xf]
  %2783 = vrot.lane.b32.xlu0 %v1721, 1
  %v2784 = vpop.permute.xlu0 %2783
  %2785 = vrot.lane.b32.xlu0 %v1722, 1
  %v2786 = vpop.permute.xlu0 %2785
  %2787 = vrot.lane.b32.xlu0 %v1723, 1
  %v2788 = vpop.permute.xlu0 %2787
  %2789 = vrot.lane.b32.xlu0 %v1724, 1
  %v2790 = vpop.permute.xlu0 %2789
  %v2791 = vsel %vm619, %v2788, %v2790
  %v2792 = vsel %vm619, %v2786, %v2788
  %v2793 = vsel %vm619, %v2784, %v2786
  %v2794 = vsel %vm619, %v2790, %v2784
  %s2795 = scalar_lea.vmem %s4, 12
  %v2796 = vld [vmem:[%s2795] sm:$0xf]
  %2797 = vrot.lane.b32.xlu0 %v33, 1
  %v2798 = vpop.permute.xlu0 %2797
  %2799 = vrot.lane.b32.xlu0 %v1741, 1
  %v2800 = vpop.permute.xlu0 %2799
  %2801 = vrot.lane.b32.xlu0 %v34, 1
  %v2802 = vpop.permute.xlu0 %2801
  %2803 = vrot.lane.b32.xlu0 %v1742, 1
  %v2804 = vpop.permute.xlu0 %2803
  %v2805 = vsel %vm619, %v2802, %v2804
  %v2806 = vsel %vm619, %v2800, %v2802
  %v2807 = vsel %vm619, %v2798, %v2800
  %v2808 = vsel %vm619, %v2804, %v2798
  %v2810 = vsel %vm1757, %v2796, 0
  %v2813 = vsel %vm1761, %v2808, 0
  %v2816 = vsel %vm1761, %v2807, 0
  %v2819 = vsel %vm1761, %v2806, 0
  %v2822 = vsel %vm1761, %v2805, 0
  %2824 = vmatprep.subr.mxu0 %v2816
  %2825 = vmatpush1.msra.mxu0 %v2813
  %2826 = vmatprep.subr.mxu0 0.0
  %2827 = vmatpush1.msra.mxu0 0.0
  %2828 = vmatprep.subr.mxu0 0.0
  %2829 = vmatpush1.msra.mxu0 0.0
  %2830 = vmatprep.subr.mxu0 0.0
  %2831 = vmatpush1.msra.mxu0 0.0
  %2832 = vmatprep.subr.mxu0 0.0
  %2833 = vmatpush1.msra.mxu0 0.0
  %2834 = vmatprep.subr.mxu0 0.0
  %2835 = vmatpush1.msra.mxu0 0.0
  %2836 = vmatprep.subr.mxu0 0.0
  %2837 = vmatpush1.msra.mxu0 0.0
  %2838 = vmatprep.subr.mxu0 0.0
  %2839 = vmatpush1.msra.mxu0 0.0
  %2840 = vmatprep.subr.mxu0 0.0
  %2841 = vmatpush1.msra.mxu0 0.0
  %2842 = vmatprep.subr.mxu0 0.0
  %2843 = vmatpush1.msra.mxu0 0.0
  %2844 = vmatprep.subr.mxu0 0.0
  %2845 = vmatpush1.msra.mxu0 0.0
  %2846 = vmatprep.subr.mxu0 0.0
  %2847 = vmatpush1.msra.mxu0 0.0
  %2848 = vmatprep.subr.mxu0 0.0
  %2849 = vmatpush1.msra.mxu0 0.0
  %2850 = vmatprep.subr.mxu0 0.0
  %2851 = vmatpush1.msra.mxu0 0.0
  %2852 = vmatprep.subr.mxu0 0.0
  %2853 = vmatpush1.msra.mxu0 0.0
  %2854 = vmatprep.subr.mxu0 0.0
  %2855 = vmatpush1.msra.mxu0 0.0
  %2856 = vmatprep.subr.mxu0 0.0
  %2857 = vmatpush1.msra.mxu0 0.0
  %2858 = vmatprep.subr.mxu0 0.0
  %2859 = vmatpush1.msra.mxu0 0.0
  %2860 = vmatprep.subr.mxu0 0.0
  %2861 = vmatpush1.msra.mxu0 0.0
  %2862 = vmatprep.subr.mxu0 0.0
  %2863 = vmatpush1.msra.mxu0 0.0
  %2864 = vmatprep.subr.mxu0 0.0
  %2865 = vmatpush1.msra.mxu0 0.0
  %2866 = vmatprep.subr.mxu0 0.0
  %2867 = vmatpush1.msra.mxu0 0.0
  %2868 = vmatprep.subr.mxu0 0.0
  %2869 = vmatpush1.msra.mxu0 0.0
  %2870 = vmatprep.subr.mxu0 0.0
  %2871 = vmatpush1.msra.mxu0 0.0
  %2872 = vmatprep.subr.mxu0 0.0
  %2873 = vmatpush1.msra.mxu0 0.0
  %2874 = vmatprep.subr.mxu0 0.0
  %2875 = vmatpush1.msra.mxu0 0.0
  %2876 = vmatprep.subr.mxu0 0.0
  %2877 = vmatpush1.msra.mxu0 0.0
  %2878 = vmatprep.subr.mxu0 0.0
  %2879 = vmatpush1.msra.mxu0 0.0
  %2880 = vmatprep.subr.mxu0 0.0
  %2881 = vmatpush1.msra.mxu0 0.0
  %2882 = vmatprep.subr.mxu0 0.0
  %2883 = vmatpush1.msra.mxu0 0.0
  %2884 = vmatprep.subr.mxu0 0.0
  %2885 = vmatpush1.msra.mxu0 0.0
  %2886 = vmatprep.subr.mxu0 0.0
  %2887 = vmatpush1.msra.mxu0 0.0
  %2888 = vmatprep.mubr.f32.mxu0 0.0
  %2889 = vmatmul.mubr.f32.gmra.mrb[0].mxu0 %v2810
  %v2890 = vpop.f32.mrb[0].mxu0
  %v2891 = vadd.f32 0.0, %v2890
  %v2892 = vpop.f32.mrb[0].mxu0
  %v2893 = vadd.f32 0.0, %v2892
  %2894 = vdwg.mxu0
  %2895 = vmatprep.subr.mxu0 %v2822
  %2896 = vmatpush1.msra.mxu0 %v2819
  %2897 = vmatprep.subr.mxu0 0.0
  %2898 = vmatpush1.msra.mxu0 0.0
  %2899 = vmatprep.subr.mxu0 0.0
  %2900 = vmatpush1.msra.mxu0 0.0
  %2901 = vmatprep.subr.mxu0 0.0
  %2902 = vmatpush1.msra.mxu0 0.0
  %2903 = vmatprep.subr.mxu0 0.0
  %2904 = vmatpush1.msra.mxu0 0.0
  %2905 = vmatprep.subr.mxu0 0.0
  %2906 = vmatpush1.msra.mxu0 0.0
  %2907 = vmatprep.subr.mxu0 0.0
  %2908 = vmatpush1.msra.mxu0 0.0
  %2909 = vmatprep.subr.mxu0 0.0
  %2910 = vmatpush1.msra.mxu0 0.0
  %2911 = vmatprep.subr.mxu0 0.0
  %2912 = vmatpush1.msra.mxu0 0.0
  %2913 = vmatprep.subr.mxu0 0.0
  %2914 = vmatpush1.msra.mxu0 0.0
  %2915 = vmatprep.subr.mxu0 0.0
  %2916 = vmatpush1.msra.mxu0 0.0
  %2917 = vmatprep.subr.mxu0 0.0
  %2918 = vmatpush1.msra.mxu0 0.0
  %2919 = vmatprep.subr.mxu0 0.0
  %2920 = vmatpush1.msra.mxu0 0.0
  %2921 = vmatprep.subr.mxu0 0.0
  %2922 = vmatpush1.msra.mxu0 0.0
  %2923 = vmatprep.subr.mxu0 0.0
  %2924 = vmatpush1.msra.mxu0 0.0
  %2925 = vmatprep.subr.mxu0 0.0
  %2926 = vmatpush1.msra.mxu0 0.0
  %2927 = vmatprep.subr.mxu0 0.0
  %2928 = vmatpush1.msra.mxu0 0.0
  %2929 = vmatprep.subr.mxu0 0.0
  %2930 = vmatpush1.msra.mxu0 0.0
  %2931 = vmatprep.subr.mxu0 0.0
  %2932 = vmatpush1.msra.mxu0 0.0
  %2933 = vmatprep.subr.mxu0 0.0
  %2934 = vmatpush1.msra.mxu0 0.0
  %2935 = vmatprep.subr.mxu0 0.0
  %2936 = vmatpush1.msra.mxu0 0.0
  %2937 = vmatprep.subr.mxu0 0.0
  %2938 = vmatpush1.msra.mxu0 0.0
  %2939 = vmatprep.subr.mxu0 0.0
  %2940 = vmatpush1.msra.mxu0 0.0
  %2941 = vmatprep.subr.mxu0 0.0
  %2942 = vmatpush1.msra.mxu0 0.0
  %2943 = vmatprep.subr.mxu0 0.0
  %2944 = vmatpush1.msra.mxu0 0.0
  %2945 = vmatprep.subr.mxu0 0.0
  %2946 = vmatpush1.msra.mxu0 0.0
  %2947 = vmatprep.subr.mxu0 0.0
  %2948 = vmatpush1.msra.mxu0 0.0
  %2949 = vmatprep.subr.mxu0 0.0
  %2950 = vmatpush1.msra.mxu0 0.0
  %2951 = vmatprep.subr.mxu0 0.0
  %2952 = vmatpush1.msra.mxu0 0.0
  %2953 = vmatprep.subr.mxu0 0.0
  %2954 = vmatpush1.msra.mxu0 0.0
  %2955 = vmatprep.subr.mxu0 0.0
  %2956 = vmatpush1.msra.mxu0 0.0
  %2957 = vmatprep.subr.mxu0 0.0
  %2958 = vmatpush1.msra.mxu0 0.0
  %2959 = vmatprep.mubr.f32.mxu0 0.0
  %2960 = vmatmul.mubr.f32.gmra.mrb[0].mxu0 %v2810
  %v2961 = vpop.f32.mrb[0].mxu0
  %v2962 = vadd.f32 0.0, %v2961
  %v2963 = vpop.f32.mrb[0].mxu0
  %v2964 = vadd.f32 0.0, %v2963
  %2965 = vdwg.mxu0
  %v2967 = vsel %vm1757, %v2782, 0
  %v2970 = vsel %vm1761, %v2794, 0
  %v2973 = vsel %vm1761, %v2793, 0
  %v2976 = vsel %vm1761, %v2792, 0
  %v2979 = vsel %vm1761, %v2791, 0
  %2981 = vmatprep.subr.mxu0 %v2973
  %2982 = vmatpush1.msra.mxu0 %v2970
  %2983 = vmatprep.subr.mxu0 0.0
  %2984 = vmatpush1.msra.mxu0 0.0
  %2985 = vmatprep.subr.mxu0 0.0
  %2986 = vmatpush1.msra.mxu0 0.0
  %2987 = vmatprep.subr.mxu0 0.0
  %2988 = vmatpush1.msra.mxu0 0.0
  %2989 = vmatprep.subr.mxu0 0.0
  %2990 = vmatpush1.msra.mxu0 0.0
  %2991 = vmatprep.subr.mxu0 0.0
  %2992 = vmatpush1.msra.mxu0 0.0
  %2993 = vmatprep.subr.mxu0 0.0
  %2994 = vmatpush1.msra.mxu0 0.0
  %2995 = vmatprep.subr.mxu0 0.0
  %2996 = vmatpush1.msra.mxu0 0.0
  %2997 = vmatprep.subr.mxu0 0.0
  %2998 = vmatpush1.msra.mxu0 0.0
  %2999 = vmatprep.subr.mxu0 0.0
  %3000 = vmatpush1.msra.mxu0 0.0
  %3001 = vmatprep.subr.mxu0 0.0
  %3002 = vmatpush1.msra.mxu0 0.0
  %3003 = vmatprep.subr.mxu0 0.0
  %3004 = vmatpush1.msra.mxu0 0.0
  %3005 = vmatprep.subr.mxu0 0.0
  %3006 = vmatpush1.msra.mxu0 0.0
  %3007 = vmatprep.subr.mxu0 0.0
  %3008 = vmatpush1.msra.mxu0 0.0
  %3009 = vmatprep.subr.mxu0 0.0
  %3010 = vmatpush1.msra.mxu0 0.0
  %3011 = vmatprep.subr.mxu0 0.0
  %3012 = vmatpush1.msra.mxu0 0.0
  %3013 = vmatprep.subr.mxu0 0.0
  %3014 = vmatpush1.msra.mxu0 0.0
  %3015 = vmatprep.subr.mxu0 0.0
  %3016 = vmatpush1.msra.mxu0 0.0
  %3017 = vmatprep.subr.mxu0 0.0
  %3018 = vmatpush1.msra.mxu0 0.0
  %3019 = vmatprep.subr.mxu0 0.0
  %3020 = vmatpush1.msra.mxu0 0.0
  %3021 = vmatprep.subr.mxu0 0.0
  %3022 = vmatpush1.msra.mxu0 0.0
  %3023 = vmatprep.subr.mxu0 0.0
  %3024 = vmatpush1.msra.mxu0 0.0
  %3025 = vmatprep.subr.mxu0 0.0
  %3026 = vmatpush1.msra.mxu0 0.0
  %3027 = vmatprep.subr.mxu0 0.0
  %3028 = vmatpush1.msra.mxu0 0.0
  %3029 = vmatprep.subr.mxu0 0.0
  %3030 = vmatpush1.msra.mxu0 0.0
  %3031 = vmatprep.subr.mxu0 0.0
  %3032 = vmatpush1.msra.mxu0 0.0
  %3033 = vmatprep.subr.mxu0 0.0
  %3034 = vmatpush1.msra.mxu0 0.0
  %3035 = vmatprep.subr.mxu0 0.0
  %3036 = vmatpush1.msra.mxu0 0.0
  %3037 = vmatprep.subr.mxu0 0.0
  %3038 = vmatpush1.msra.mxu0 0.0
  %3039 = vmatprep.subr.mxu0 0.0
  %3040 = vmatpush1.msra.mxu0 0.0
  %3041 = vmatprep.subr.mxu0 0.0
  %3042 = vmatpush1.msra.mxu0 0.0
  %3043 = vmatprep.subr.mxu0 0.0
  %3044 = vmatpush1.msra.mxu0 0.0
  %3045 = vmatprep.mubr.f32.mxu0 0.0
  %3046 = vmatmul.mubr.f32.gmra.mrb[0].mxu0 %v2967
  %v3047 = vpop.f32.mrb[0].mxu0
  %v3048 = vadd.f32 %v2891, %v3047
  %v3049 = vpop.f32.mrb[0].mxu0
  %v3050 = vadd.f32 %v2893, %v3049
  %3051 = vdwg.mxu0
  %3052 = vmatprep.subr.mxu0 %v2979
  %3053 = vmatpush1.msra.mxu0 %v2976
  %3054 = vmatprep.subr.mxu0 0.0
  %3055 = vmatpush1.msra.mxu0 0.0
  %3056 = vmatprep.subr.mxu0 0.0
  %3057 = vmatpush1.msra.mxu0 0.0
  %3058 = vmatprep.subr.mxu0 0.0
  %3059 = vmatpush1.msra.mxu0 0.0
  %3060 = vmatprep.subr.mxu0 0.0
  %3061 = vmatpush1.msra.mxu0 0.0
  %3062 = vmatprep.subr.mxu0 0.0
  %3063 = vmatpush1.msra.mxu0 0.0
  %3064 = vmatprep.subr.mxu0 0.0
  %3065 = vmatpush1.msra.mxu0 0.0
  %3066 = vmatprep.subr.mxu0 0.0
  %3067 = vmatpush1.msra.mxu0 0.0
  %3068 = vmatprep.subr.mxu0 0.0
  %3069 = vmatpush1.msra.mxu0 0.0
  %3070 = vmatprep.subr.mxu0 0.0
  %3071 = vmatpush1.msra.mxu0 0.0
  %3072 = vmatprep.subr.mxu0 0.0
  %3073 = vmatpush1.msra.mxu0 0.0
  %3074 = vmatprep.subr.mxu0 0.0
  %3075 = vmatpush1.msra.mxu0 0.0
  %3076 = vmatprep.subr.mxu0 0.0
  %3077 = vmatpush1.msra.mxu0 0.0
  %3078 = vmatprep.subr.mxu0 0.0
  %3079 = vmatpush1.msra.mxu0 0.0
  %3080 = vmatprep.subr.mxu0 0.0
  %3081 = vmatpush1.msra.mxu0 0.0
  %3082 = vmatprep.subr.mxu0 0.0
  %3083 = vmatpush1.msra.mxu0 0.0
  %3084 = vmatprep.subr.mxu0 0.0
  %3085 = vmatpush1.msra.mxu0 0.0
  %3086 = vmatprep.subr.mxu0 0.0
  %3087 = vmatpush1.msra.mxu0 0.0
  %3088 = vmatprep.subr.mxu0 0.0
  %3089 = vmatpush1.msra.mxu0 0.0
  %3090 = vmatprep.subr.mxu0 0.0
  %3091 = vmatpush1.msra.mxu0 0.0
  %3092 = vmatprep.subr.mxu0 0.0
  %3093 = vmatpush1.msra.mxu0 0.0
  %3094 = vmatprep.subr.mxu0 0.0
  %3095 = vmatpush1.msra.mxu0 0.0
  %3096 = vmatprep.subr.mxu0 0.0
  %3097 = vmatpush1.msra.mxu0 0.0
  %3098 = vmatprep.subr.mxu0 0.0
  %3099 = vmatpush1.msra.mxu0 0.0
  %3100 = vmatprep.subr.mxu0 0.0
  %3101 = vmatpush1.msra.mxu0 0.0
  %3102 = vmatprep.subr.mxu0 0.0
  %3103 = vmatpush1.msra.mxu0 0.0
  %3104 = vmatprep.subr.mxu0 0.0
  %3105 = vmatpush1.msra.mxu0 0.0
  %3106 = vmatprep.subr.mxu0 0.0
  %3107 = vmatpush1.msra.mxu0 0.0
  %3108 = vmatprep.subr.mxu0 0.0
  %3109 = vmatpush1.msra.mxu0 0.0
  %3110 = vmatprep.subr.mxu0 0.0
  %3111 = vmatpush1.msra.mxu0 0.0
  %3112 = vmatprep.subr.mxu0 0.0
  %3113 = vmatpush1.msra.mxu0 0.0
  %3114 = vmatprep.subr.mxu0 0.0
  %3115 = vmatpush1.msra.mxu0 0.0
  %3116 = vmatprep.mubr.f32.mxu0 0.0
  %3117 = vmatmul.mubr.f32.gmra.mrb[0].mxu0 %v2967
  %v3118 = vpop.f32.mrb[0].mxu0
  %v3119 = vadd.f32 %v2962, %v3118
  %v3120 = vpop.f32.mrb[0].mxu0
  %v3121 = vadd.f32 %v2964, %v3120
  %3122 = vdwg.mxu0
  %v3123 = vmul.f32 %v3048, %v775
  %v3124 = vmul.f32 %v3050, %v779
  %v3125 = vmul.f32 %v3119, %v783
  %v3126 = vmul.f32 %v3121, %v787
  %v3127 = vadd.f32 %v2777, %v3123
  %v3128 = vadd.f32 %v2778, %v3124
  %v3129 = vadd.f32 %v2779, %v3125
  %v3130 = vadd.f32 %v2780, %v3126
  %s3131 = scalar_lea.vmem %s3, 16
  %v3132 = vld [vmem:[%s3131] sm:$0xf]
  %s3133 = scalar_lea.vmem %s4, 16
  %v3134 = vld [vmem:[%s3133] sm:$0xf]
  %v3136 = vsel %vm1757, %v3134, 0
  %v3138 = vsel %vm1761, %v33, 0
  %v3140 = vsel %vm1761, %v1741, 0
  %v3142 = vsel %vm1761, %v34, 0
  %v3144 = vsel %vm1761, %v1742, 0
  %3146 = vmatprep.subr.mxu0 %v3140
  %3147 = vmatpush1.msra.mxu0 %v3138
  %3148 = vmatprep.subr.mxu0 0.0
  %3149 = vmatpush1.msra.mxu0 0.0
  %3150 = vmatprep.subr.mxu0 0.0
  %3151 = vmatpush1.msra.mxu0 0.0
  %3152 = vmatprep.subr.mxu0 0.0
  %3153 = vmatpush1.msra.mxu0 0.0
  %3154 = vmatprep.subr.mxu0 0.0
  %3155 = vmatpush1.msra.mxu0 0.0
  %3156 = vmatprep.subr.mxu0 0.0
  %3157 = vmatpush1.msra.mxu0 0.0
  %3158 = vmatprep.subr.mxu0 0.0
  %3159 = vmatpush1.msra.mxu0 0.0
  %3160 = vmatprep.subr.mxu0 0.0
  %3161 = vmatpush1.msra.mxu0 0.0
  %3162 = vmatprep.subr.mxu0 0.0
  %3163 = vmatpush1.msra.mxu0 0.0
  %3164 = vmatprep.subr.mxu0 0.0
  %3165 = vmatpush1.msra.mxu0 0.0
  %3166 = vmatprep.subr.mxu0 0.0
  %3167 = vmatpush1.msra.mxu0 0.0
  %3168 = vmatprep.subr.mxu0 0.0
  %3169 = vmatpush1.msra.mxu0 0.0
  %3170 = vmatprep.subr.mxu0 0.0
  %3171 = vmatpush1.msra.mxu0 0.0
  %3172 = vmatprep.subr.mxu0 0.0
  %3173 = vmatpush1.msra.mxu0 0.0
  %3174 = vmatprep.subr.mxu0 0.0
  %3175 = vmatpush1.msra.mxu0 0.0
  %3176 = vmatprep.subr.mxu0 0.0
  %3177 = vmatpush1.msra.mxu0 0.0
  %3178 = vmatprep.subr.mxu0 0.0
  %3179 = vmatpush1.msra.mxu0 0.0
  %3180 = vmatprep.subr.mxu0 0.0
  %3181 = vmatpush1.msra.mxu0 0.0
  %3182 = vmatprep.subr.mxu0 0.0
  %3183 = vmatpush1.msra.mxu0 0.0
  %3184 = vmatprep.subr.mxu0 0.0
  %3185 = vmatpush1.msra.mxu0 0.0
  %3186 = vmatprep.subr.mxu0 0.0
  %3187 = vmatpush1.msra.mxu0 0.0
  %3188 = vmatprep.subr.mxu0 0.0
  %3189 = vmatpush1.msra.mxu0 0.0
  %3190 = vmatprep.subr.mxu0 0.0
  %3191 = vmatpush1.msra.mxu0 0.0
  %3192 = vmatprep.subr.mxu0 0.0
  %3193 = vmatpush1.msra.mxu0 0.0
  %3194 = vmatprep.subr.mxu0 0.0
  %3195 = vmatpush1.msra.mxu0 0.0
  %3196 = vmatprep.subr.mxu0 0.0
  %3197 = vmatpush1.msra.mxu0 0.0
  %3198 = vmatprep.subr.mxu0 0.0
  %3199 = vmatpush1.msra.mxu0 0.0
  %3200 = vmatprep.subr.mxu0 0.0
  %3201 = vmatpush1.msra.mxu0 0.0
  %3202 = vmatprep.subr.mxu0 0.0
  %3203 = vmatpush1.msra.mxu0 0.0
  %3204 = vmatprep.subr.mxu0 0.0
  %3205 = vmatpush1.msra.mxu0 0.0
  %3206 = vmatprep.subr.mxu0 0.0
  %3207 = vmatpush1.msra.mxu0 0.0
  %3208 = vmatprep.subr.mxu0 0.0
  %3209 = vmatpush1.msra.mxu0 0.0
  %3210 = vmatprep.mubr.f32.mxu0 0.0
  %3211 = vmatmul.mubr.f32.gmra.mrb[0].mxu0 %v3136
  %v3212 = vpop.f32.mrb[0].mxu0
  %v3213 = vadd.f32 0.0, %v3212
  %v3214 = vpop.f32.mrb[0].mxu0
  %v3215 = vadd.f32 0.0, %v3214
  %3216 = vdwg.mxu0
  %3217 = vmatprep.subr.mxu0 %v3144
  %3218 = vmatpush1.msra.mxu0 %v3142
  %3219 = vmatprep.subr.mxu0 0.0
  %3220 = vmatpush1.msra.mxu0 0.0
  %3221 = vmatprep.subr.mxu0 0.0
  %3222 = vmatpush1.msra.mxu0 0.0
  %3223 = vmatprep.subr.mxu0 0.0
  %3224 = vmatpush1.msra.mxu0 0.0
  %3225 = vmatprep.subr.mxu0 0.0
  %3226 = vmatpush1.msra.mxu0 0.0
  %3227 = vmatprep.subr.mxu0 0.0
  %3228 = vmatpush1.msra.mxu0 0.0
  %3229 = vmatprep.subr.mxu0 0.0
  %3230 = vmatpush1.msra.mxu0 0.0
  %3231 = vmatprep.subr.mxu0 0.0
  %3232 = vmatpush1.msra.mxu0 0.0
  %3233 = vmatprep.subr.mxu0 0.0
  %3234 = vmatpush1.msra.mxu0 0.0
  %3235 = vmatprep.subr.mxu0 0.0
  %3236 = vmatpush1.msra.mxu0 0.0
  %3237 = vmatprep.subr.mxu0 0.0
  %3238 = vmatpush1.msra.mxu0 0.0
  %3239 = vmatprep.subr.mxu0 0.0
  %3240 = vmatpush1.msra.mxu0 0.0
  %3241 = vmatprep.subr.mxu0 0.0
  %3242 = vmatpush1.msra.mxu0 0.0
  %3243 = vmatprep.subr.mxu0 0.0
  %3244 = vmatpush1.msra.mxu0 0.0
  %3245 = vmatprep.subr.mxu0 0.0
  %3246 = vmatpush1.msra.mxu0 0.0
  %3247 = vmatprep.subr.mxu0 0.0
  %3248 = vmatpush1.msra.mxu0 0.0
  %3249 = vmatprep.subr.mxu0 0.0
  %3250 = vmatpush1.msra.mxu0 0.0
  %3251 = vmatprep.subr.mxu0 0.0
  %3252 = vmatpush1.msra.mxu0 0.0
  %3253 = vmatprep.subr.mxu0 0.0
  %3254 = vmatpush1.msra.mxu0 0.0
  %3255 = vmatprep.subr.mxu0 0.0
  %3256 = vmatpush1.msra.mxu0 0.0
  %3257 = vmatprep.subr.mxu0 0.0
  %3258 = vmatpush1.msra.mxu0 0.0
  %3259 = vmatprep.subr.mxu0 0.0
  %3260 = vmatpush1.msra.mxu0 0.0
  %3261 = vmatprep.subr.mxu0 0.0
  %3262 = vmatpush1.msra.mxu0 0.0
  %3263 = vmatprep.subr.mxu0 0.0
  %3264 = vmatpush1.msra.mxu0 0.0
  %3265 = vmatprep.subr.mxu0 0.0
  %3266 = vmatpush1.msra.mxu0 0.0
  %3267 = vmatprep.subr.mxu0 0.0
  %3268 = vmatpush1.msra.mxu0 0.0
  %3269 = vmatprep.subr.mxu0 0.0
  %3270 = vmatpush1.msra.mxu0 0.0
  %3271 = vmatprep.subr.mxu0 0.0
  %3272 = vmatpush1.msra.mxu0 0.0
  %3273 = vmatprep.subr.mxu0 0.0
  %3274 = vmatpush1.msra.mxu0 0.0
  %3275 = vmatprep.subr.mxu0 0.0
  %3276 = vmatpush1.msra.mxu0 0.0
  %3277 = vmatprep.subr.mxu0 0.0
  %3278 = vmatpush1.msra.mxu0 0.0
  %3279 = vmatprep.subr.mxu0 0.0
  %3280 = vmatpush1.msra.mxu0 0.0
  %3281 = vmatprep.mubr.f32.mxu0 0.0
  %3282 = vmatmul.mubr.f32.gmra.mrb[0].mxu0 %v3136
  %v3283 = vpop.f32.mrb[0].mxu0
  %v3284 = vadd.f32 0.0, %v3283
  %v3285 = vpop.f32.mrb[0].mxu0
  %v3286 = vadd.f32 0.0, %v3285
  %3287 = vdwg.mxu0
  %v3289 = vsel %vm1757, %v3132, 0
  %v3292 = vsel %vm1761, %v1721, 0
  %v3295 = vsel %vm1761, %v1722, 0
  %v3298 = vsel %vm1761, %v1723, 0
  %v3301 = vsel %vm1761, %v1724, 0
  %3303 = vmatprep.subr.mxu0 %v3295
  %3304 = vmatpush1.msra.mxu0 %v3292
  %3305 = vmatprep.subr.mxu0 0.0
  %3306 = vmatpush1.msra.mxu0 0.0
  %3307 = vmatprep.subr.mxu0 0.0
  %3308 = vmatpush1.msra.mxu0 0.0
  %3309 = vmatprep.subr.mxu0 0.0
  %3310 = vmatpush1.msra.mxu0 0.0
  %3311 = vmatprep.subr.mxu0 0.0
  %3312 = vmatpush1.msra.mxu0 0.0
  %3313 = vmatprep.subr.mxu0 0.0
  %3314 = vmatpush1.msra.mxu0 0.0
  %3315 = vmatprep.subr.mxu0 0.0
  %3316 = vmatpush1.msra.mxu0 0.0
  %3317 = vmatprep.subr.mxu0 0.0
  %3318 = vmatpush1.msra.mxu0 0.0
  %3319 = vmatprep.subr.mxu0 0.0
  %3320 = vmatpush1.msra.mxu0 0.0
  %3321 = vmatprep.subr.mxu0 0.0
  %3322 = vmatpush1.msra.mxu0 0.0
  %3323 = vmatprep.subr.mxu0 0.0
  %3324 = vmatpush1.msra.mxu0 0.0
  %3325 = vmatprep.subr.mxu0 0.0
  %3326 = vmatpush1.msra.mxu0 0.0
  %3327 = vmatprep.subr.mxu0 0.0
  %3328 = vmatpush1.msra.mxu0 0.0
  %3329 = vmatprep.subr.mxu0 0.0
  %3330 = vmatpush1.msra.mxu0 0.0
  %3331 = vmatprep.subr.mxu0 0.0
  %3332 = vmatpush1.msra.mxu0 0.0
  %3333 = vmatprep.subr.mxu0 0.0
  %3334 = vmatpush1.msra.mxu0 0.0
  %3335 = vmatprep.subr.mxu0 0.0
  %3336 = vmatpush1.msra.mxu0 0.0
  %3337 = vmatprep.subr.mxu0 0.0
  %3338 = vmatpush1.msra.mxu0 0.0
  %3339 = vmatprep.subr.mxu0 0.0
  %3340 = vmatpush1.msra.mxu0 0.0
  %3341 = vmatprep.subr.mxu0 0.0
  %3342 = vmatpush1.msra.mxu0 0.0
  %3343 = vmatprep.subr.mxu0 0.0
  %3344 = vmatpush1.msra.mxu0 0.0
  %3345 = vmatprep.subr.mxu0 0.0
  %3346 = vmatpush1.msra.mxu0 0.0
  %3347 = vmatprep.subr.mxu0 0.0
  %3348 = vmatpush1.msra.mxu0 0.0
  %3349 = vmatprep.subr.mxu0 0.0
  %3350 = vmatpush1.msra.mxu0 0.0
  %3351 = vmatprep.subr.mxu0 0.0
  %3352 = vmatpush1.msra.mxu0 0.0
  %3353 = vmatprep.subr.mxu0 0.0
  %3354 = vmatpush1.msra.mxu0 0.0
  %3355 = vmatprep.subr.mxu0 0.0
  %3356 = vmatpush1.msra.mxu0 0.0
  %3357 = vmatprep.subr.mxu0 0.0
  %3358 = vmatpush1.msra.mxu0 0.0
  %3359 = vmatprep.subr.mxu0 0.0
  %3360 = vmatpush1.msra.mxu0 0.0
  %3361 = vmatprep.subr.mxu0 0.0
  %3362 = vmatpush1.msra.mxu0 0.0
  %3363 = vmatprep.subr.mxu0 0.0
  %3364 = vmatpush1.msra.mxu0 0.0
  %3365 = vmatprep.subr.mxu0 0.0
  %3366 = vmatpush1.msra.mxu0 0.0
  %3367 = vmatprep.mubr.f32.mxu0 0.0
  %3368 = vmatmul.mubr.f32.gmra.mrb[0].mxu0 %v3289
  %v3369 = vpop.f32.mrb[0].mxu0
  %v3370 = vadd.f32 %v3213, %v3369
  %v3371 = vpop.f32.mrb[0].mxu0
  %v3372 = vadd.f32 %v3215, %v3371
  %3373 = vdwg.mxu0
  %3374 = vmatprep.subr.mxu0 %v3301
  %3375 = vmatpush1.msra.mxu0 %v3298
  %3376 = vmatprep.subr.mxu0 0.0
  %3377 = vmatpush1.msra.mxu0 0.0
  %3378 = vmatprep.subr.mxu0 0.0
  %3379 = vmatpush1.msra.mxu0 0.0
  %3380 = vmatprep.subr.mxu0 0.0
  %3381 = vmatpush1.msra.mxu0 0.0
  %3382 = vmatprep.subr.mxu0 0.0
  %3383 = vmatpush1.msra.mxu0 0.0
  %3384 = vmatprep.subr.mxu0 0.0
  %3385 = vmatpush1.msra.mxu0 0.0
  %3386 = vmatprep.subr.mxu0 0.0
  %3387 = vmatpush1.msra.mxu0 0.0
  %3388 = vmatprep.subr.mxu0 0.0
  %3389 = vmatpush1.msra.mxu0 0.0
  %3390 = vmatprep.subr.mxu0 0.0
  %3391 = vmatpush1.msra.mxu0 0.0
  %3392 = vmatprep.subr.mxu0 0.0
  %3393 = vmatpush1.msra.mxu0 0.0
  %3394 = vmatprep.subr.mxu0 0.0
  %3395 = vmatpush1.msra.mxu0 0.0
  %3396 = vmatprep.subr.mxu0 0.0
  %3397 = vmatpush1.msra.mxu0 0.0
  %3398 = vmatprep.subr.mxu0 0.0
  %3399 = vmatpush1.msra.mxu0 0.0
  %3400 = vmatprep.subr.mxu0 0.0
  %3401 = vmatpush1.msra.mxu0 0.0
  %3402 = vmatprep.subr.mxu0 0.0
  %3403 = vmatpush1.msra.mxu0 0.0
  %3404 = vmatprep.subr.mxu0 0.0
  %3405 = vmatpush1.msra.mxu0 0.0
  %3406 = vmatprep.subr.mxu0 0.0
  %3407 = vmatpush1.msra.mxu0 0.0
  %3408 = vmatprep.subr.mxu0 0.0
  %3409 = vmatpush1.msra.mxu0 0.0
  %3410 = vmatprep.subr.mxu0 0.0
  %3411 = vmatpush1.msra.mxu0 0.0
  %3412 = vmatprep.subr.mxu0 0.0
  %3413 = vmatpush1.msra.mxu0 0.0
  %3414 = vmatprep.subr.mxu0 0.0
  %3415 = vmatpush1.msra.mxu0 0.0
  %3416 = vmatprep.subr.mxu0 0.0
  %3417 = vmatpush1.msra.mxu0 0.0
  %3418 = vmatprep.subr.mxu0 0.0
  %3419 = vmatpush1.msra.mxu0 0.0
  %3420 = vmatprep.subr.mxu0 0.0
  %3421 = vmatpush1.msra.mxu0 0.0
  %3422 = vmatprep.subr.mxu0 0.0
  %3423 = vmatpush1.msra.mxu0 0.0
  %3424 = vmatprep.subr.mxu0 0.0
  %3425 = vmatpush1.msra.mxu0 0.0
  %3426 = vmatprep.subr.mxu0 0.0
  %3427 = vmatpush1.msra.mxu0 0.0
  %3428 = vmatprep.subr.mxu0 0.0
  %3429 = vmatpush1.msra.mxu0 0.0
  %3430 = vmatprep.subr.mxu0 0.0
  %3431 = vmatpush1.msra.mxu0 0.0
  %3432 = vmatprep.subr.mxu0 0.0
  %3433 = vmatpush1.msra.mxu0 0.0
  %3434 = vmatprep.subr.mxu0 0.0
  %3435 = vmatpush1.msra.mxu0 0.0
  %3436 = vmatprep.subr.mxu0 0.0
  %3437 = vmatpush1.msra.mxu0 0.0
  %3438 = vmatprep.mubr.f32.mxu0 0.0
  %3439 = vmatmul.mubr.f32.gmra.mrb[0].mxu0 %v3289
  %v3440 = vpop.f32.mrb[0].mxu0
  %v3441 = vadd.f32 %v3284, %v3440
  %v3442 = vpop.f32.mrb[0].mxu0
  %v3443 = vadd.f32 %v3286, %v3442
  %3444 = vdwg.mxu0
  %v3445 = vadd.f32 %v3127, %v3370
  %v3446 = vadd.f32 %v3128, %v3372
  %v3447 = vadd.f32 %v3129, %v3441
  %v3448 = vadd.f32 %v3130, %v3443
  %s3449 = scalar_lea.vmem %s3, 20
  %v3450 = vld [vmem:[%s3449] sm:$0xf]
  %3451 = vrot.lane.b32.xlu0 %v1721, 127
  %v3452 = vpop.permute.xlu0 %3451
  %3453 = vrot.lane.b32.xlu0 %v1722, 127
  %v3454 = vpop.permute.xlu0 %3453
  %3455 = vrot.lane.b32.xlu0 %v1723, 127
  %v3456 = vpop.permute.xlu0 %3455
  %3457 = vrot.lane.b32.xlu0 %v1724, 127
  %v3458 = vpop.permute.xlu0 %3457
  %v3459 = vsel %vm961, %v3456, %v3458
  %v3460 = vsel %vm961, %v3454, %v3456
  %v3461 = vsel %vm961, %v3452, %v3454
  %v3462 = vsel %vm961, %v3458, %v3452
  %s3463 = scalar_lea.vmem %s4, 20
  %v3464 = vld [vmem:[%s3463] sm:$0xf]
  %3465 = vrot.lane.b32.xlu0 %v33, 127
  %v3466 = vpop.permute.xlu0 %3465
  %3467 = vrot.lane.b32.xlu0 %v1741, 127
  %v3468 = vpop.permute.xlu0 %3467
  %3469 = vrot.lane.b32.xlu0 %v34, 127
  %v3470 = vpop.permute.xlu0 %3469
  %3471 = vrot.lane.b32.xlu0 %v1742, 127
  %v3472 = vpop.permute.xlu0 %3471
  %v3473 = vsel %vm961, %v3470, %v3472
  %v3474 = vsel %vm961, %v3468, %v3470
  %v3475 = vsel %vm961, %v3466, %v3468
  %v3476 = vsel %vm961, %v3472, %v3466
  %v3478 = vsel %vm1757, %v3464, 0
  %v3481 = vsel %vm1761, %v3475, 0
  %v3484 = vsel %vm1761, %v3474, 0
  %v3487 = vsel %vm1761, %v3473, 0
  %v3490 = vsel %vm1761, %v3476, 0
  %3492 = vmatprep.subr.mxu0 %v3484
  %3493 = vmatpush1.msra.mxu0 %v3481
  %3494 = vmatprep.subr.mxu0 0.0
  %3495 = vmatpush1.msra.mxu0 0.0
  %3496 = vmatprep.subr.mxu0 0.0
  %3497 = vmatpush1.msra.mxu0 0.0
  %3498 = vmatprep.subr.mxu0 0.0
  %3499 = vmatpush1.msra.mxu0 0.0
  %3500 = vmatprep.subr.mxu0 0.0
  %3501 = vmatpush1.msra.mxu0 0.0
  %3502 = vmatprep.subr.mxu0 0.0
  %3503 = vmatpush1.msra.mxu0 0.0
  %3504 = vmatprep.subr.mxu0 0.0
  %3505 = vmatpush1.msra.mxu0 0.0
  %3506 = vmatprep.subr.mxu0 0.0
  %3507 = vmatpush1.msra.mxu0 0.0
  %3508 = vmatprep.subr.mxu0 0.0
  %3509 = vmatpush1.msra.mxu0 0.0
  %3510 = vmatprep.subr.mxu0 0.0
  %3511 = vmatpush1.msra.mxu0 0.0
  %3512 = vmatprep.subr.mxu0 0.0
  %3513 = vmatpush1.msra.mxu0 0.0
  %3514 = vmatprep.subr.mxu0 0.0
  %3515 = vmatpush1.msra.mxu0 0.0
  %3516 = vmatprep.subr.mxu0 0.0
  %3517 = vmatpush1.msra.mxu0 0.0
  %3518 = vmatprep.subr.mxu0 0.0
  %3519 = vmatpush1.msra.mxu0 0.0
  %3520 = vmatprep.subr.mxu0 0.0
  %3521 = vmatpush1.msra.mxu0 0.0
  %3522 = vmatprep.subr.mxu0 0.0
  %3523 = vmatpush1.msra.mxu0 0.0
  %3524 = vmatprep.subr.mxu0 0.0
  %3525 = vmatpush1.msra.mxu0 0.0
  %3526 = vmatprep.subr.mxu0 0.0
  %3527 = vmatpush1.msra.mxu0 0.0
  %3528 = vmatprep.subr.mxu0 0.0
  %3529 = vmatpush1.msra.mxu0 0.0
  %3530 = vmatprep.subr.mxu0 0.0
  %3531 = vmatpush1.msra.mxu0 0.0
  %3532 = vmatprep.subr.mxu0 0.0
  %3533 = vmatpush1.msra.mxu0 0.0
  %3534 = vmatprep.subr.mxu0 0.0
  %3535 = vmatpush1.msra.mxu0 0.0
  %3536 = vmatprep.subr.mxu0 0.0
  %3537 = vmatpush1.msra.mxu0 0.0
  %3538 = vmatprep.subr.mxu0 0.0
  %3539 = vmatpush1.msra.mxu0 0.0
  %3540 = vmatprep.subr.mxu0 0.0
  %3541 = vmatpush1.msra.mxu0 0.0
  %3542 = vmatprep.subr.mxu0 0.0
  %3543 = vmatpush1.msra.mxu0 0.0
  %3544 = vmatprep.subr.mxu0 0.0
  %3545 = vmatpush1.msra.mxu0 0.0
  %3546 = vmatprep.subr.mxu0 0.0
  %3547 = vmatpush1.msra.mxu0 0.0
  %3548 = vmatprep.subr.mxu0 0.0
  %3549 = vmatpush1.msra.mxu0 0.0
  %3550 = vmatprep.subr.mxu0 0.0
  %3551 = vmatpush1.msra.mxu0 0.0
  %3552 = vmatprep.subr.mxu0 0.0
  %3553 = vmatpush1.msra.mxu0 0.0
  %3554 = vmatprep.subr.mxu0 0.0
  %3555 = vmatpush1.msra.mxu0 0.0
  %3556 = vmatprep.mubr.f32.mxu0 0.0
  %3557 = vmatmul.mubr.f32.gmra.mrb[0].mxu0 %v3478
  %v3558 = vpop.f32.mrb[0].mxu0
  %v3559 = vadd.f32 0.0, %v3558
  %v3560 = vpop.f32.mrb[0].mxu0
  %v3561 = vadd.f32 0.0, %v3560
  %3562 = vdwg.mxu0
  %3563 = vmatprep.subr.mxu0 %v3490
  %3564 = vmatpush1.msra.mxu0 %v3487
  %3565 = vmatprep.subr.mxu0 0.0
  %3566 = vmatpush1.msra.mxu0 0.0
  %3567 = vmatprep.subr.mxu0 0.0
  %3568 = vmatpush1.msra.mxu0 0.0
  %3569 = vmatprep.subr.mxu0 0.0
  %3570 = vmatpush1.msra.mxu0 0.0
  %3571 = vmatprep.subr.mxu0 0.0
  %3572 = vmatpush1.msra.mxu0 0.0
  %3573 = vmatprep.subr.mxu0 0.0
  %3574 = vmatpush1.msra.mxu0 0.0
  %3575 = vmatprep.subr.mxu0 0.0
  %3576 = vmatpush1.msra.mxu0 0.0
  %3577 = vmatprep.subr.mxu0 0.0
  %3578 = vmatpush1.msra.mxu0 0.0
  %3579 = vmatprep.subr.mxu0 0.0
  %3580 = vmatpush1.msra.mxu0 0.0
  %3581 = vmatprep.subr.mxu0 0.0
  %3582 = vmatpush1.msra.mxu0 0.0
  %3583 = vmatprep.subr.mxu0 0.0
  %3584 = vmatpush1.msra.mxu0 0.0
  %3585 = vmatprep.subr.mxu0 0.0
  %3586 = vmatpush1.msra.mxu0 0.0
  %3587 = vmatprep.subr.mxu0 0.0
  %3588 = vmatpush1.msra.mxu0 0.0
  %3589 = vmatprep.subr.mxu0 0.0
  %3590 = vmatpush1.msra.mxu0 0.0
  %3591 = vmatprep.subr.mxu0 0.0
  %3592 = vmatpush1.msra.mxu0 0.0
  %3593 = vmatprep.subr.mxu0 0.0
  %3594 = vmatpush1.msra.mxu0 0.0
  %3595 = vmatprep.subr.mxu0 0.0
  %3596 = vmatpush1.msra.mxu0 0.0
  %3597 = vmatprep.subr.mxu0 0.0
  %3598 = vmatpush1.msra.mxu0 0.0
  %3599 = vmatprep.subr.mxu0 0.0
  %3600 = vmatpush1.msra.mxu0 0.0
  %3601 = vmatprep.subr.mxu0 0.0
  %3602 = vmatpush1.msra.mxu0 0.0
  %3603 = vmatprep.subr.mxu0 0.0
  %3604 = vmatpush1.msra.mxu0 0.0
  %3605 = vmatprep.subr.mxu0 0.0
  %3606 = vmatpush1.msra.mxu0 0.0
  %3607 = vmatprep.subr.mxu0 0.0
  %3608 = vmatpush1.msra.mxu0 0.0
  %3609 = vmatprep.subr.mxu0 0.0
  %3610 = vmatpush1.msra.mxu0 0.0
  %3611 = vmatprep.subr.mxu0 0.0
  %3612 = vmatpush1.msra.mxu0 0.0
  %3613 = vmatprep.subr.mxu0 0.0
  %3614 = vmatpush1.msra.mxu0 0.0
  %3615 = vmatprep.subr.mxu0 0.0
  %3616 = vmatpush1.msra.mxu0 0.0
  %3617 = vmatprep.subr.mxu0 0.0
  %3618 = vmatpush1.msra.mxu0 0.0
  %3619 = vmatprep.subr.mxu0 0.0
  %3620 = vmatpush1.msra.mxu0 0.0
  %3621 = vmatprep.subr.mxu0 0.0
  %3622 = vmatpush1.msra.mxu0 0.0
  %3623 = vmatprep.subr.mxu0 0.0
  %3624 = vmatpush1.msra.mxu0 0.0
  %3625 = vmatprep.subr.mxu0 0.0
  %3626 = vmatpush1.msra.mxu0 0.0
  %3627 = vmatprep.mubr.f32.mxu0 0.0
  %3628 = vmatmul.mubr.f32.gmra.mrb[0].mxu0 %v3478
  %v3629 = vpop.f32.mrb[0].mxu0
  %v3630 = vadd.f32 0.0, %v3629
  %v3631 = vpop.f32.mrb[0].mxu0
  %v3632 = vadd.f32 0.0, %v3631
  %3633 = vdwg.mxu0
  %v3635 = vsel %vm1757, %v3450, 0
  %v3638 = vsel %vm1761, %v3461, 0
  %v3641 = vsel %vm1761, %v3460, 0
  %v3644 = vsel %vm1761, %v3459, 0
  %v3647 = vsel %vm1761, %v3462, 0
  %3649 = vmatprep.subr.mxu0 %v3641
  %3650 = vmatpush1.msra.mxu0 %v3638
  %3651 = vmatprep.subr.mxu0 0.0
  %3652 = vmatpush1.msra.mxu0 0.0
  %3653 = vmatprep.subr.mxu0 0.0
  %3654 = vmatpush1.msra.mxu0 0.0
  %3655 = vmatprep.subr.mxu0 0.0
  %3656 = vmatpush1.msra.mxu0 0.0
  %3657 = vmatprep.subr.mxu0 0.0
  %3658 = vmatpush1.msra.mxu0 0.0
  %3659 = vmatprep.subr.mxu0 0.0
  %3660 = vmatpush1.msra.mxu0 0.0
  %3661 = vmatprep.subr.mxu0 0.0
  %3662 = vmatpush1.msra.mxu0 0.0
  %3663 = vmatprep.subr.mxu0 0.0
  %3664 = vmatpush1.msra.mxu0 0.0
  %3665 = vmatprep.subr.mxu0 0.0
  %3666 = vmatpush1.msra.mxu0 0.0
  %3667 = vmatprep.subr.mxu0 0.0
  %3668 = vmatpush1.msra.mxu0 0.0
  %3669 = vmatprep.subr.mxu0 0.0
  %3670 = vmatpush1.msra.mxu0 0.0
  %3671 = vmatprep.subr.mxu0 0.0
  %3672 = vmatpush1.msra.mxu0 0.0
  %3673 = vmatprep.subr.mxu0 0.0
  %3674 = vmatpush1.msra.mxu0 0.0
  %3675 = vmatprep.subr.mxu0 0.0
  %3676 = vmatpush1.msra.mxu0 0.0
  %3677 = vmatprep.subr.mxu0 0.0
  %3678 = vmatpush1.msra.mxu0 0.0
  %3679 = vmatprep.subr.mxu0 0.0
  %3680 = vmatpush1.msra.mxu0 0.0
  %3681 = vmatprep.subr.mxu0 0.0
  %3682 = vmatpush1.msra.mxu0 0.0
  %3683 = vmatprep.subr.mxu0 0.0
  %3684 = vmatpush1.msra.mxu0 0.0
  %3685 = vmatprep.subr.mxu0 0.0
  %3686 = vmatpush1.msra.mxu0 0.0
  %3687 = vmatprep.subr.mxu0 0.0
  %3688 = vmatpush1.msra.mxu0 0.0
  %3689 = vmatprep.subr.mxu0 0.0
  %3690 = vmatpush1.msra.mxu0 0.0
  %3691 = vmatprep.subr.mxu0 0.0
  %3692 = vmatpush1.msra.mxu0 0.0
  %3693 = vmatprep.subr.mxu0 0.0
  %3694 = vmatpush1.msra.mxu0 0.0
  %3695 = vmatprep.subr.mxu0 0.0
  %3696 = vmatpush1.msra.mxu0 0.0
  %3697 = vmatprep.subr.mxu0 0.0
  %3698 = vmatpush1.msra.mxu0 0.0
  %3699 = vmatprep.subr.mxu0 0.0
  %3700 = vmatpush1.msra.mxu0 0.0
  %3701 = vmatprep.subr.mxu0 0.0
  %3702 = vmatpush1.msra.mxu0 0.0
  %3703 = vmatprep.subr.mxu0 0.0
  %3704 = vmatpush1.msra.mxu0 0.0
  %3705 = vmatprep.subr.mxu0 0.0
  %3706 = vmatpush1.msra.mxu0 0.0
  %3707 = vmatprep.subr.mxu0 0.0
  %3708 = vmatpush1.msra.mxu0 0.0
  %3709 = vmatprep.subr.mxu0 0.0
  %3710 = vmatpush1.msra.mxu0 0.0
  %3711 = vmatprep.subr.mxu0 0.0
  %3712 = vmatpush1.msra.mxu0 0.0
  %3713 = vmatprep.mubr.f32.mxu0 0.0
  %3714 = vmatmul.mubr.f32.gmra.mrb[0].mxu0 %v3635
  %v3715 = vpop.f32.mrb[0].mxu0
  %v3716 = vadd.f32 %v3559, %v3715
  %v3717 = vpop.f32.mrb[0].mxu0
  %v3718 = vadd.f32 %v3561, %v3717
  %3719 = vdwg.mxu0
  %3720 = vmatprep.subr.mxu0 %v3647
  %3721 = vmatpush1.msra.mxu0 %v3644
  %3722 = vmatprep.subr.mxu0 0.0
  %3723 = vmatpush1.msra.mxu0 0.0
  %3724 = vmatprep.subr.mxu0 0.0
  %3725 = vmatpush1.msra.mxu0 0.0
  %3726 = vmatprep.subr.mxu0 0.0
  %3727 = vmatpush1.msra.mxu0 0.0
  %3728 = vmatprep.subr.mxu0 0.0
  %3729 = vmatpush1.msra.mxu0 0.0
  %3730 = vmatprep.subr.mxu0 0.0
  %3731 = vmatpush1.msra.mxu0 0.0
  %3732 = vmatprep.subr.mxu0 0.0
  %3733 = vmatpush1.msra.mxu0 0.0
  %3734 = vmatprep.subr.mxu0 0.0
  %3735 = vmatpush1.msra.mxu0 0.0
  %3736 = vmatprep.subr.mxu0 0.0
  %3737 = vmatpush1.msra.mxu0 0.0
  %3738 = vmatprep.subr.mxu0 0.0
  %3739 = vmatpush1.msra.mxu0 0.0
  %3740 = vmatprep.subr.mxu0 0.0
  %3741 = vmatpush1.msra.mxu0 0.0
  %3742 = vmatprep.subr.mxu0 0.0
  %3743 = vmatpush1.msra.mxu0 0.0
  %3744 = vmatprep.subr.mxu0 0.0
  %3745 = vmatpush1.msra.mxu0 0.0
  %3746 = vmatprep.subr.mxu0 0.0
  %3747 = vmatpush1.msra.mxu0 0.0
  %3748 = vmatprep.subr.mxu0 0.0
  %3749 = vmatpush1.msra.mxu0 0.0
  %3750 = vmatprep.subr.mxu0 0.0
  %3751 = vmatpush1.msra.mxu0 0.0
  %3752 = vmatprep.subr.mxu0 0.0
  %3753 = vmatpush1.msra.mxu0 0.0
  %3754 = vmatprep.subr.mxu0 0.0
  %3755 = vmatpush1.msra.mxu0 0.0
  %3756 = vmatprep.subr.mxu0 0.0
  %3757 = vmatpush1.msra.mxu0 0.0
  %3758 = vmatprep.subr.mxu0 0.0
  %3759 = vmatpush1.msra.mxu0 0.0
  %3760 = vmatprep.subr.mxu0 0.0
  %3761 = vmatpush1.msra.mxu0 0.0
  %3762 = vmatprep.subr.mxu0 0.0
  %3763 = vmatpush1.msra.mxu0 0.0
  %3764 = vmatprep.subr.mxu0 0.0
  %3765 = vmatpush1.msra.mxu0 0.0
  %3766 = vmatprep.subr.mxu0 0.0
  %3767 = vmatpush1.msra.mxu0 0.0
  %3768 = vmatprep.subr.mxu0 0.0
  %3769 = vmatpush1.msra.mxu0 0.0
  %3770 = vmatprep.subr.mxu0 0.0
  %3771 = vmatpush1.msra.mxu0 0.0
  %3772 = vmatprep.subr.mxu0 0.0
  %3773 = vmatpush1.msra.mxu0 0.0
  %3774 = vmatprep.subr.mxu0 0.0
  %3775 = vmatpush1.msra.mxu0 0.0
  %3776 = vmatprep.subr.mxu0 0.0
  %3777 = vmatpush1.msra.mxu0 0.0
  %3778 = vmatprep.subr.mxu0 0.0
  %3779 = vmatpush1.msra.mxu0 0.0
  %3780 = vmatprep.subr.mxu0 0.0
  %3781 = vmatpush1.msra.mxu0 0.0
  %3782 = vmatprep.subr.mxu0 0.0
  %3783 = vmatpush1.msra.mxu0 0.0
  %3784 = vmatprep.mubr.f32.mxu0 0.0
  %3785 = vmatmul.mubr.f32.gmra.mrb[0].mxu0 %v3635
  %v3786 = vpop.f32.mrb[0].mxu0
  %v3787 = vadd.f32 %v3630, %v3786
  %v3788 = vpop.f32.mrb[0].mxu0
  %v3789 = vadd.f32 %v3632, %v3788
  %3790 = vdwg.mxu0
  %v3791 = vmul.f32 %v3716, %v1117
  %v3792 = vmul.f32 %v3718, %v1121
  %v3793 = vmul.f32 %v3787, %v1125
  %v3794 = vmul.f32 %v3789, %v1129
  %v3795 = vadd.f32 %v3445, %v3791
  %v3796 = vadd.f32 %v3446, %v3792
  %v3797 = vadd.f32 %v3447, %v3793
  %v3798 = vadd.f32 %v3448, %v3794
  %s3799 = scalar_lea.vmem %s3, 24
  %v3800 = vld [vmem:[%s3799] sm:$0xf]
  %3801 = vrot.lane.b32.xlu0 %v1721, 113
  %v3802 = vpop.permute.xlu0 %3801
  %3803 = vrot.lane.b32.xlu0 %v1722, 113
  %v3804 = vpop.permute.xlu0 %3803
  %3805 = vrot.lane.b32.xlu0 %v1723, 113
  %v3806 = vpop.permute.xlu0 %3805
  %3807 = vrot.lane.b32.xlu0 %v1724, 113
  %v3808 = vpop.permute.xlu0 %3807
  %v3809 = vsel %vm1152, %v3806, %v3808
  %v3810 = vsel %vm1152, %v3804, %v3806
  %v3811 = vsel %vm1152, %v3802, %v3804
  %v3812 = vsel %vm1152, %v3808, %v3802
  %s3813 = scalar_lea.vmem %s4, 24
  %v3814 = vld [vmem:[%s3813] sm:$0xf]
  %3815 = vrot.lane.b32.xlu0 %v33, 113
  %v3816 = vpop.permute.xlu0 %3815
  %3817 = vrot.lane.b32.xlu0 %v1741, 113
  %v3818 = vpop.permute.xlu0 %3817
  %3819 = vrot.lane.b32.xlu0 %v34, 113
  %v3820 = vpop.permute.xlu0 %3819
  %3821 = vrot.lane.b32.xlu0 %v1742, 113
  %v3822 = vpop.permute.xlu0 %3821
  %v3823 = vsel %vm1152, %v3820, %v3822
  %v3824 = vsel %vm1152, %v3818, %v3820
  %v3825 = vsel %vm1152, %v3816, %v3818
  %v3826 = vsel %vm1152, %v3822, %v3816
  %v3828 = vsel %vm1757, %v3814, 0
  %v3831 = vsel %vm1761, %v3825, 0
  %v3834 = vsel %vm1761, %v3824, 0
  %v3837 = vsel %vm1761, %v3823, 0
  %v3840 = vsel %vm1761, %v3826, 0
  %3842 = vmatprep.subr.mxu0 %v3834
  %3843 = vmatpush1.msra.mxu0 %v3831
  %3844 = vmatprep.subr.mxu0 0.0
  %3845 = vmatpush1.msra.mxu0 0.0
  %3846 = vmatprep.subr.mxu0 0.0
  %3847 = vmatpush1.msra.mxu0 0.0
  %3848 = vmatprep.subr.mxu0 0.0
  %3849 = vmatpush1.msra.mxu0 0.0
  %3850 = vmatprep.subr.mxu0 0.0
  %3851 = vmatpush1.msra.mxu0 0.0
  %3852 = vmatprep.subr.mxu0 0.0
  %3853 = vmatpush1.msra.mxu0 0.0
  %3854 = vmatprep.subr.mxu0 0.0
  %3855 = vmatpush1.msra.mxu0 0.0
  %3856 = vmatprep.subr.mxu0 0.0
  %3857 = vmatpush1.msra.mxu0 0.0
  %3858 = vmatprep.subr.mxu0 0.0
  %3859 = vmatpush1.msra.mxu0 0.0
  %3860 = vmatprep.subr.mxu0 0.0
  %3861 = vmatpush1.msra.mxu0 0.0
  %3862 = vmatprep.subr.mxu0 0.0
  %3863 = vmatpush1.msra.mxu0 0.0
  %3864 = vmatprep.subr.mxu0 0.0
  %3865 = vmatpush1.msra.mxu0 0.0
  %3866 = vmatprep.subr.mxu0 0.0
  %3867 = vmatpush1.msra.mxu0 0.0
  %3868 = vmatprep.subr.mxu0 0.0
  %3869 = vmatpush1.msra.mxu0 0.0
  %3870 = vmatprep.subr.mxu0 0.0
  %3871 = vmatpush1.msra.mxu0 0.0
  %3872 = vmatprep.subr.mxu0 0.0
  %3873 = vmatpush1.msra.mxu0 0.0
  %3874 = vmatprep.subr.mxu0 0.0
  %3875 = vmatpush1.msra.mxu0 0.0
  %3876 = vmatprep.subr.mxu0 0.0
  %3877 = vmatpush1.msra.mxu0 0.0
  %3878 = vmatprep.subr.mxu0 0.0
  %3879 = vmatpush1.msra.mxu0 0.0
  %3880 = vmatprep.subr.mxu0 0.0
  %3881 = vmatpush1.msra.mxu0 0.0
  %3882 = vmatprep.subr.mxu0 0.0
  %3883 = vmatpush1.msra.mxu0 0.0
  %3884 = vmatprep.subr.mxu0 0.0
  %3885 = vmatpush1.msra.mxu0 0.0
  %3886 = vmatprep.subr.mxu0 0.0
  %3887 = vmatpush1.msra.mxu0 0.0
  %3888 = vmatprep.subr.mxu0 0.0
  %3889 = vmatpush1.msra.mxu0 0.0
  %3890 = vmatprep.subr.mxu0 0.0
  %3891 = vmatpush1.msra.mxu0 0.0
  %3892 = vmatprep.subr.mxu0 0.0
  %3893 = vmatpush1.msra.mxu0 0.0
  %3894 = vmatprep.subr.mxu0 0.0
  %3895 = vmatpush1.msra.mxu0 0.0
  %3896 = vmatprep.subr.mxu0 0.0
  %3897 = vmatpush1.msra.mxu0 0.0
  %3898 = vmatprep.subr.mxu0 0.0
  %3899 = vmatpush1.msra.mxu0 0.0
  %3900 = vmatprep.subr.mxu0 0.0
  %3901 = vmatpush1.msra.mxu0 0.0
  %3902 = vmatprep.subr.mxu0 0.0
  %3903 = vmatpush1.msra.mxu0 0.0
  %3904 = vmatprep.subr.mxu0 0.0
  %3905 = vmatpush1.msra.mxu0 0.0
  %3906 = vmatprep.mubr.f32.mxu0 0.0
  %3907 = vmatmul.mubr.f32.gmra.mrb[0].mxu0 %v3828
  %v3908 = vpop.f32.mrb[0].mxu0
  %v3909 = vadd.f32 0.0, %v3908
  %v3910 = vpop.f32.mrb[0].mxu0
  %v3911 = vadd.f32 0.0, %v3910
  %3912 = vdwg.mxu0
  %3913 = vmatprep.subr.mxu0 %v3840
  %3914 = vmatpush1.msra.mxu0 %v3837
  %3915 = vmatprep.subr.mxu0 0.0
  %3916 = vmatpush1.msra.mxu0 0.0
  %3917 = vmatprep.subr.mxu0 0.0
  %3918 = vmatpush1.msra.mxu0 0.0
  %3919 = vmatprep.subr.mxu0 0.0
  %3920 = vmatpush1.msra.mxu0 0.0
  %3921 = vmatprep.subr.mxu0 0.0
  %3922 = vmatpush1.msra.mxu0 0.0
  %3923 = vmatprep.subr.mxu0 0.0
  %3924 = vmatpush1.msra.mxu0 0.0
  %3925 = vmatprep.subr.mxu0 0.0
  %3926 = vmatpush1.msra.mxu0 0.0
  %3927 = vmatprep.subr.mxu0 0.0
  %3928 = vmatpush1.msra.mxu0 0.0
  %3929 = vmatprep.subr.mxu0 0.0
  %3930 = vmatpush1.msra.mxu0 0.0
  %3931 = vmatprep.subr.mxu0 0.0
  %3932 = vmatpush1.msra.mxu0 0.0
  %3933 = vmatprep.subr.mxu0 0.0
  %3934 = vmatpush1.msra.mxu0 0.0
  %3935 = vmatprep.subr.mxu0 0.0
  %3936 = vmatpush1.msra.mxu0 0.0
  %3937 = vmatprep.subr.mxu0 0.0
  %3938 = vmatpush1.msra.mxu0 0.0
  %3939 = vmatprep.subr.mxu0 0.0
  %3940 = vmatpush1.msra.mxu0 0.0
  %3941 = vmatprep.subr.mxu0 0.0
  %3942 = vmatpush1.msra.mxu0 0.0
  %3943 = vmatprep.subr.mxu0 0.0
  %3944 = vmatpush1.msra.mxu0 0.0
  %3945 = vmatprep.subr.mxu0 0.0
  %3946 = vmatpush1.msra.mxu0 0.0
  %3947 = vmatprep.subr.mxu0 0.0
  %3948 = vmatpush1.msra.mxu0 0.0
  %3949 = vmatprep.subr.mxu0 0.0
  %3950 = vmatpush1.msra.mxu0 0.0
  %3951 = vmatprep.subr.mxu0 0.0
  %3952 = vmatpush1.msra.mxu0 0.0
  %3953 = vmatprep.subr.mxu0 0.0
  %3954 = vmatpush1.msra.mxu0 0.0
  %3955 = vmatprep.subr.mxu0 0.0
  %3956 = vmatpush1.msra.mxu0 0.0
  %3957 = vmatprep.subr.mxu0 0.0
  %3958 = vmatpush1.msra.mxu0 0.0
  %3959 = vmatprep.subr.mxu0 0.0
  %3960 = vmatpush1.msra.mxu0 0.0
  %3961 = vmatprep.subr.mxu0 0.0
  %3962 = vmatpush1.msra.mxu0 0.0
  %3963 = vmatprep.subr.mxu0 0.0
  %3964 = vmatpush1.msra.mxu0 0.0
  %3965 = vmatprep.subr.mxu0 0.0
  %3966 = vmatpush1.msra.mxu0 0.0
  %3967 = vmatprep.subr.mxu0 0.0
  %3968 = vmatpush1.msra.mxu0 0.0
  %3969 = vmatprep.subr.mxu0 0.0
  %3970 = vmatpush1.msra.mxu0 0.0
  %3971 = vmatprep.subr.mxu0 0.0
  %3972 = vmatpush1.msra.mxu0 0.0
  %3973 = vmatprep.subr.mxu0 0.0
  %3974 = vmatpush1.msra.mxu0 0.0
  %3975 = vmatprep.subr.mxu0 0.0
  %3976 = vmatpush1.msra.mxu0 0.0
  %3977 = vmatprep.mubr.f32.mxu0 0.0
  %3978 = vmatmul.mubr.f32.gmra.mrb[0].mxu0 %v3828
  %v3979 = vpop.f32.mrb[0].mxu0
  %v3980 = vadd.f32 0.0, %v3979
  %v3981 = vpop.f32.mrb[0].mxu0
  %v3982 = vadd.f32 0.0, %v3981
  %3983 = vdwg.mxu0
  %v3985 = vsel %vm1757, %v3800, 0
  %v3988 = vsel %vm1761, %v3811, 0
  %v3991 = vsel %vm1761, %v3810, 0
  %v3994 = vsel %vm1761, %v3809, 0
  %v3997 = vsel %vm1761, %v3812, 0
  %3999 = vmatprep.subr.mxu0 %v3991
  %4000 = vmatpush1.msra.mxu0 %v3988
  %4001 = vmatprep.subr.mxu0 0.0
  %4002 = vmatpush1.msra.mxu0 0.0
  %4003 = vmatprep.subr.mxu0 0.0
  %4004 = vmatpush1.msra.mxu0 0.0
  %4005 = vmatprep.subr.mxu0 0.0
  %4006 = vmatpush1.msra.mxu0 0.0
  %4007 = vmatprep.subr.mxu0 0.0
  %4008 = vmatpush1.msra.mxu0 0.0
  %4009 = vmatprep.subr.mxu0 0.0
  %4010 = vmatpush1.msra.mxu0 0.0
  %4011 = vmatprep.subr.mxu0 0.0
  %4012 = vmatpush1.msra.mxu0 0.0
  %4013 = vmatprep.subr.mxu0 0.0
  %4014 = vmatpush1.msra.mxu0 0.0
  %4015 = vmatprep.subr.mxu0 0.0
  %4016 = vmatpush1.msra.mxu0 0.0
  %4017 = vmatprep.subr.mxu0 0.0
  %4018 = vmatpush1.msra.mxu0 0.0
  %4019 = vmatprep.subr.mxu0 0.0
  %4020 = vmatpush1.msra.mxu0 0.0
  %4021 = vmatprep.subr.mxu0 0.0
  %4022 = vmatpush1.msra.mxu0 0.0
  %4023 = vmatprep.subr.mxu0 0.0
  %4024 = vmatpush1.msra.mxu0 0.0
  %4025 = vmatprep.subr.mxu0 0.0
  %4026 = vmatpush1.msra.mxu0 0.0
  %4027 = vmatprep.subr.mxu0 0.0
  %4028 = vmatpush1.msra.mxu0 0.0
  %4029 = vmatprep.subr.mxu0 0.0
  %4030 = vmatpush1.msra.mxu0 0.0
  %4031 = vmatprep.subr.mxu0 0.0
  %4032 = vmatpush1.msra.mxu0 0.0
  %4033 = vmatprep.subr.mxu0 0.0
  %4034 = vmatpush1.msra.mxu0 0.0
  %4035 = vmatprep.subr.mxu0 0.0
  %4036 = vmatpush1.msra.mxu0 0.0
  %4037 = vmatprep.subr.mxu0 0.0
  %4038 = vmatpush1.msra.mxu0 0.0
  %4039 = vmatprep.subr.mxu0 0.0
  %4040 = vmatpush1.msra.mxu0 0.0
  %4041 = vmatprep.subr.mxu0 0.0
  %4042 = vmatpush1.msra.mxu0 0.0
  %4043 = vmatprep.subr.mxu0 0.0
  %4044 = vmatpush1.msra.mxu0 0.0
  %4045 = vmatprep.subr.mxu0 0.0
  %4046 = vmatpush1.msra.mxu0 0.0
  %4047 = vmatprep.subr.mxu0 0.0
  %4048 = vmatpush1.msra.mxu0 0.0
  %4049 = vmatprep.subr.mxu0 0.0
  %4050 = vmatpush1.msra.mxu0 0.0
  %4051 = vmatprep.subr.mxu0 0.0
  %4052 = vmatpush1.msra.mxu0 0.0
  %4053 = vmatprep.subr.mxu0 0.0
  %4054 = vmatpush1.msra.mxu0 0.0
  %4055 = vmatprep.subr.mxu0 0.0
  %4056 = vmatpush1.msra.mxu0 0.0
  %4057 = vmatprep.subr.mxu0 0.0
  %4058 = vmatpush1.msra.mxu0 0.0
  %4059 = vmatprep.subr.mxu0 0.0
  %4060 = vmatpush1.msra.mxu0 0.0
  %4061 = vmatprep.subr.mxu0 0.0
  %4062 = vmatpush1.msra.mxu0 0.0
  %4063 = vmatprep.mubr.f32.mxu0 0.0
  %4064 = vmatmul.mubr.f32.gmra.mrb[0].mxu0 %v3985
  %v4065 = vpop.f32.mrb[0].mxu0
  %v4066 = vadd.f32 %v3909, %v4065
  %v4067 = vpop.f32.mrb[0].mxu0
  %v4068 = vadd.f32 %v3911, %v4067
  %4069 = vdwg.mxu0
  %4070 = vmatprep.subr.mxu0 %v3997
  %4071 = vmatpush1.msra.mxu0 %v3994
  %4072 = vmatprep.subr.mxu0 0.0
  %4073 = vmatpush1.msra.mxu0 0.0
  %4074 = vmatprep.subr.mxu0 0.0
  %4075 = vmatpush1.msra.mxu0 0.0
  %4076 = vmatprep.subr.mxu0 0.0
  %4077 = vmatpush1.msra.mxu0 0.0
  %4078 = vmatprep.subr.mxu0 0.0
  %4079 = vmatpush1.msra.mxu0 0.0
  %4080 = vmatprep.subr.mxu0 0.0
  %4081 = vmatpush1.msra.mxu0 0.0
  %4082 = vmatprep.subr.mxu0 0.0
  %4083 = vmatpush1.msra.mxu0 0.0
  %4084 = vmatprep.subr.mxu0 0.0
  %4085 = vmatpush1.msra.mxu0 0.0
  %4086 = vmatprep.subr.mxu0 0.0
  %4087 = vmatpush1.msra.mxu0 0.0
  %4088 = vmatprep.subr.mxu0 0.0
  %4089 = vmatpush1.msra.mxu0 0.0
  %4090 = vmatprep.subr.mxu0 0.0
  %4091 = vmatpush1.msra.mxu0 0.0
  %4092 = vmatprep.subr.mxu0 0.0
  %4093 = vmatpush1.msra.mxu0 0.0
  %4094 = vmatprep.subr.mxu0 0.0
  %4095 = vmatpush1.msra.mxu0 0.0
  %4096 = vmatprep.subr.mxu0 0.0
  %4097 = vmatpush1.msra.mxu0 0.0
  %4098 = vmatprep.subr.mxu0 0.0
  %4099 = vmatpush1.msra.mxu0 0.0
  %4100 = vmatprep.subr.mxu0 0.0
  %4101 = vmatpush1.msra.mxu0 0.0
  %4102 = vmatprep.subr.mxu0 0.0
  %4103 = vmatpush1.msra.mxu0 0.0
  %4104 = vmatprep.subr.mxu0 0.0
  %4105 = vmatpush1.msra.mxu0 0.0
  %4106 = vmatprep.subr.mxu0 0.0
  %4107 = vmatpush1.msra.mxu0 0.0
  %4108 = vmatprep.subr.mxu0 0.0
  %4109 = vmatpush1.msra.mxu0 0.0
  %4110 = vmatprep.subr.mxu0 0.0
  %4111 = vmatpush1.msra.mxu0 0.0
  %4112 = vmatprep.subr.mxu0 0.0
  %4113 = vmatpush1.msra.mxu0 0.0
  %4114 = vmatprep.subr.mxu0 0.0
  %4115 = vmatpush1.msra.mxu0 0.0
  %4116 = vmatprep.subr.mxu0 0.0
  %4117 = vmatpush1.msra.mxu0 0.0
  %4118 = vmatprep.subr.mxu0 0.0
  %4119 = vmatpush1.msra.mxu0 0.0
  %4120 = vmatprep.subr.mxu0 0.0
  %4121 = vmatpush1.msra.mxu0 0.0
  %4122 = vmatprep.subr.mxu0 0.0
  %4123 = vmatpush1.msra.mxu0 0.0
  %4124 = vmatprep.subr.mxu0 0.0
  %4125 = vmatpush1.msra.mxu0 0.0
  %4126 = vmatprep.subr.mxu0 0.0
  %4127 = vmatpush1.msra.mxu0 0.0
  %4128 = vmatprep.subr.mxu0 0.0
  %4129 = vmatpush1.msra.mxu0 0.0
  %4130 = vmatprep.subr.mxu0 0.0
  %4131 = vmatpush1.msra.mxu0 0.0
  %4132 = vmatprep.subr.mxu0 0.0
  %4133 = vmatpush1.msra.mxu0 0.0
  %4134 = vmatprep.mubr.f32.mxu0 0.0
  %4135 = vmatmul.mubr.f32.gmra.mrb[0].mxu0 %v3985
  %v4136 = vpop.f32.mrb[0].mxu0
  %v4137 = vadd.f32 %v3980, %v4136
  %v4138 = vpop.f32.mrb[0].mxu0
  %v4139 = vadd.f32 %v3982, %v4138
  %4140 = vdwg.mxu0
  %v4141 = vmul.f32 %v4066, %v1308
  %v4142 = vmul.f32 %v4068, %v1312
  %v4143 = vmul.f32 %v4137, %v1316
  %v4144 = vmul.f32 %v4139, %v1320
  %v4145 = vadd.f32 %v3795, %v4141
  %v4146 = vadd.f32 %v3796, %v4142
  %v4147 = vadd.f32 %v3797, %v4143
  %v4148 = vadd.f32 %v3798, %v4144
  %s4149 = scalar_lea.vmem %s3, 28
  %v4150 = vld [vmem:[%s4149] sm:$0xf]
  %4151 = vrot.lane.b32.xlu0 %v1721, 112
  %v4152 = vpop.permute.xlu0 %4151
  %4153 = vrot.lane.b32.xlu0 %v1722, 112
  %v4154 = vpop.permute.xlu0 %4153
  %4155 = vrot.lane.b32.xlu0 %v1723, 112
  %v4156 = vpop.permute.xlu0 %4155
  %4157 = vrot.lane.b32.xlu0 %v1724, 112
  %v4158 = vpop.permute.xlu0 %4157
  %v4159 = vsel %vm1343, %v4156, %v4158
  %v4160 = vsel %vm1343, %v4154, %v4156
  %v4161 = vsel %vm1343, %v4152, %v4154
  %v4162 = vsel %vm1343, %v4158, %v4152
  %s4163 = scalar_lea.vmem %s4, 28
  %v4164 = vld [vmem:[%s4163] sm:$0xf]
  %4165 = vrot.lane.b32.xlu0 %v33, 112
  %v4166 = vpop.permute.xlu0 %4165
  %4167 = vrot.lane.b32.xlu0 %v1741, 112
  %v4168 = vpop.permute.xlu0 %4167
  %4169 = vrot.lane.b32.xlu0 %v34, 112
  %v4170 = vpop.permute.xlu0 %4169
  %4171 = vrot.lane.b32.xlu0 %v1742, 112
  %v4172 = vpop.permute.xlu0 %4171
  %v4173 = vsel %vm1343, %v4170, %v4172
  %v4174 = vsel %vm1343, %v4168, %v4170
  %v4175 = vsel %vm1343, %v4166, %v4168
  %v4176 = vsel %vm1343, %v4172, %v4166
  %v4178 = vsel %vm1757, %v4164, 0
  %v4181 = vsel %vm1761, %v4175, 0
  %v4184 = vsel %vm1761, %v4174, 0
  %v4187 = vsel %vm1761, %v4173, 0
  %v4190 = vsel %vm1761, %v4176, 0
  %4192 = vmatprep.subr.mxu0 %v4184
  %4193 = vmatpush1.msra.mxu0 %v4181
  %4194 = vmatprep.subr.mxu0 0.0
  %4195 = vmatpush1.msra.mxu0 0.0
  %4196 = vmatprep.subr.mxu0 0.0
  %4197 = vmatpush1.msra.mxu0 0.0
  %4198 = vmatprep.subr.mxu0 0.0
  %4199 = vmatpush1.msra.mxu0 0.0
  %4200 = vmatprep.subr.mxu0 0.0
  %4201 = vmatpush1.msra.mxu0 0.0
  %4202 = vmatprep.subr.mxu0 0.0
  %4203 = vmatpush1.msra.mxu0 0.0
  %4204 = vmatprep.subr.mxu0 0.0
  %4205 = vmatpush1.msra.mxu0 0.0
  %4206 = vmatprep.subr.mxu0 0.0
  %4207 = vmatpush1.msra.mxu0 0.0
  %4208 = vmatprep.subr.mxu0 0.0
  %4209 = vmatpush1.msra.mxu0 0.0
  %4210 = vmatprep.subr.mxu0 0.0
  %4211 = vmatpush1.msra.mxu0 0.0
  %4212 = vmatprep.subr.mxu0 0.0
  %4213 = vmatpush1.msra.mxu0 0.0
  %4214 = vmatprep.subr.mxu0 0.0
  %4215 = vmatpush1.msra.mxu0 0.0
  %4216 = vmatprep.subr.mxu0 0.0
  %4217 = vmatpush1.msra.mxu0 0.0
  %4218 = vmatprep.subr.mxu0 0.0
  %4219 = vmatpush1.msra.mxu0 0.0
  %4220 = vmatprep.subr.mxu0 0.0
  %4221 = vmatpush1.msra.mxu0 0.0
  %4222 = vmatprep.subr.mxu0 0.0
  %4223 = vmatpush1.msra.mxu0 0.0
  %4224 = vmatprep.subr.mxu0 0.0
  %4225 = vmatpush1.msra.mxu0 0.0
  %4226 = vmatprep.subr.mxu0 0.0
  %4227 = vmatpush1.msra.mxu0 0.0
  %4228 = vmatprep.subr.mxu0 0.0
  %4229 = vmatpush1.msra.mxu0 0.0
  %4230 = vmatprep.subr.mxu0 0.0
  %4231 = vmatpush1.msra.mxu0 0.0
  %4232 = vmatprep.subr.mxu0 0.0
  %4233 = vmatpush1.msra.mxu0 0.0
  %4234 = vmatprep.subr.mxu0 0.0
  %4235 = vmatpush1.msra.mxu0 0.0
  %4236 = vmatprep.subr.mxu0 0.0
  %4237 = vmatpush1.msra.mxu0 0.0
  %4238 = vmatprep.subr.mxu0 0.0
  %4239 = vmatpush1.msra.mxu0 0.0
  %4240 = vmatprep.subr.mxu0 0.0
  %4241 = vmatpush1.msra.mxu0 0.0
  %4242 = vmatprep.subr.mxu0 0.0
  %4243 = vmatpush1.msra.mxu0 0.0
  %4244 = vmatprep.subr.mxu0 0.0
  %4245 = vmatpush1.msra.mxu0 0.0
  %4246 = vmatprep.subr.mxu0 0.0
  %4247 = vmatpush1.msra.mxu0 0.0
  %4248 = vmatprep.subr.mxu0 0.0
  %4249 = vmatpush1.msra.mxu0 0.0
  %4250 = vmatprep.subr.mxu0 0.0
  %4251 = vmatpush1.msra.mxu0 0.0
  %4252 = vmatprep.subr.mxu0 0.0
  %4253 = vmatpush1.msra.mxu0 0.0
  %4254 = vmatprep.subr.mxu0 0.0
  %4255 = vmatpush1.msra.mxu0 0.0
  %4256 = vmatprep.mubr.f32.mxu0 0.0
  %4257 = vmatmul.mubr.f32.gmra.mrb[0].mxu0 %v4178
  %v4258 = vpop.f32.mrb[0].mxu0
  %v4259 = vadd.f32 0.0, %v4258
  %v4260 = vpop.f32.mrb[0].mxu0
  %v4261 = vadd.f32 0.0, %v4260
  %4262 = vdwg.mxu0
  %4263 = vmatprep.subr.mxu0 %v4190
  %4264 = vmatpush1.msra.mxu0 %v4187
  %4265 = vmatprep.subr.mxu0 0.0
  %4266 = vmatpush1.msra.mxu0 0.0
  %4267 = vmatprep.subr.mxu0 0.0
  %4268 = vmatpush1.msra.mxu0 0.0
  %4269 = vmatprep.subr.mxu0 0.0
  %4270 = vmatpush1.msra.mxu0 0.0
  %4271 = vmatprep.subr.mxu0 0.0
  %4272 = vmatpush1.msra.mxu0 0.0
  %4273 = vmatprep.subr.mxu0 0.0
  %4274 = vmatpush1.msra.mxu0 0.0
  %4275 = vmatprep.subr.mxu0 0.0
  %4276 = vmatpush1.msra.mxu0 0.0
  %4277 = vmatprep.subr.mxu0 0.0
  %4278 = vmatpush1.msra.mxu0 0.0
  %4279 = vmatprep.subr.mxu0 0.0
  %4280 = vmatpush1.msra.mxu0 0.0
  %4281 = vmatprep.subr.mxu0 0.0
  %4282 = vmatpush1.msra.mxu0 0.0
  %4283 = vmatprep.subr.mxu0 0.0
  %4284 = vmatpush1.msra.mxu0 0.0
  %4285 = vmatprep.subr.mxu0 0.0
  %4286 = vmatpush1.msra.mxu0 0.0
  %4287 = vmatprep.subr.mxu0 0.0
  %4288 = vmatpush1.msra.mxu0 0.0
  %4289 = vmatprep.subr.mxu0 0.0
  %4290 = vmatpush1.msra.mxu0 0.0
  %4291 = vmatprep.subr.mxu0 0.0
  %4292 = vmatpush1.msra.mxu0 0.0
  %4293 = vmatprep.subr.mxu0 0.0
  %4294 = vmatpush1.msra.mxu0 0.0
  %4295 = vmatprep.subr.mxu0 0.0
  %4296 = vmatpush1.msra.mxu0 0.0
  %4297 = vmatprep.subr.mxu0 0.0
  %4298 = vmatpush1.msra.mxu0 0.0
  %4299 = vmatprep.subr.mxu0 0.0
  %4300 = vmatpush1.msra.mxu0 0.0
  %4301 = vmatprep.subr.mxu0 0.0
  %4302 = vmatpush1.msra.mxu0 0.0
  %4303 = vmatprep.subr.mxu0 0.0
  %4304 = vmatpush1.msra.mxu0 0.0
  %4305 = vmatprep.subr.mxu0 0.0
  %4306 = vmatpush1.msra.mxu0 0.0
  %4307 = vmatprep.subr.mxu0 0.0
  %4308 = vmatpush1.msra.mxu0 0.0
  %4309 = vmatprep.subr.mxu0 0.0
  %4310 = vmatpush1.msra.mxu0 0.0
  %4311 = vmatprep.subr.mxu0 0.0
  %4312 = vmatpush1.msra.mxu0 0.0
  %4313 = vmatprep.subr.mxu0 0.0
  %4314 = vmatpush1.msra.mxu0 0.0
  %4315 = vmatprep.subr.mxu0 0.0
  %4316 = vmatpush1.msra.mxu0 0.0
  %4317 = vmatprep.subr.mxu0 0.0
  %4318 = vmatpush1.msra.mxu0 0.0
  %4319 = vmatprep.subr.mxu0 0.0
  %4320 = vmatpush1.msra.mxu0 0.0
  %4321 = vmatprep.subr.mxu0 0.0
  %4322 = vmatpush1.msra.mxu0 0.0
  %4323 = vmatprep.subr.mxu0 0.0
  %4324 = vmatpush1.msra.mxu0 0.0
  %4325 = vmatprep.subr.mxu0 0.0
  %4326 = vmatpush1.msra.mxu0 0.0
  %4327 = vmatprep.mubr.f32.mxu0 0.0
  %4328 = vmatmul.mubr.f32.gmra.mrb[0].mxu0 %v4178
  %v4329 = vpop.f32.mrb[0].mxu0
  %v4330 = vadd.f32 0.0, %v4329
  %v4331 = vpop.f32.mrb[0].mxu0
  %v4332 = vadd.f32 0.0, %v4331
  %4333 = vdwg.mxu0
  %v4335 = vsel %vm1757, %v4150, 0
  %v4338 = vsel %vm1761, %v4161, 0
  %v4341 = vsel %vm1761, %v4160, 0
  %v4344 = vsel %vm1761, %v4159, 0
  %v4347 = vsel %vm1761, %v4162, 0
  %4349 = vmatprep.subr.mxu0 %v4341
  %4350 = vmatpush1.msra.mxu0 %v4338
  %4351 = vmatprep.subr.mxu0 0.0
  %4352 = vmatpush1.msra.mxu0 0.0
  %4353 = vmatprep.subr.mxu0 0.0
  %4354 = vmatpush1.msra.mxu0 0.0
  %4355 = vmatprep.subr.mxu0 0.0
  %4356 = vmatpush1.msra.mxu0 0.0
  %4357 = vmatprep.subr.mxu0 0.0
  %4358 = vmatpush1.msra.mxu0 0.0
  %4359 = vmatprep.subr.mxu0 0.0
  %4360 = vmatpush1.msra.mxu0 0.0
  %4361 = vmatprep.subr.mxu0 0.0
  %4362 = vmatpush1.msra.mxu0 0.0
  %4363 = vmatprep.subr.mxu0 0.0
  %4364 = vmatpush1.msra.mxu0 0.0
  %4365 = vmatprep.subr.mxu0 0.0
  %4366 = vmatpush1.msra.mxu0 0.0
  %4367 = vmatprep.subr.mxu0 0.0
  %4368 = vmatpush1.msra.mxu0 0.0
  %4369 = vmatprep.subr.mxu0 0.0
  %4370 = vmatpush1.msra.mxu0 0.0
  %4371 = vmatprep.subr.mxu0 0.0
  %4372 = vmatpush1.msra.mxu0 0.0
  %4373 = vmatprep.subr.mxu0 0.0
  %4374 = vmatpush1.msra.mxu0 0.0
  %4375 = vmatprep.subr.mxu0 0.0
  %4376 = vmatpush1.msra.mxu0 0.0
  %4377 = vmatprep.subr.mxu0 0.0
  %4378 = vmatpush1.msra.mxu0 0.0
  %4379 = vmatprep.subr.mxu0 0.0
  %4380 = vmatpush1.msra.mxu0 0.0
  %4381 = vmatprep.subr.mxu0 0.0
  %4382 = vmatpush1.msra.mxu0 0.0
  %4383 = vmatprep.subr.mxu0 0.0
  %4384 = vmatpush1.msra.mxu0 0.0
  %4385 = vmatprep.subr.mxu0 0.0
  %4386 = vmatpush1.msra.mxu0 0.0
  %4387 = vmatprep.subr.mxu0 0.0
  %4388 = vmatpush1.msra.mxu0 0.0
  %4389 = vmatprep.subr.mxu0 0.0
  %4390 = vmatpush1.msra.mxu0 0.0
  %4391 = vmatprep.subr.mxu0 0.0
  %4392 = vmatpush1.msra.mxu0 0.0
  %4393 = vmatprep.subr.mxu0 0.0
  %4394 = vmatpush1.msra.mxu0 0.0
  %4395 = vmatprep.subr.mxu0 0.0
  %4396 = vmatpush1.msra.mxu0 0.0
  %4397 = vmatprep.subr.mxu0 0.0
  %4398 = vmatpush1.msra.mxu0 0.0
  %4399 = vmatprep.subr.mxu0 0.0
  %4400 = vmatpush1.msra.mxu0 0.0
  %4401 = vmatprep.subr.mxu0 0.0
  %4402 = vmatpush1.msra.mxu0 0.0
  %4403 = vmatprep.subr.mxu0 0.0
  %4404 = vmatpush1.msra.mxu0 0.0
  %4405 = vmatprep.subr.mxu0 0.0
  %4406 = vmatpush1.msra.mxu0 0.0
  %4407 = vmatprep.subr.mxu0 0.0
  %4408 = vmatpush1.msra.mxu0 0.0
  %4409 = vmatprep.subr.mxu0 0.0
  %4410 = vmatpush1.msra.mxu0 0.0
  %4411 = vmatprep.subr.mxu0 0.0
  %4412 = vmatpush1.msra.mxu0 0.0
  %4413 = vmatprep.mubr.f32.mxu0 0.0
  %4414 = vmatmul.mubr.f32.gmra.mrb[0].mxu0 %v4335
  %v4415 = vpop.f32.mrb[0].mxu0
  %v4416 = vadd.f32 %v4259, %v4415
  %v4417 = vpop.f32.mrb[0].mxu0
  %v4418 = vadd.f32 %v4261, %v4417
  %4419 = vdwg.mxu0
  %4420 = vmatprep.subr.mxu0 %v4347
  %4421 = vmatpush1.msra.mxu0 %v4344
  %4422 = vmatprep.subr.mxu0 0.0
  %4423 = vmatpush1.msra.mxu0 0.0
  %4424 = vmatprep.subr.mxu0 0.0
  %4425 = vmatpush1.msra.mxu0 0.0
  %4426 = vmatprep.subr.mxu0 0.0
  %4427 = vmatpush1.msra.mxu0 0.0
  %4428 = vmatprep.subr.mxu0 0.0
  %4429 = vmatpush1.msra.mxu0 0.0
  %4430 = vmatprep.subr.mxu0 0.0
  %4431 = vmatpush1.msra.mxu0 0.0
  %4432 = vmatprep.subr.mxu0 0.0
  %4433 = vmatpush1.msra.mxu0 0.0
  %4434 = vmatprep.subr.mxu0 0.0
  %4435 = vmatpush1.msra.mxu0 0.0
  %4436 = vmatprep.subr.mxu0 0.0
  %4437 = vmatpush1.msra.mxu0 0.0
  %4438 = vmatprep.subr.mxu0 0.0
  %4439 = vmatpush1.msra.mxu0 0.0
  %4440 = vmatprep.subr.mxu0 0.0
  %4441 = vmatpush1.msra.mxu0 0.0
  %4442 = vmatprep.subr.mxu0 0.0
  %4443 = vmatpush1.msra.mxu0 0.0
  %4444 = vmatprep.subr.mxu0 0.0
  %4445 = vmatpush1.msra.mxu0 0.0
  %4446 = vmatprep.subr.mxu0 0.0
  %4447 = vmatpush1.msra.mxu0 0.0
  %4448 = vmatprep.subr.mxu0 0.0
  %4449 = vmatpush1.msra.mxu0 0.0
  %4450 = vmatprep.subr.mxu0 0.0
  %4451 = vmatpush1.msra.mxu0 0.0
  %4452 = vmatprep.subr.mxu0 0.0
  %4453 = vmatpush1.msra.mxu0 0.0
  %4454 = vmatprep.subr.mxu0 0.0
  %4455 = vmatpush1.msra.mxu0 0.0
  %4456 = vmatprep.subr.mxu0 0.0
  %4457 = vmatpush1.msra.mxu0 0.0
  %4458 = vmatprep.subr.mxu0 0.0
  %4459 = vmatpush1.msra.mxu0 0.0
  %4460 = vmatprep.subr.mxu0 0.0
  %4461 = vmatpush1.msra.mxu0 0.0
  %4462 = vmatprep.subr.mxu0 0.0
  %4463 = vmatpush1.msra.mxu0 0.0
  %4464 = vmatprep.subr.mxu0 0.0
  %4465 = vmatpush1.msra.mxu0 0.0
  %4466 = vmatprep.subr.mxu0 0.0
  %4467 = vmatpush1.msra.mxu0 0.0
  %4468 = vmatprep.subr.mxu0 0.0
  %4469 = vmatpush1.msra.mxu0 0.0
  %4470 = vmatprep.subr.mxu0 0.0
  %4471 = vmatpush1.msra.mxu0 0.0
  %4472 = vmatprep.subr.mxu0 0.0
  %4473 = vmatpush1.msra.mxu0 0.0
  %4474 = vmatprep.subr.mxu0 0.0
  %4475 = vmatpush1.msra.mxu0 0.0
  %4476 = vmatprep.subr.mxu0 0.0
  %4477 = vmatpush1.msra.mxu0 0.0
  %4478 = vmatprep.subr.mxu0 0.0
  %4479 = vmatpush1.msra.mxu0 0.0
  %4480 = vmatprep.subr.mxu0 0.0
  %4481 = vmatpush1.msra.mxu0 0.0
  %4482 = vmatprep.subr.mxu0 0.0
  %4483 = vmatpush1.msra.mxu0 0.0
  %4484 = vmatprep.mubr.f32.mxu0 0.0
  %4485 = vmatmul.mubr.f32.gmra.mrb[0].mxu0 %v4335
  %v4486 = vpop.f32.mrb[0].mxu0
  %v4487 = vadd.f32 %v4330, %v4486
  %v4488 = vpop.f32.mrb[0].mxu0
  %v4489 = vadd.f32 %v4332, %v4488
  %4490 = vdwg.mxu0
  %v4491 = vmul.f32 %v4416, %v1499
  %v4492 = vmul.f32 %v4418, %v1503
  %v4493 = vmul.f32 %v4487, %v1507
  %v4494 = vmul.f32 %v4489, %v1511
  %v4495 = vadd.f32 %v4145, %v4491
  %v4496 = vadd.f32 %v4146, %v4492
  %v4497 = vadd.f32 %v4147, %v4493
  %v4498 = vadd.f32 %v4148, %v4494
  %s4499 = scalar_lea.vmem %s3, 32
  %v4500 = vld [vmem:[%s4499] sm:$0xf]
  %4501 = vrot.lane.b32.xlu0 %v1721, 111
  %v4502 = vpop.permute.xlu0 %4501
  %4503 = vrot.lane.b32.xlu0 %v1722, 111
  %v4504 = vpop.permute.xlu0 %4503
  %4505 = vrot.lane.b32.xlu0 %v1723, 111
  %v4506 = vpop.permute.xlu0 %4505
  %4507 = vrot.lane.b32.xlu0 %v1724, 111
  %v4508 = vpop.permute.xlu0 %4507
  %v4509 = vsel %vm1534, %v4506, %v4508
  %v4510 = vsel %vm1534, %v4504, %v4506
  %v4511 = vsel %vm1534, %v4502, %v4504
  %v4512 = vsel %vm1534, %v4508, %v4502
  %s4513 = scalar_lea.vmem %s4, 32
  %v4514 = vld [vmem:[%s4513] sm:$0xf]
  %4515 = vrot.lane.b32.xlu0 %v33, 111
  %v4516 = vpop.permute.xlu0 %4515
  %4517 = vrot.lane.b32.xlu0 %v1741, 111
  %v4518 = vpop.permute.xlu0 %4517
  %4519 = vrot.lane.b32.xlu0 %v34, 111
  %v4520 = vpop.permute.xlu0 %4519
  %4521 = vrot.lane.b32.xlu0 %v1742, 111
  %v4522 = vpop.permute.xlu0 %4521
  %v4523 = vsel %vm1534, %v4520, %v4522
  %v4524 = vsel %vm1534, %v4518, %v4520
  %v4525 = vsel %vm1534, %v4516, %v4518
  %v4526 = vsel %vm1534, %v4522, %v4516
  %v4528 = vsel %vm1757, %v4514, 0
  %v4531 = vsel %vm1761, %v4525, 0
  %v4534 = vsel %vm1761, %v4524, 0
  %v4537 = vsel %vm1761, %v4523, 0
  %v4540 = vsel %vm1761, %v4526, 0
  %4542 = vmatprep.subr.mxu0 %v4534
  %4543 = vmatpush1.msra.mxu0 %v4531
  %4544 = vmatprep.subr.mxu0 0.0
  %4545 = vmatpush1.msra.mxu0 0.0
  %4546 = vmatprep.subr.mxu0 0.0
  %4547 = vmatpush1.msra.mxu0 0.0
  %4548 = vmatprep.subr.mxu0 0.0
  %4549 = vmatpush1.msra.mxu0 0.0
  %4550 = vmatprep.subr.mxu0 0.0
  %4551 = vmatpush1.msra.mxu0 0.0
  %4552 = vmatprep.subr.mxu0 0.0
  %4553 = vmatpush1.msra.mxu0 0.0
  %4554 = vmatprep.subr.mxu0 0.0
  %4555 = vmatpush1.msra.mxu0 0.0
  %4556 = vmatprep.subr.mxu0 0.0
  %4557 = vmatpush1.msra.mxu0 0.0
  %4558 = vmatprep.subr.mxu0 0.0
  %4559 = vmatpush1.msra.mxu0 0.0
  %4560 = vmatprep.subr.mxu0 0.0
  %4561 = vmatpush1.msra.mxu0 0.0
  %4562 = vmatprep.subr.mxu0 0.0
  %4563 = vmatpush1.msra.mxu0 0.0
  %4564 = vmatprep.subr.mxu0 0.0
  %4565 = vmatpush1.msra.mxu0 0.0
  %4566 = vmatprep.subr.mxu0 0.0
  %4567 = vmatpush1.msra.mxu0 0.0
  %4568 = vmatprep.subr.mxu0 0.0
  %4569 = vmatpush1.msra.mxu0 0.0
  %4570 = vmatprep.subr.mxu0 0.0
  %4571 = vmatpush1.msra.mxu0 0.0
  %4572 = vmatprep.subr.mxu0 0.0
  %4573 = vmatpush1.msra.mxu0 0.0
  %4574 = vmatprep.subr.mxu0 0.0
  %4575 = vmatpush1.msra.mxu0 0.0
  %4576 = vmatprep.subr.mxu0 0.0
  %4577 = vmatpush1.msra.mxu0 0.0
  %4578 = vmatprep.subr.mxu0 0.0
  %4579 = vmatpush1.msra.mxu0 0.0
  %4580 = vmatprep.subr.mxu0 0.0
  %4581 = vmatpush1.msra.mxu0 0.0
  %4582 = vmatprep.subr.mxu0 0.0
  %4583 = vmatpush1.msra.mxu0 0.0
  %4584 = vmatprep.subr.mxu0 0.0
  %4585 = vmatpush1.msra.mxu0 0.0
  %4586 = vmatprep.subr.mxu0 0.0
  %4587 = vmatpush1.msra.mxu0 0.0
  %4588 = vmatprep.subr.mxu0 0.0
  %4589 = vmatpush1.msra.mxu0 0.0
  %4590 = vmatprep.subr.mxu0 0.0
  %4591 = vmatpush1.msra.mxu0 0.0
  %4592 = vmatprep.subr.mxu0 0.0
  %4593 = vmatpush1.msra.mxu0 0.0
  %4594 = vmatprep.subr.mxu0 0.0
  %4595 = vmatpush1.msra.mxu0 0.0
  %4596 = vmatprep.subr.mxu0 0.0
  %4597 = vmatpush1.msra.mxu0 0.0
  %4598 = vmatprep.subr.mxu0 0.0
  %4599 = vmatpush1.msra.mxu0 0.0
  %4600 = vmatprep.subr.mxu0 0.0
  %4601 = vmatpush1.msra.mxu0 0.0
  %4602 = vmatprep.subr.mxu0 0.0
  %4603 = vmatpush1.msra.mxu0 0.0
  %4604 = vmatprep.subr.mxu0 0.0
  %4605 = vmatpush1.msra.mxu0 0.0
  %4606 = vmatprep.mubr.f32.mxu0 0.0
  %4607 = vmatmul.mubr.f32.gmra.mrb[0].mxu0 %v4528
  %v4608 = vpop.f32.mrb[0].mxu0
  %v4609 = vadd.f32 0.0, %v4608
  %v4610 = vpop.f32.mrb[0].mxu0
  %v4611 = vadd.f32 0.0, %v4610
  %4612 = vdwg.mxu0
  %4613 = vmatprep.subr.mxu0 %v4540
  %4614 = vmatpush1.msra.mxu0 %v4537
  %4615 = vmatprep.subr.mxu0 0.0
  %4616 = vmatpush1.msra.mxu0 0.0
  %4617 = vmatprep.subr.mxu0 0.0
  %4618 = vmatpush1.msra.mxu0 0.0
  %4619 = vmatprep.subr.mxu0 0.0
  %4620 = vmatpush1.msra.mxu0 0.0
  %4621 = vmatprep.subr.mxu0 0.0
  %4622 = vmatpush1.msra.mxu0 0.0
  %4623 = vmatprep.subr.mxu0 0.0
  %4624 = vmatpush1.msra.mxu0 0.0
  %4625 = vmatprep.subr.mxu0 0.0
  %4626 = vmatpush1.msra.mxu0 0.0
  %4627 = vmatprep.subr.mxu0 0.0
  %4628 = vmatpush1.msra.mxu0 0.0
  %4629 = vmatprep.subr.mxu0 0.0
  %4630 = vmatpush1.msra.mxu0 0.0
  %4631 = vmatprep.subr.mxu0 0.0
  %4632 = vmatpush1.msra.mxu0 0.0
  %4633 = vmatprep.subr.mxu0 0.0
  %4634 = vmatpush1.msra.mxu0 0.0
  %4635 = vmatprep.subr.mxu0 0.0
  %4636 = vmatpush1.msra.mxu0 0.0
  %4637 = vmatprep.subr.mxu0 0.0
  %4638 = vmatpush1.msra.mxu0 0.0
  %4639 = vmatprep.subr.mxu0 0.0
  %4640 = vmatpush1.msra.mxu0 0.0
  %4641 = vmatprep.subr.mxu0 0.0
  %4642 = vmatpush1.msra.mxu0 0.0
  %4643 = vmatprep.subr.mxu0 0.0
  %4644 = vmatpush1.msra.mxu0 0.0
  %4645 = vmatprep.subr.mxu0 0.0
  %4646 = vmatpush1.msra.mxu0 0.0
  %4647 = vmatprep.subr.mxu0 0.0
  %4648 = vmatpush1.msra.mxu0 0.0
  %4649 = vmatprep.subr.mxu0 0.0
  %4650 = vmatpush1.msra.mxu0 0.0
  %4651 = vmatprep.subr.mxu0 0.0
  %4652 = vmatpush1.msra.mxu0 0.0
  %4653 = vmatprep.subr.mxu0 0.0
  %4654 = vmatpush1.msra.mxu0 0.0
  %4655 = vmatprep.subr.mxu0 0.0
  %4656 = vmatpush1.msra.mxu0 0.0
  %4657 = vmatprep.subr.mxu0 0.0
  %4658 = vmatpush1.msra.mxu0 0.0
  %4659 = vmatprep.subr.mxu0 0.0
  %4660 = vmatpush1.msra.mxu0 0.0
  %4661 = vmatprep.subr.mxu0 0.0
  %4662 = vmatpush1.msra.mxu0 0.0
  %4663 = vmatprep.subr.mxu0 0.0
  %4664 = vmatpush1.msra.mxu0 0.0
  %4665 = vmatprep.subr.mxu0 0.0
  %4666 = vmatpush1.msra.mxu0 0.0
  %4667 = vmatprep.subr.mxu0 0.0
  %4668 = vmatpush1.msra.mxu0 0.0
  %4669 = vmatprep.subr.mxu0 0.0
  %4670 = vmatpush1.msra.mxu0 0.0
  %4671 = vmatprep.subr.mxu0 0.0
  %4672 = vmatpush1.msra.mxu0 0.0
  %4673 = vmatprep.subr.mxu0 0.0
  %4674 = vmatpush1.msra.mxu0 0.0
  %4675 = vmatprep.subr.mxu0 0.0
  %4676 = vmatpush1.msra.mxu0 0.0
  %4677 = vmatprep.mubr.f32.mxu0 0.0
  %4678 = vmatmul.mubr.f32.gmra.mrb[0].mxu0 %v4528
  %v4679 = vpop.f32.mrb[0].mxu0
  %v4680 = vadd.f32 0.0, %v4679
  %v4681 = vpop.f32.mrb[0].mxu0
  %v4682 = vadd.f32 0.0, %v4681
  %4683 = vdwg.mxu0
  %v4685 = vsel %vm1757, %v4500, 0
  %v4688 = vsel %vm1761, %v4511, 0
  %v4691 = vsel %vm1761, %v4510, 0
  %v4694 = vsel %vm1761, %v4509, 0
  %v4697 = vsel %vm1761, %v4512, 0
  %4699 = vmatprep.subr.mxu0 %v4691
  %4700 = vmatpush1.msra.mxu0 %v4688
  %4701 = vmatprep.subr.mxu0 0.0
  %4702 = vmatpush1.msra.mxu0 0.0
  %4703 = vmatprep.subr.mxu0 0.0
  %4704 = vmatpush1.msra.mxu0 0.0
  %4705 = vmatprep.subr.mxu0 0.0
  %4706 = vmatpush1.msra.mxu0 0.0
  %4707 = vmatprep.subr.mxu0 0.0
  %4708 = vmatpush1.msra.mxu0 0.0
  %4709 = vmatprep.subr.mxu0 0.0
  %4710 = vmatpush1.msra.mxu0 0.0
  %4711 = vmatprep.subr.mxu0 0.0
  %4712 = vmatpush1.msra.mxu0 0.0
  %4713 = vmatprep.subr.mxu0 0.0
  %4714 = vmatpush1.msra.mxu0 0.0
  %4715 = vmatprep.subr.mxu0 0.0
  %4716 = vmatpush1.msra.mxu0 0.0
  %4717 = vmatprep.subr.mxu0 0.0
  %4718 = vmatpush1.msra.mxu0 0.0
  %4719 = vmatprep.subr.mxu0 0.0
  %4720 = vmatpush1.msra.mxu0 0.0
  %4721 = vmatprep.subr.mxu0 0.0
  %4722 = vmatpush1.msra.mxu0 0.0
  %4723 = vmatprep.subr.mxu0 0.0
  %4724 = vmatpush1.msra.mxu0 0.0
  %4725 = vmatprep.subr.mxu0 0.0
  %4726 = vmatpush1.msra.mxu0 0.0
  %4727 = vmatprep.subr.mxu0 0.0
  %4728 = vmatpush1.msra.mxu0 0.0
  %4729 = vmatprep.subr.mxu0 0.0
  %4730 = vmatpush1.msra.mxu0 0.0
  %4731 = vmatprep.subr.mxu0 0.0
  %4732 = vmatpush1.msra.mxu0 0.0
  %4733 = vmatprep.subr.mxu0 0.0
  %4734 = vmatpush1.msra.mxu0 0.0
  %4735 = vmatprep.subr.mxu0 0.0
  %4736 = vmatpush1.msra.mxu0 0.0
  %4737 = vmatprep.subr.mxu0 0.0
  %4738 = vmatpush1.msra.mxu0 0.0
  %4739 = vmatprep.subr.mxu0 0.0
  %4740 = vmatpush1.msra.mxu0 0.0
  %4741 = vmatprep.subr.mxu0 0.0
  %4742 = vmatpush1.msra.mxu0 0.0
  %4743 = vmatprep.subr.mxu0 0.0
  %4744 = vmatpush1.msra.mxu0 0.0
  %4745 = vmatprep.subr.mxu0 0.0
  %4746 = vmatpush1.msra.mxu0 0.0
  %4747 = vmatprep.subr.mxu0 0.0
  %4748 = vmatpush1.msra.mxu0 0.0
  %4749 = vmatprep.subr.mxu0 0.0
  %4750 = vmatpush1.msra.mxu0 0.0
  %4751 = vmatprep.subr.mxu0 0.0
  %4752 = vmatpush1.msra.mxu0 0.0
  %4753 = vmatprep.subr.mxu0 0.0
  %4754 = vmatpush1.msra.mxu0 0.0
  %4755 = vmatprep.subr.mxu0 0.0
  %4756 = vmatpush1.msra.mxu0 0.0
  %4757 = vmatprep.subr.mxu0 0.0
  %4758 = vmatpush1.msra.mxu0 0.0
  %4759 = vmatprep.subr.mxu0 0.0
  %4760 = vmatpush1.msra.mxu0 0.0
  %4761 = vmatprep.subr.mxu0 0.0
  %4762 = vmatpush1.msra.mxu0 0.0
  %4763 = vmatprep.mubr.f32.mxu0 0.0
  %4764 = vmatmul.mubr.f32.gmra.mrb[0].mxu0 %v4685
  %v4765 = vpop.f32.mrb[0].mxu0
  %v4766 = vadd.f32 %v4609, %v4765
  %v4767 = vpop.f32.mrb[0].mxu0
  %v4768 = vadd.f32 %v4611, %v4767
  %4769 = vdwg.mxu0
  %4770 = vmatprep.subr.mxu0 %v4697
  %4771 = vmatpush1.msra.mxu0 %v4694
  %4772 = vmatprep.subr.mxu0 0.0
  %4773 = vmatpush1.msra.mxu0 0.0
  %4774 = vmatprep.subr.mxu0 0.0
  %4775 = vmatpush1.msra.mxu0 0.0
  %4776 = vmatprep.subr.mxu0 0.0
  %4777 = vmatpush1.msra.mxu0 0.0
  %4778 = vmatprep.subr.mxu0 0.0
  %4779 = vmatpush1.msra.mxu0 0.0
  %4780 = vmatprep.subr.mxu0 0.0
  %4781 = vmatpush1.msra.mxu0 0.0
  %4782 = vmatprep.subr.mxu0 0.0
  %4783 = vmatpush1.msra.mxu0 0.0
  %4784 = vmatprep.subr.mxu0 0.0
  %4785 = vmatpush1.msra.mxu0 0.0
  %4786 = vmatprep.subr.mxu0 0.0
  %4787 = vmatpush1.msra.mxu0 0.0
  %4788 = vmatprep.subr.mxu0 0.0
  %4789 = vmatpush1.msra.mxu0 0.0
  %4790 = vmatprep.subr.mxu0 0.0
  %4791 = vmatpush1.msra.mxu0 0.0
  %4792 = vmatprep.subr.mxu0 0.0
  %4793 = vmatpush1.msra.mxu0 0.0
  %4794 = vmatprep.subr.mxu0 0.0
  %4795 = vmatpush1.msra.mxu0 0.0
  %4796 = vmatprep.subr.mxu0 0.0
  %4797 = vmatpush1.msra.mxu0 0.0
  %4798 = vmatprep.subr.mxu0 0.0
  %4799 = vmatpush1.msra.mxu0 0.0
  %4800 = vmatprep.subr.mxu0 0.0
  %4801 = vmatpush1.msra.mxu0 0.0
  %4802 = vmatprep.subr.mxu0 0.0
  %4803 = vmatpush1.msra.mxu0 0.0
  %4804 = vmatprep.subr.mxu0 0.0
  %4805 = vmatpush1.msra.mxu0 0.0
  %4806 = vmatprep.subr.mxu0 0.0
  %4807 = vmatpush1.msra.mxu0 0.0
  %4808 = vmatprep.subr.mxu0 0.0
  %4809 = vmatpush1.msra.mxu0 0.0
  %4810 = vmatprep.subr.mxu0 0.0
  %4811 = vmatpush1.msra.mxu0 0.0
  %4812 = vmatprep.subr.mxu0 0.0
  %4813 = vmatpush1.msra.mxu0 0.0
  %4814 = vmatprep.subr.mxu0 0.0
  %4815 = vmatpush1.msra.mxu0 0.0
  %4816 = vmatprep.subr.mxu0 0.0
  %4817 = vmatpush1.msra.mxu0 0.0
  %4818 = vmatprep.subr.mxu0 0.0
  %4819 = vmatpush1.msra.mxu0 0.0
  %4820 = vmatprep.subr.mxu0 0.0
  %4821 = vmatpush1.msra.mxu0 0.0
  %4822 = vmatprep.subr.mxu0 0.0
  %4823 = vmatpush1.msra.mxu0 0.0
  %4824 = vmatprep.subr.mxu0 0.0
  %4825 = vmatpush1.msra.mxu0 0.0
  %4826 = vmatprep.subr.mxu0 0.0
  %4827 = vmatpush1.msra.mxu0 0.0
  %4828 = vmatprep.subr.mxu0 0.0
  %4829 = vmatpush1.msra.mxu0 0.0
  %4830 = vmatprep.subr.mxu0 0.0
  %4831 = vmatpush1.msra.mxu0 0.0
  %4832 = vmatprep.subr.mxu0 0.0
  %4833 = vmatpush1.msra.mxu0 0.0
  %4834 = vmatprep.mubr.f32.mxu0 0.0
  %4835 = vmatmul.mubr.f32.gmra.mrb[0].mxu0 %v4685
  %v4836 = vpop.f32.mrb[0].mxu0
  %v4837 = vadd.f32 %v4680, %v4836
  %v4838 = vpop.f32.mrb[0].mxu0
  %v4839 = vadd.f32 %v4682, %v4838
  %4840 = vdwg.mxu0
  %v4841 = vmul.f32 %v4766, %v1690
  %v4842 = vmul.f32 %v4768, %v1694
  %v4843 = vmul.f32 %v4837, %v1698
  %v4844 = vmul.f32 %v4839, %v1702
  %v4845 = vadd.f32 %v4495, %v4841
  %v4846 = vadd.f32 %v4496, %v4842
  %v4847 = vadd.f32 %v4497, %v4843
  %v4848 = vadd.f32 %v4498, %v4844
  %v4849 = vld [vmem:[%s5] sm:$0xf]
  %4851 = vset.pattern.permute.xlu0 1
  %4852 = vperm.xlu0 %4851, %v4849
  %v4853 = vpop.permute.xlu0 %4852
  %v4855 = vadd.f32 %v4845, %v4853
  %v4856 = vadd.f32 %v4846, %v4853
  %v4857 = vadd.f32 %v4847, %v4853
  %v4858 = vadd.f32 %v4848, %v4853
  %v4859 = vmax.f32 %v4855, 0.0
  %v4860 = vmax.f32 %v4856, 0.0
  %v4861 = vmax.f32 %v4857, 0.0
  %v4862 = vmax.f32 %v4858, 0.0
  %4863 = vrot.lane.b32.xlu0 %v4859, 17
  %v4864 = vpop.permute.xlu0 %4863
  %4865 = vrot.lane.b32.xlu0 %v4860, 17
  %v4866 = vpop.permute.xlu0 %4865
  %4867 = vrot.lane.b32.xlu0 %v4861, 17
  %v4868 = vpop.permute.xlu0 %4867
  %4869 = vrot.lane.b32.xlu0 %v4862, 17
  %v4870 = vpop.permute.xlu0 %4869
  %v4871 = vsel %vm46, %v4868, %v4870
  %v4872 = vsel %vm46, %v4866, %v4868
  %v4873 = vsel %vm46, %v4864, %v4866
  %v4874 = vsel %vm46, %v4870, %v4864
  %v4875 = vld [vmem:[%s7] sm:$0xff]
  %v4876 = vld [vmem:[%s7 + $0x8] sm:$0xff]
  %v4879 = vcombine.high %v4875, %v4875
  %v4880 = vcombine.high %v4876, %v4876
  %v4883 = vmul.f32 %v4874, %v4875
  %v4884 = vmul.f32 %v4873, %v4879
  %v4885 = vmul.f32 %v4872, %v4876
  %v4886 = vmul.f32 %v4871, %v4880
  %v4887 = vadd.f32 %v4883, 0.0
  %v4888 = vadd.f32 %v4884, 0.0
  %v4889 = vadd.f32 %v4885, 0.0
  %v4890 = vadd.f32 %v4886, 0.0
  %4891 = vrot.lane.b32.xlu0 %v4859, 16
  %v4892 = vpop.permute.xlu0 %4891
  %4893 = vrot.lane.b32.xlu0 %v4860, 16
  %v4894 = vpop.permute.xlu0 %4893
  %4895 = vrot.lane.b32.xlu0 %v4861, 16
  %v4896 = vpop.permute.xlu0 %4895
  %4897 = vrot.lane.b32.xlu0 %v4862, 16
  %v4898 = vpop.permute.xlu0 %4897
  %v4899 = vsel %vm237, %v4896, %v4898
  %v4900 = vsel %vm237, %v4894, %v4896
  %v4901 = vsel %vm237, %v4892, %v4894
  %v4902 = vsel %vm237, %v4898, %v4892
  %s4903 = scalar_lea.vmem %s7, 16
  %v4904 = vld [vmem:[%s4903] sm:$0xff]
  %v4905 = vld [vmem:[%s4903 + $0x8] sm:$0xff]
  %v4908 = vcombine.high %v4904, %v4904
  %v4909 = vcombine.high %v4905, %v4905
  %v4912 = vmul.f32 %v4902, %v4904
  %v4913 = vmul.f32 %v4901, %v4908
  %v4914 = vmul.f32 %v4900, %v4905
  %v4915 = vmul.f32 %v4899, %v4909
  %v4916 = vadd.f32 %v4887, %v4912
  %v4917 = vadd.f32 %v4888, %v4913
  %v4918 = vadd.f32 %v4889, %v4914
  %v4919 = vadd.f32 %v4890, %v4915
  %4920 = vrot.lane.b32.xlu0 %v4859, 15
  %v4921 = vpop.permute.xlu0 %4920
  %4922 = vrot.lane.b32.xlu0 %v4860, 15
  %v4923 = vpop.permute.xlu0 %4922
  %4924 = vrot.lane.b32.xlu0 %v4861, 15
  %v4925 = vpop.permute.xlu0 %4924
  %4926 = vrot.lane.b32.xlu0 %v4862, 15
  %v4927 = vpop.permute.xlu0 %4926
  %v4928 = vsel %vm428, %v4925, %v4927
  %v4929 = vsel %vm428, %v4923, %v4925
  %v4930 = vsel %vm428, %v4921, %v4923
  %v4931 = vsel %vm428, %v4927, %v4921
  %s4932 = scalar_lea.vmem %s7, 32
  %v4933 = vld [vmem:[%s4932] sm:$0xff]
  %v4934 = vld [vmem:[%s4932 + $0x8] sm:$0xff]
  %v4937 = vcombine.high %v4933, %v4933
  %v4938 = vcombine.high %v4934, %v4934
  %v4941 = vmul.f32 %v4931, %v4933
  %v4942 = vmul.f32 %v4930, %v4937
  %v4943 = vmul.f32 %v4929, %v4934
  %v4944 = vmul.f32 %v4928, %v4938
  %v4945 = vadd.f32 %v4916, %v4941
  %v4946 = vadd.f32 %v4917, %v4942
  %v4947 = vadd.f32 %v4918, %v4943
  %v4948 = vadd.f32 %v4919, %v4944
  %4949 = vrot.lane.b32.xlu0 %v4859, 1
  %v4950 = vpop.permute.xlu0 %4949
  %4951 = vrot.lane.b32.xlu0 %v4860, 1
  %v4952 = vpop.permute.xlu0 %4951
  %4953 = vrot.lane.b32.xlu0 %v4861, 1
  %v4954 = vpop.permute.xlu0 %4953
  %4955 = vrot.lane.b32.xlu0 %v4862, 1
  %v4956 = vpop.permute.xlu0 %4955
  %v4957 = vsel %vm619, %v4954, %v4956
  %v4958 = vsel %vm619, %v4952, %v4954
  %v4959 = vsel %vm619, %v4950, %v4952
  %v4960 = vsel %vm619, %v4956, %v4950
  %s4961 = scalar_lea.vmem %s7, 48
  %v4962 = vld [vmem:[%s4961] sm:$0xff]
  %v4963 = vld [vmem:[%s4961 + $0x8] sm:$0xff]
  %v4966 = vcombine.high %v4962, %v4962
  %v4967 = vcombine.high %v4963, %v4963
  %v4970 = vmul.f32 %v4960, %v4962
  %v4971 = vmul.f32 %v4959, %v4966
  %v4972 = vmul.f32 %v4958, %v4963
  %v4973 = vmul.f32 %v4957, %v4967
  %v4974 = vadd.f32 %v4945, %v4970
  %v4975 = vadd.f32 %v4946, %v4971
  %v4976 = vadd.f32 %v4947, %v4972
  %v4977 = vadd.f32 %v4948, %v4973
  %s4978 = scalar_lea.vmem %s7, 64
  %v4979 = vld [vmem:[%s4978] sm:$0xff]
  %v4980 = vld [vmem:[%s4978 + $0x8] sm:$0xff]
  %v4983 = vcombine.high %v4979, %v4979
  %v4984 = vcombine.high %v4980, %v4980
  %v4987 = vmul.f32 %v4859, %v4979
  %v4988 = vmul.f32 %v4860, %v4983
  %v4989 = vmul.f32 %v4861, %v4980
  %v4990 = vmul.f32 %v4862, %v4984
  %v4991 = vadd.f32 %v4974, %v4987
  %v4992 = vadd.f32 %v4975, %v4988
  %v4993 = vadd.f32 %v4976, %v4989
  %v4994 = vadd.f32 %v4977, %v4990
  %4995 = vrot.lane.b32.xlu0 %v4859, 127
  %v4996 = vpop.permute.xlu0 %4995
  %4997 = vrot.lane.b32.xlu0 %v4860, 127
  %v4998 = vpop.permute.xlu0 %4997
  %4999 = vrot.lane.b32.xlu0 %v4861, 127
  %v5000 = vpop.permute.xlu0 %4999
  %5001 = vrot.lane.b32.xlu0 %v4862, 127
  %v5002 = vpop.permute.xlu0 %5001
  %v5003 = vsel %vm961, %v5000, %v5002
  %v5004 = vsel %vm961, %v4998, %v5000
  %v5005 = vsel %vm961, %v4996, %v4998
  %v5006 = vsel %vm961, %v5002, %v4996
  %s5007 = scalar_lea.vmem %s7, 80
  %v5008 = vld [vmem:[%s5007] sm:$0xff]
  %v5009 = vld [vmem:[%s5007 + $0x8] sm:$0xff]
  %v5012 = vcombine.high %v5008, %v5008
  %v5013 = vcombine.high %v5009, %v5009
  %v5016 = vmul.f32 %v5005, %v5008
  %v5017 = vmul.f32 %v5004, %v5012
  %v5018 = vmul.f32 %v5003, %v5009
  %v5019 = vmul.f32 %v5006, %v5013
  %v5020 = vadd.f32 %v4991, %v5016
  %v5021 = vadd.f32 %v4992, %v5017
  %v5022 = vadd.f32 %v4993, %v5018
  %v5023 = vadd.f32 %v4994, %v5019
  %5024 = vrot.lane.b32.xlu0 %v4859, 113
  %v5025 = vpop.permute.xlu0 %5024
  %5026 = vrot.lane.b32.xlu0 %v4860, 113
  %v5027 = vpop.permute.xlu0 %5026
  %5028 = vrot.lane.b32.xlu0 %v4861, 113
  %v5029 = vpop.permute.xlu0 %5028
  %5030 = vrot.lane.b32.xlu0 %v4862, 113
  %v5031 = vpop.permute.xlu0 %5030
  %v5032 = vsel %vm1152, %v5029, %v5031
  %v5033 = vsel %vm1152, %v5027, %v5029
  %v5034 = vsel %vm1152, %v5025, %v5027
  %v5035 = vsel %vm1152, %v5031, %v5025
  %s5036 = scalar_lea.vmem %s7, 96
  %v5037 = vld [vmem:[%s5036] sm:$0xff]
  %v5038 = vld [vmem:[%s5036 + $0x8] sm:$0xff]
  %v5041 = vcombine.high %v5037, %v5037
  %v5042 = vcombine.high %v5038, %v5038
  %v5045 = vmul.f32 %v5034, %v5037
  %v5046 = vmul.f32 %v5033, %v5041
  %v5047 = vmul.f32 %v5032, %v5038
  %v5048 = vmul.f32 %v5035, %v5042
  %v5049 = vadd.f32 %v5020, %v5045
  %v5050 = vadd.f32 %v5021, %v5046
  %v5051 = vadd.f32 %v5022, %v5047
  %v5052 = vadd.f32 %v5023, %v5048
  %5053 = vrot.lane.b32.xlu0 %v4859, 112
  %v5054 = vpop.permute.xlu0 %5053
  %5055 = vrot.lane.b32.xlu0 %v4860, 112
  %v5056 = vpop.permute.xlu0 %5055
  %5057 = vrot.lane.b32.xlu0 %v4861, 112
  %v5058 = vpop.permute.xlu0 %5057
  %5059 = vrot.lane.b32.xlu0 %v4862, 112
  %v5060 = vpop.permute.xlu0 %5059
  %v5061 = vsel %vm1343, %v5058, %v5060
  %v5062 = vsel %vm1343, %v5056, %v5058
  %v5063 = vsel %vm1343, %v5054, %v5056
  %v5064 = vsel %vm1343, %v5060, %v5054
  %s5065 = scalar_lea.vmem %s7, 112
  %v5066 = vld [vmem:[%s5065] sm:$0xff]
  %v5067 = vld [vmem:[%s5065 + $0x8] sm:$0xff]
  %v5070 = vcombine.high %v5066, %v5066
  %v5071 = vcombine.high %v5067, %v5067
  %v5074 = vmul.f32 %v5063, %v5066
  %v5075 = vmul.f32 %v5062, %v5070
  %v5076 = vmul.f32 %v5061, %v5067
  %v5077 = vmul.f32 %v5064, %v5071
  %v5078 = vadd.f32 %v5049, %v5074
  %v5079 = vadd.f32 %v5050, %v5075
  %v5080 = vadd.f32 %v5051, %v5076
  %v5081 = vadd.f32 %v5052, %v5077
  %5082 = vrot.lane.b32.xlu0 %v4859, 111
  %v5083 = vpop.permute.xlu0 %5082
  %5084 = vrot.lane.b32.xlu0 %v4860, 111
  %v5085 = vpop.permute.xlu0 %5084
  %5086 = vrot.lane.b32.xlu0 %v4861, 111
  %v5087 = vpop.permute.xlu0 %5086
  %5088 = vrot.lane.b32.xlu0 %v4862, 111
  %v5089 = vpop.permute.xlu0 %5088
  %v5090 = vsel %vm1534, %v5087, %v5089
  %v5091 = vsel %vm1534, %v5085, %v5087
  %v5092 = vsel %vm1534, %v5083, %v5085
  %v5093 = vsel %vm1534, %v5089, %v5083
  %s5094 = scalar_lea.vmem %s7, 128
  %v5095 = vld [vmem:[%s5094] sm:$0xff]
  %v5096 = vld [vmem:[%s5094 + $0x8] sm:$0xff]
  %v5099 = vcombine.high %v5095, %v5095
  %v5100 = vcombine.high %v5096, %v5096
  %v5103 = vmul.f32 %v5092, %v5095
  %v5104 = vmul.f32 %v5091, %v5099
  %v5105 = vmul.f32 %v5090, %v5096
  %v5106 = vmul.f32 %v5093, %v5100
  %v5107 = vadd.f32 %v5078, %v5103
  %v5108 = vadd.f32 %v5079, %v5104
  %v5109 = vadd.f32 %v5080, %v5105
  %v5110 = vadd.f32 %v5081, %v5106
  %v5111 = vld [vmem:[%s5] sm:$0xf]
  %5113 = vset.pattern.permute.xlu0 2
  %5114 = vperm.xlu0 %5113, %v5111
  %v5115 = vpop.permute.xlu0 %5114
  %v5117 = vadd.f32 %v5107, %v5115
  %v5118 = vadd.f32 %v5108, %v5115
  %v5119 = vadd.f32 %v5109, %v5115
  %v5120 = vadd.f32 %v5110, %v5115
  %v5121 = vmax.f32 %v5117, 0.0
  %v5122 = vmax.f32 %v5118, 0.0
  %v5123 = vmax.f32 %v5119, 0.0
  %v5124 = vmax.f32 %v5120, 0.0
  %v5129 = vcombine.low %v5121, %v5122
  %v5130 = vcombine.low %v5123, %v5124
  %5133 = vst [vmem:[%s8] sm:$0xff] %v5129
  %5134 = vst [vmem:[%s8 + $0x8] sm:$0xff] %v5130
  // Predicated region
  $region34: #{resblock_forward.1} parent=0 // pred_check
    _
  $region35: #{resblock_forward.1} parent=0 // pred_check_branch
    %5136 = sbr.rel (0) target = $region37
  $region36: #{resblock_forward.1} parent=0 // pred_region
    _
  $region37: #{resblock_forward.1} parent=0 // pred_fallthru
    _
  // Predicated region
  $region38: #{resblock_forward.1} parent=0 // pred_check
    _
  $region39: #{resblock_forward.1} parent=0 // pred_check_branch
    %5138 = sbr.rel (0) target = $region41
  $region40: #{resblock_forward.1} parent=0 // pred_region
    _
  $region41: #{resblock_forward.1} parent=0 // pred_fallthru
    _

</llo_original>
